<compile_context>
chip_gen: v7x
topology: tpu7x:2x2x1
jax: 0.10.0
libtpu: 0.0.40
codegen_flags: <defaults>
</compile_context>

<pallas_src>
import functools
import numpy as np
import jax
import jax.numpy as jnp
from jax.experimental import pallas as pl
from jax.experimental.pallas import tpu as pltpu

HIGH = jax.lax.Precision.HIGHEST


# --------------------------------------------------------------------------- kernel
def conv3x3_kernel(x_ref, w_ref, b_ref, o_ref, *, lrelu_slope, transpose_out):
    """Fused 3x3 'SAME' conv on a block of frames.

    x_ref: (F, H+2, W+2, Cin)  zero-padded NHWC frames
    w_ref: (9*Cin, Cout)       HWIO weight reshaped to a matmul matrix (bf16)
    b_ref: (1, Cout)           bias
    o_ref: (F, H*W, Cout)      if not transpose_out
           (1, Cout, F*H*W)    if transpose_out (channels-first, lane-dense)
    """
    F, Hp, Wp, Cin = x_ref.shape
    H, W = Hp - 2, Wp - 2
    w = w_ref[...]                                              # bf16 (9*Cin, Cout)

    # Build the im2col patch matrix fully in VMEM (9 shifted slices per frame).
    rows = []
    for f in range(F):
        xf = x_ref[f].astype(jnp.float32)                       # (H+2, W+2, Cin)
        cols = [xf[dy:dy + H, dx:dx + W, :].reshape(H * W, Cin)
                for dy in range(3) for dx in range(3)]
        rows.append(jnp.concatenate(cols, axis=-1))             # (H*W, 9*Cin)
    patches = jnp.concatenate(rows, axis=0).astype(w.dtype)     # (F*H*W, 9*Cin)

    # Single MXU matmul, f32 accumulation, fused bias (+ LeakyReLU).
    y = jnp.dot(patches, w, preferred_element_type=jnp.float32)
    y = y + b_ref[...].astype(jnp.float32)                      # (F*H*W, Cout)
    if lrelu_slope is not None:
        y = jnp.where(y >= 0.0, y, lrelu_slope * y)

    if transpose_out:
        # Channels-first, lane-dense store: (Cout, F*H*W).
        o_ref[0] = y.T.astype(o_ref.dtype)
    else:
        for f in range(F):
            o_ref[f] = y[f * H * W:(f + 1) * H * W, :].astype(o_ref.dtype)


# --------------------------------------------------------------------------- wrappers
def conv3x3_lrelu_pallas(x_nhwc, w_hwio, bias, frames_per_step, slope):
    """before_conv + bias + LeakyReLU (LeakyReLU commutes with PixelShuffle)."""
    N, H, W, Cin = x_nhwc.shape
    Cout = w_hwio.shape[-1]
    F = frames_per_step
    assert N % F == 0
    xp = jnp.pad(x_nhwc, ((0, 0), (1, 1), (1, 1), (0, 0)))
    wmat = w_hwio.reshape(9 * Cin, Cout).astype(jnp.bfloat16)   # bf16 MXU operand
    kern = functools.partial(conv3x3_kernel, lrelu_slope=slope, transpose_out=False)
    out = pl.pallas_call(
        kern,
        out_shape=jax.ShapeDtypeStruct((N, H * W, Cout), x_nhwc.dtype),
        grid=(N // F,),
        in_specs=[pl.BlockSpec((F, H + 2, W + 2, Cin), lambda i: (i, 0, 0, 0)),
                  pl.BlockSpec((9 * Cin, Cout), lambda i: (0, 0)),
                  pl.BlockSpec((1, Cout), lambda i: (0, 0))],
        out_specs=pl.BlockSpec((F, H * W, Cout), lambda i: (i, 0, 0)),
        compiler_params=pltpu.CompilerParams(dimension_semantics=("parallel",)),
    )(xp, wmat, bias.reshape(1, Cout))
    return out.reshape(N, H, W, Cout)


def conv3x3_cf_pallas(x_nhwc, w_hwio, bias, batch, frames_per_step):
    """after_conv + bias; result written channels-first in the final layout."""
    N, H, W, Cin = x_nhwc.shape
    Cout = w_hwio.shape[-1]
    F = frames_per_step
    assert N == batch * F
    xp = jnp.pad(x_nhwc, ((0, 0), (1, 1), (1, 1), (0, 0)))
    wmat = w_hwio.reshape(9 * Cin, Cout).astype(jnp.bfloat16)
    kern = functools.partial(conv3x3_kernel, lrelu_slope=None, transpose_out=True)
    out = pl.pallas_call(
        kern,
        out_shape=jax.ShapeDtypeStruct((batch, Cout, F * H * W), x_nhwc.dtype),
        grid=(batch,),
        in_specs=[pl.BlockSpec((F, H + 2, W + 2, Cin), lambda i: (i, 0, 0, 0)),
                  pl.BlockSpec((9 * Cin, Cout), lambda i: (0, 0)),
                  pl.BlockSpec((1, Cout), lambda i: (0, 0))],
        out_specs=pl.BlockSpec((1, Cout, F * H * W), lambda i: (i, 0, 0)),
        compiler_params=pltpu.CompilerParams(dimension_semantics=("parallel",)),
    )(xp, wmat, bias.reshape(1, Cout))
    # Free (contiguous) reshape to (B, C/2, T, 2H, 2W).
    return out.reshape(batch, Cout, F, H, W)


# --------------------------------------------------------------------------- glue
def pixel_shuffle_nhwc(y, r=2):
    """PyTorch PixelShuffle semantics in NHWC: channel k = c*r*r + i*r + j."""
    N, H, W, Crr = y.shape
    C = Crr // (r * r)
    y = y.reshape(N, H, W, C, r, r)
    y = y.transpose(0, 1, 4, 2, 5, 3)          # (N, H, i, W, j, C)
    return y.reshape(N, H * r, W * r, C)


def patch_expand_forward(x_bcthw, params, use_pallas=True):
    B, C, T, H, W = x_bcthw.shape
    # b c t h w -> (b t) h w c   (channels-last frames; conv math is identical)
    x = jnp.transpose(x_bcthw, (0, 2, 3, 4, 1)).reshape(B * T, H, W, C)

    if use_pallas:
        # before_conv (+ bias + LeakyReLU fused; LeakyReLU commutes with shuffle)
        y = conv3x3_lrelu_pallas(x, params["before_w"], params["before_b"],
                                 frames_per_step=T, slope=0.1)      # (BT, H, W, 2C)
        z = pixel_shuffle_nhwc(y, 2)                                 # (BT, 2H, 2W, C//2)
        # after_conv, stored directly as (B, C//2, T, 2H, 2W)
        return conv3x3_cf_pallas(z, params["after_w"], params["after_b"],
                                 batch=B, frames_per_step=T)

    # ---- pure-JAX reference (exact PyTorch op order) ----
    y = jax.lax.conv_general_dilated(
        x, params["before_w"], (1, 1), "SAME",
        dimension_numbers=("NHWC", "HWIO", "NHWC"), precision=HIGH) + params["before_b"]
    z = pixel_shuffle_nhwc(y, 2)
    z = jnp.where(z >= 0.0, z, 0.1 * z)                              # LeakyReLU(0.1)
    o = jax.lax.conv_general_dilated(
        z, params["after_w"], (1, 1), "SAME",
        dimension_numbers=("NHWC", "HWIO", "NHWC"), precision=HIGH) + params["after_b"]
    o = o.reshape(B, T, 2 * H, 2 * W, C // 2)
    return jnp.transpose(o, (0, 4, 1, 2, 3))                         # (B, C//2, T, 2H, 2W)


# --------------------------------------------------------------------------- params
def init_params(key, dim):
    k1, k2, k3, k4 = jax.random.split(key, 4)
    return dict(
        before_w=0.05 * jax.random.normal(k1, (3, 3, dim, 2 * dim), jnp.float32),     # HWIO
        before_b=0.02 * jax.random.normal(k2, (2 * dim,), jnp.float32),
        after_w=0.05 * jax.random.normal(k3, (3, 3, dim // 2, dim // 2), jnp.float32),  # HWIO
        after_b=0.02 * jax.random.normal(k4, (dim // 2,), jnp.float32),
    )


# --------------------------------------------------------------------------- main
if __name__ == "__main__":
    B, C, T, H, W = 2, 32, 2, 8, 8

    key = jax.random.PRNGKey(0)
    kx, kp = jax.random.split(key)
    x = jax.random.normal(kx, (B, C, T, H, W), jnp.float32)
    params = init_params(kp, C)

    fwd = jax.jit(lambda xx, pp: patch_expand_forward(xx, pp, use_pallas=True))
    out = jax.block_until_ready(fwd(x, params))

    ref = jax.block_until_ready(patch_expand_forward(x, params, use_pallas=False))

    assert out.shape == (B, C // 2, T, 2 * H, 2 * W)
    np.testing.assert_allclose(np.asarray(out), np.asarray(ref), rtol=2e-2, atol=2e-2)
    print("KERNEL_OK")
</pallas_src>

<mosaic_0001>
module attributes {stable_mosaic.version = 11 : i64} {
  func.func @conv3x3_kernel(%arg0: i32, %arg1: memref<2x10x10x32xf32, #tpu.memory_space<vmem>>, %arg2: memref<288x64xbf16, #tpu.memory_space<vmem>>, %arg3: memref<1x64xf32, #tpu.memory_space<vmem>>, %arg4: memref<2x64x64xf32, #tpu.memory_space<vmem>>) attributes {dimension_semantics = [#tpu.dimension_semantics<parallel>], iteration_bounds = array<i64: 2>, scalar_prefetch = 0 : i64, scratch_operands = 0 : i64, tpu.core_type = #tpu.core_type<tc>, window_params = [{transform_indices = @transform_0, window_bounds = array<i64: 2, 10, 10, 32>}, {pipeline_mode = #tpu.pipeline_mode<synchronous>, transform_indices = @transform_1, window_bounds = array<i64: 288, 64>}, {pipeline_mode = #tpu.pipeline_mode<synchronous>, transform_indices = @transform_2, window_bounds = array<i64: 1, 64>}, {transform_indices = @transform_3, window_bounds = array<i64: 2, 64, 64>}]} {
    %c0 = arith.constant 0 : index
    %c0_0 = arith.constant 0 : index
    %0 = vector.load %arg2[%c0, %c0_0] : memref<288x64xbf16, #tpu.memory_space<vmem>>, vector<288x64xbf16>
    %c0_1 = arith.constant 0 : index
    %c0_2 = arith.constant 0 : index
    %c0_3 = arith.constant 0 : index
    %c0_4 = arith.constant 0 : index
    %1 = vector.load %arg1[%c0_1, %c0_2, %c0_3, %c0_4] : memref<2x10x10x32xf32, #tpu.memory_space<vmem>>, vector<1x10x10x32xf32>
    %2 = vector.shape_cast %1 : vector<1x10x10x32xf32> to vector<10x10x32xf32>
    %3 = vector.extract_strided_slice %2 {offsets = [0, 0, 0], sizes = [8, 8, 32], strides = [1, 1, 1]} : vector<10x10x32xf32> to vector<8x8x32xf32>
    %4 = vector.shape_cast %3 : vector<8x8x32xf32> to vector<64x32xf32>
    %5 = vector.extract_strided_slice %2 {offsets = [0, 1, 0], sizes = [8, 8, 32], strides = [1, 1, 1]} : vector<10x10x32xf32> to vector<8x8x32xf32>
    %6 = vector.shape_cast %5 : vector<8x8x32xf32> to vector<64x32xf32>
    %7 = vector.extract_strided_slice %2 {offsets = [0, 2, 0], sizes = [8, 8, 32], strides = [1, 1, 1]} : vector<10x10x32xf32> to vector<8x8x32xf32>
    %8 = vector.shape_cast %7 : vector<8x8x32xf32> to vector<64x32xf32>
    %9 = vector.extract_strided_slice %2 {offsets = [1, 0, 0], sizes = [8, 8, 32], strides = [1, 1, 1]} : vector<10x10x32xf32> to vector<8x8x32xf32>
    %10 = vector.shape_cast %9 : vector<8x8x32xf32> to vector<64x32xf32>
    %11 = vector.extract_strided_slice %2 {offsets = [1, 1, 0], sizes = [8, 8, 32], strides = [1, 1, 1]} : vector<10x10x32xf32> to vector<8x8x32xf32>
    %12 = vector.shape_cast %11 : vector<8x8x32xf32> to vector<64x32xf32>
    %13 = vector.extract_strided_slice %2 {offsets = [1, 2, 0], sizes = [8, 8, 32], strides = [1, 1, 1]} : vector<10x10x32xf32> to vector<8x8x32xf32>
    %14 = vector.shape_cast %13 : vector<8x8x32xf32> to vector<64x32xf32>
    %15 = vector.extract_strided_slice %2 {offsets = [2, 0, 0], sizes = [8, 8, 32], strides = [1, 1, 1]} : vector<10x10x32xf32> to vector<8x8x32xf32>
    %16 = vector.shape_cast %15 : vector<8x8x32xf32> to vector<64x32xf32>
    %17 = vector.extract_strided_slice %2 {offsets = [2, 1, 0], sizes = [8, 8, 32], strides = [1, 1, 1]} : vector<10x10x32xf32> to vector<8x8x32xf32>
    %18 = vector.shape_cast %17 : vector<8x8x32xf32> to vector<64x32xf32>
    %19 = vector.extract_strided_slice %2 {offsets = [2, 2, 0], sizes = [8, 8, 32], strides = [1, 1, 1]} : vector<10x10x32xf32> to vector<8x8x32xf32>
    %20 = vector.shape_cast %19 : vector<8x8x32xf32> to vector<64x32xf32>
    %21 = tpu.concatenate %4, %6, %8, %10, %12, %14, %16, %18, %20 in 1 : vector<64x32xf32>, vector<64x32xf32>, vector<64x32xf32>, vector<64x32xf32>, vector<64x32xf32>, vector<64x32xf32>, vector<64x32xf32>, vector<64x32xf32>, vector<64x32xf32> -> vector<64x288xf32>
    %c1 = arith.constant 1 : index
    %c0_5 = arith.constant 0 : index
    %c0_6 = arith.constant 0 : index
    %c0_7 = arith.constant 0 : index
    %22 = vector.load %arg1[%c1, %c0_5, %c0_6, %c0_7] : memref<2x10x10x32xf32, #tpu.memory_space<vmem>>, vector<1x10x10x32xf32>
    %23 = vector.shape_cast %22 : vector<1x10x10x32xf32> to vector<10x10x32xf32>
    %24 = vector.extract_strided_slice %23 {offsets = [0, 0, 0], sizes = [8, 8, 32], strides = [1, 1, 1]} : vector<10x10x32xf32> to vector<8x8x32xf32>
    %25 = vector.shape_cast %24 : vector<8x8x32xf32> to vector<64x32xf32>
    %26 = vector.extract_strided_slice %23 {offsets = [0, 1, 0], sizes = [8, 8, 32], strides = [1, 1, 1]} : vector<10x10x32xf32> to vector<8x8x32xf32>
    %27 = vector.shape_cast %26 : vector<8x8x32xf32> to vector<64x32xf32>
    %28 = vector.extract_strided_slice %23 {offsets = [0, 2, 0], sizes = [8, 8, 32], strides = [1, 1, 1]} : vector<10x10x32xf32> to vector<8x8x32xf32>
    %29 = vector.shape_cast %28 : vector<8x8x32xf32> to vector<64x32xf32>
    %30 = vector.extract_strided_slice %23 {offsets = [1, 0, 0], sizes = [8, 8, 32], strides = [1, 1, 1]} : vector<10x10x32xf32> to vector<8x8x32xf32>
    %31 = vector.shape_cast %30 : vector<8x8x32xf32> to vector<64x32xf32>
    %32 = vector.extract_strided_slice %23 {offsets = [1, 1, 0], sizes = [8, 8, 32], strides = [1, 1, 1]} : vector<10x10x32xf32> to vector<8x8x32xf32>
    %33 = vector.shape_cast %32 : vector<8x8x32xf32> to vector<64x32xf32>
    %34 = vector.extract_strided_slice %23 {offsets = [1, 2, 0], sizes = [8, 8, 32], strides = [1, 1, 1]} : vector<10x10x32xf32> to vector<8x8x32xf32>
    %35 = vector.shape_cast %34 : vector<8x8x32xf32> to vector<64x32xf32>
    %36 = vector.extract_strided_slice %23 {offsets = [2, 0, 0], sizes = [8, 8, 32], strides = [1, 1, 1]} : vector<10x10x32xf32> to vector<8x8x32xf32>
    %37 = vector.shape_cast %36 : vector<8x8x32xf32> to vector<64x32xf32>
    %38 = vector.extract_strided_slice %23 {offsets = [2, 1, 0], sizes = [8, 8, 32], strides = [1, 1, 1]} : vector<10x10x32xf32> to vector<8x8x32xf32>
    %39 = vector.shape_cast %38 : vector<8x8x32xf32> to vector<64x32xf32>
    %40 = vector.extract_strided_slice %23 {offsets = [2, 2, 0], sizes = [8, 8, 32], strides = [1, 1, 1]} : vector<10x10x32xf32> to vector<8x8x32xf32>
    %41 = vector.shape_cast %40 : vector<8x8x32xf32> to vector<64x32xf32>
    %42 = tpu.concatenate %25, %27, %29, %31, %33, %35, %37, %39, %41 in 1 : vector<64x32xf32>, vector<64x32xf32>, vector<64x32xf32>, vector<64x32xf32>, vector<64x32xf32>, vector<64x32xf32>, vector<64x32xf32>, vector<64x32xf32>, vector<64x32xf32> -> vector<64x288xf32>
    %43 = tpu.concatenate %21, %42 in 0 : vector<64x288xf32>, vector<64x288xf32> -> vector<128x288xf32>
    %44 = arith.truncf %43 : vector<128x288xf32> to vector<128x288xbf16>
    %cst = arith.constant dense<0.000000e+00> : vector<128x64xf32>
    %45 = tpu.matmul %44, %0, %cst {dimension_numbers = #tpu.dot_dimension_numbers<[1], [0], [0], [1], [0, 0, 1, 1], [], []>} : vector<128x288xbf16>, vector<288x64xbf16>, vector<128x64xf32> -> vector<128x64xf32>
    %c0_8 = arith.constant 0 : index
    %c0_9 = arith.constant 0 : index
    %46 = vector.load %arg3[%c0_8, %c0_9] : memref<1x64xf32, #tpu.memory_space<vmem>>, vector<1x64xf32>
    %47 = vector.broadcast %46 : vector<1x64xf32> to vector<128x64xf32>
    %48 = arith.addf %45, %47 : vector<128x64xf32>
    %cst_10 = arith.constant 0.000000e+00 : f32
    %49 = vector.broadcast %cst_10 : f32 to vector<128x64xf32>
    %50 = arith.cmpf oge, %48, %49 : vector<128x64xf32>
    %cst_11 = arith.constant 1.000000e-01 : f32
    %51 = vector.broadcast %cst_11 : f32 to vector<128x64xf32>
    %52 = arith.mulf %51, %48 : vector<128x64xf32>
    %53 = arith.select %50, %48, %52 : vector<128x64xi1>, vector<128x64xf32>
    %54 = vector.extract_strided_slice %53 {offsets = [0, 0], sizes = [64, 64], strides = [1, 1]} : vector<128x64xf32> to vector<64x64xf32>
    %c0_12 = arith.constant 0 : index
    %c0_13 = arith.constant 0 : index
    %c0_14 = arith.constant 0 : index
    %55 = vector.load %arg4[%c0_12, %c0_13, %c0_14] : memref<2x64x64xf32, #tpu.memory_space<vmem>>, vector<1x64x64xf32>
    %56 = vector.shape_cast %55 : vector<1x64x64xf32> to vector<64x64xf32>
    %57 = vector.shape_cast %54 : vector<64x64xf32> to vector<1x64x64xf32>
    tpu.vector_store %arg4[%c0_12, %c0_13, %c0_14], %57 {strides = array<i32>} : memref<2x64x64xf32, #tpu.memory_space<vmem>>, vector<1x64x64xf32>,
    %58 = vector.extract_strided_slice %53 {offsets = [64, 0], sizes = [64, 64], strides = [1, 1]} : vector<128x64xf32> to vector<64x64xf32>
    %c1_15 = arith.constant 1 : index
    %c0_16 = arith.constant 0 : index
    %c0_17 = arith.constant 0 : index
    %59 = vector.load %arg4[%c1_15, %c0_16, %c0_17] : memref<2x64x64xf32, #tpu.memory_space<vmem>>, vector<1x64x64xf32>
    %60 = vector.shape_cast %59 : vector<1x64x64xf32> to vector<64x64xf32>
    %61 = vector.shape_cast %58 : vector<64x64xf32> to vector<1x64x64xf32>
    tpu.vector_store %arg4[%c1_15, %c0_16, %c0_17], %61 {strides = array<i32>} : memref<2x64x64xf32, #tpu.memory_space<vmem>>, vector<1x64x64xf32>,
    return
  }
  func.func @transform_0(%arg0: i32) -> (i32, i32, i32, i32) {
    %c0_i32 = arith.constant 0 : i32
    %c0_i32_0 = arith.constant 0 : i32
    %c0_i32_1 = arith.constant 0 : i32
    %c0_i32_2 = arith.constant 0 : i32
    return %arg0, %c0_i32, %c0_i32_0, %c0_i32_1 : i32, i32, i32, i32
  }
  func.func @transform_1(%arg0: i32) -> (i32, i32) {
    %c0_i32 = arith.constant 0 : i32
    %c0_i32_0 = arith.constant 0 : i32
    %c0_i32_1 = arith.constant 0 : i32
    return %c0_i32, %c0_i32_0 : i32, i32
  }
  func.func @transform_2(%arg0: i32) -> (i32, i32) {
    %c0_i32 = arith.constant 0 : i32
    %c0_i32_0 = arith.constant 0 : i32
    %c0_i32_1 = arith.constant 0 : i32
    return %c0_i32, %c0_i32_0 : i32, i32
  }
  func.func @transform_3(%arg0: i32) -> (i32, i32, i32) {
    %c0_i32 = arith.constant 0 : i32
    %c0_i32_0 = arith.constant 0 : i32
    %c0_i32_1 = arith.constant 0 : i32
    return %arg0, %c0_i32, %c0_i32_0 : i32, i32, i32
  }
}

module attributes {stable_mosaic.version = 11 : i64} {
  func.func @conv3x3_kernel(%arg0: i32, %arg1: memref<2x18x18x16xf32, #tpu.memory_space<vmem>>, %arg2: memref<144x16xbf16, #tpu.memory_space<vmem>>, %arg3: memref<1x16xf32, #tpu.memory_space<vmem>>, %arg4: memref<1x16x512xf32, #tpu.memory_space<vmem>>) attributes {dimension_semantics = [#tpu.dimension_semantics<parallel>], iteration_bounds = array<i64: 2>, scalar_prefetch = 0 : i64, scratch_operands = 0 : i64, tpu.core_type = #tpu.core_type<tc>, window_params = [{transform_indices = @transform_0, window_bounds = array<i64: 2, 18, 18, 16>}, {pipeline_mode = #tpu.pipeline_mode<synchronous>, transform_indices = @transform_1, window_bounds = array<i64: 144, 16>}, {pipeline_mode = #tpu.pipeline_mode<synchronous>, transform_indices = @transform_2, window_bounds = array<i64: 1, 16>}, {transform_indices = @transform_3, window_bounds = array<i64: 1, 16, 512>}]} {
    %c0 = arith.constant 0 : index
    %c0_0 = arith.constant 0 : index
    %0 = vector.load %arg2[%c0, %c0_0] : memref<144x16xbf16, #tpu.memory_space<vmem>>, vector<144x16xbf16>
    %c0_1 = arith.constant 0 : index
    %c0_2 = arith.constant 0 : index
    %c0_3 = arith.constant 0 : index
    %c0_4 = arith.constant 0 : index
    %1 = vector.load %arg1[%c0_1, %c0_2, %c0_3, %c0_4] : memref<2x18x18x16xf32, #tpu.memory_space<vmem>>, vector<1x18x18x16xf32>
    %2 = vector.shape_cast %1 : vector<1x18x18x16xf32> to vector<18x18x16xf32>
    %3 = vector.extract_strided_slice %2 {offsets = [0, 0, 0], sizes = [16, 16, 16], strides = [1, 1, 1]} : vector<18x18x16xf32> to vector<16x16x16xf32>
    %4 = vector.shape_cast %3 : vector<16x16x16xf32> to vector<256x16xf32>
    %5 = vector.extract_strided_slice %2 {offsets = [0, 1, 0], sizes = [16, 16, 16], strides = [1, 1, 1]} : vector<18x18x16xf32> to vector<16x16x16xf32>
    %6 = vector.shape_cast %5 : vector<16x16x16xf32> to vector<256x16xf32>
    %7 = vector.extract_strided_slice %2 {offsets = [0, 2, 0], sizes = [16, 16, 16], strides = [1, 1, 1]} : vector<18x18x16xf32> to vector<16x16x16xf32>
    %8 = vector.shape_cast %7 : vector<16x16x16xf32> to vector<256x16xf32>
    %9 = vector.extract_strided_slice %2 {offsets = [1, 0, 0], sizes = [16, 16, 16], strides = [1, 1, 1]} : vector<18x18x16xf32> to vector<16x16x16xf32>
    %10 = vector.shape_cast %9 : vector<16x16x16xf32> to vector<256x16xf32>
    %11 = vector.extract_strided_slice %2 {offsets = [1, 1, 0], sizes = [16, 16, 16], strides = [1, 1, 1]} : vector<18x18x16xf32> to vector<16x16x16xf32>
    %12 = vector.shape_cast %11 : vector<16x16x16xf32> to vector<256x16xf32>
    %13 = vector.extract_strided_slice %2 {offsets = [1, 2, 0], sizes = [16, 16, 16], strides = [1, 1, 1]} : vector<18x18x16xf32> to vector<16x16x16xf32>
    %14 = vector.shape_cast %13 : vector<16x16x16xf32> to vector<256x16xf32>
    %15 = vector.extract_strided_slice %2 {offsets = [2, 0, 0], sizes = [16, 16, 16], strides = [1, 1, 1]} : vector<18x18x16xf32> to vector<16x16x16xf32>
    %16 = vector.shape_cast %15 : vector<16x16x16xf32> to vector<256x16xf32>
    %17 = vector.extract_strided_slice %2 {offsets = [2, 1, 0], sizes = [16, 16, 16], strides = [1, 1, 1]} : vector<18x18x16xf32> to vector<16x16x16xf32>
    %18 = vector.shape_cast %17 : vector<16x16x16xf32> to vector<256x16xf32>
    %19 = vector.extract_strided_slice %2 {offsets = [2, 2, 0], sizes = [16, 16, 16], strides = [1, 1, 1]} : vector<18x18x16xf32> to vector<16x16x16xf32>
    %20 = vector.shape_cast %19 : vector<16x16x16xf32> to vector<256x16xf32>
    %21 = tpu.concatenate %4, %6, %8, %10, %12, %14, %16, %18, %20 in 1 : vector<256x16xf32>, vector<256x16xf32>, vector<256x16xf32>, vector<256x16xf32>, vector<256x16xf32>, vector<256x16xf32>, vector<256x16xf32>, vector<256x16xf32>, vector<256x16xf32> -> vector<256x144xf32>
    %c1 = arith.constant 1 : index
    %c0_5 = arith.constant 0 : index
    %c0_6 = arith.constant 0 : index
    %c0_7 = arith.constant 0 : index
    %22 = vector.load %arg1[%c1, %c0_5, %c0_6, %c0_7] : memref<2x18x18x16xf32, #tpu.memory_space<vmem>>, vector<1x18x18x16xf32>
    %23 = vector.shape_cast %22 : vector<1x18x18x16xf32> to vector<18x18x16xf32>
    %24 = vector.extract_strided_slice %23 {offsets = [0, 0, 0], sizes = [16, 16, 16], strides = [1, 1, 1]} : vector<18x18x16xf32> to vector<16x16x16xf32>
    %25 = vector.shape_cast %24 : vector<16x16x16xf32> to vector<256x16xf32>
    %26 = vector.extract_strided_slice %23 {offsets = [0, 1, 0], sizes = [16, 16, 16], strides = [1, 1, 1]} : vector<18x18x16xf32> to vector<16x16x16xf32>
    %27 = vector.shape_cast %26 : vector<16x16x16xf32> to vector<256x16xf32>
    %28 = vector.extract_strided_slice %23 {offsets = [0, 2, 0], sizes = [16, 16, 16], strides = [1, 1, 1]} : vector<18x18x16xf32> to vector<16x16x16xf32>
    %29 = vector.shape_cast %28 : vector<16x16x16xf32> to vector<256x16xf32>
    %30 = vector.extract_strided_slice %23 {offsets = [1, 0, 0], sizes = [16, 16, 16], strides = [1, 1, 1]} : vector<18x18x16xf32> to vector<16x16x16xf32>
    %31 = vector.shape_cast %30 : vector<16x16x16xf32> to vector<256x16xf32>
    %32 = vector.extract_strided_slice %23 {offsets = [1, 1, 0], sizes = [16, 16, 16], strides = [1, 1, 1]} : vector<18x18x16xf32> to vector<16x16x16xf32>
    %33 = vector.shape_cast %32 : vector<16x16x16xf32> to vector<256x16xf32>
    %34 = vector.extract_strided_slice %23 {offsets = [1, 2, 0], sizes = [16, 16, 16], strides = [1, 1, 1]} : vector<18x18x16xf32> to vector<16x16x16xf32>
    %35 = vector.shape_cast %34 : vector<16x16x16xf32> to vector<256x16xf32>
    %36 = vector.extract_strided_slice %23 {offsets = [2, 0, 0], sizes = [16, 16, 16], strides = [1, 1, 1]} : vector<18x18x16xf32> to vector<16x16x16xf32>
    %37 = vector.shape_cast %36 : vector<16x16x16xf32> to vector<256x16xf32>
    %38 = vector.extract_strided_slice %23 {offsets = [2, 1, 0], sizes = [16, 16, 16], strides = [1, 1, 1]} : vector<18x18x16xf32> to vector<16x16x16xf32>
    %39 = vector.shape_cast %38 : vector<16x16x16xf32> to vector<256x16xf32>
    %40 = vector.extract_strided_slice %23 {offsets = [2, 2, 0], sizes = [16, 16, 16], strides = [1, 1, 1]} : vector<18x18x16xf32> to vector<16x16x16xf32>
    %41 = vector.shape_cast %40 : vector<16x16x16xf32> to vector<256x16xf32>
    %42 = tpu.concatenate %25, %27, %29, %31, %33, %35, %37, %39, %41 in 1 : vector<256x16xf32>, vector<256x16xf32>, vector<256x16xf32>, vector<256x16xf32>, vector<256x16xf32>, vector<256x16xf32>, vector<256x16xf32>, vector<256x16xf32>, vector<256x16xf32> -> vector<256x144xf32>
    %43 = tpu.concatenate %21, %42 in 0 : vector<256x144xf32>, vector<256x144xf32> -> vector<512x144xf32>
    %44 = arith.truncf %43 : vector<512x144xf32> to vector<512x144xbf16>
    %cst = arith.constant dense<0.000000e+00> : vector<512x16xf32>
    %45 = tpu.matmul %44, %0, %cst {dimension_numbers = #tpu.dot_dimension_numbers<[1], [0], [0], [1], [0, 0, 1, 1], [], []>} : vector<512x144xbf16>, vector<144x16xbf16>, vector<512x16xf32> -> vector<512x16xf32>
    %c0_8 = arith.constant 0 : index
    %c0_9 = arith.constant 0 : index
    %46 = vector.load %arg3[%c0_8, %c0_9] : memref<1x16xf32, #tpu.memory_space<vmem>>, vector<1x16xf32>
    %47 = vector.broadcast %46 : vector<1x16xf32> to vector<512x16xf32>
    %48 = arith.addf %45, %47 : vector<512x16xf32>
    %49 = tpu.transpose %48, [1, 0] : vector<512x16xf32> -> vector<16x512xf32>
    %c0_10 = arith.constant 0 : index
    %c0_11 = arith.constant 0 : index
    %c0_12 = arith.constant 0 : index
    %50 = vector.load %arg4[%c0_10, %c0_11, %c0_12] : memref<1x16x512xf32, #tpu.memory_space<vmem>>, vector<1x16x512xf32>
    %51 = vector.shape_cast %50 : vector<1x16x512xf32> to vector<16x512xf32>
    %52 = vector.shape_cast %49 : vector<16x512xf32> to vector<1x16x512xf32>
    tpu.vector_store %arg4[%c0_10, %c0_11, %c0_12], %52 {strides = array<i32>} : memref<1x16x512xf32, #tpu.memory_space<vmem>>, vector<1x16x512xf32>,
    return
  }
  func.func @transform_0(%arg0: i32) -> (i32, i32, i32, i32) {
    %c0_i32 = arith.constant 0 : i32
    %c0_i32_0 = arith.constant 0 : i32
    %c0_i32_1 = arith.constant 0 : i32
    %c0_i32_2 = arith.constant 0 : i32
    return %arg0, %c0_i32, %c0_i32_0, %c0_i32_1 : i32, i32, i32, i32
  }
  func.func @transform_1(%arg0: i32) -> (i32, i32) {
    %c0_i32 = arith.constant 0 : i32
    %c0_i32_0 = arith.constant 0 : i32
    %c0_i32_1 = arith.constant 0 : i32
    return %c0_i32, %c0_i32_0 : i32, i32
  }
  func.func @transform_2(%arg0: i32) -> (i32, i32) {
    %c0_i32 = arith.constant 0 : i32
    %c0_i32_0 = arith.constant 0 : i32
    %c0_i32_1 = arith.constant 0 : i32
    return %c0_i32, %c0_i32_0 : i32, i32
  }
  func.func @transform_3(%arg0: i32) -> (i32, i32, i32) {
    %c0_i32 = arith.constant 0 : i32
    %c0_i32_0 = arith.constant 0 : i32
    %c0_i32_1 = arith.constant 0 : i32
    return %arg0, %c0_i32, %c0_i32_0 : i32, i32, i32
  }
}

</mosaic_0001>

<llo_original>
// kernel: _lambda_.2
$region0: #{_lambda_.2}
  #allocation0 [shape = 'u32[]', space=smem, size = 0x4, offset = 0x4, fixed_abs, tag = 'smem constant byte address 0x4 - core index']
  #allocation1 [shape = 'u32[144,128]{1,0:T(1,128)}', space=vmem, size = 0x12000, scoped, tag = 'internal scratch']
  %s0 = inlined_call_operand.vmem [shape: f32[4,10,10,32], index: 0, kind: input, shape index: {}]
  %s1 = inlined_call_operand.vmem [shape: bf16[288,64], index: 1, kind: input, shape index: {}]
  %s2 = inlined_call_operand.vmem [shape: f32[1,64], index: 2, kind: input, shape index: {}]
  %s3 = inlined_call_operand.vmem [shape: f32[4,64,64], index: 3, kind: output, shape index: {}]
  %s4 = sld [smem:[#allocation0]]
  $region45: #{_lambda_.2} parent=0
    _
  %s6 = ssub.s32 1, %s4
  %s7 = scalar_select 0, %s6, %s4
  loop: start=0, step=1, limit=4
  $region2: #{_lambda_.2} parent=0 // loop_pre_header
    _
  $region3: #{_lambda_.2} parent=0 // loop_header
    %s9 = sphi 0, %s13
    %p10 = scmp.ge.s32.totalorder %s9, 4
    %s19 = sphi 0, %s21
    %s22 = sphi 0, %s19
    %s23 = sphi 0, %s22
    %s39 = sphi 0, %s23
    %s43 = sphi 0, %s43
    %s45 = sphi 0, %s43
    %s46 = sphi 0, %s45
    %s60 = sphi 0, %s46
    %s64 = sphi 0, %s64
    %s66 = sphi 0, %s64
    %s67 = sphi 0, %s66
    %s81 = sphi 0, %s67
    %s87 = sphi 0, %s89
    %s90 = sphi 0, %s87
    %s91 = sphi 0, %s90
    %s107 = sphi 0, %s91
  $region4: #{_lambda_.2} parent=0 // loop_header_branch
    %12 = sbr.rel (%p10) target = $region8
  $region5: #{_lambda_.2} parent=0 // loop_body
    %s14 = ssub.s32 %s9, 1
    %s15 = ssub.s32 %s9, 2
    %s16 = sadd.s32 %s9, 1
    %s17 = ssub.s32 %s9, %s16
    %p18 = scmp.eq.s32.totalorder %s17, 0
    %s20 = sadd.s32 %s19, 1
    %s21 = scalar_select %p18, %s19, %s20
    %p24 = pneg %p18
    %p25 = scmp.eq.s32.totalorder %s9, 1
    %p26 = por %p24, %p25
    %p27 = scmp.ne.s32.totalorder %s19, %s22
    %p28 = scmp.eq.s32.totalorder %s9, 0
    %p29 = por %p27, %p28
    %p30 = scmp.ne.s32.totalorder %s19, %s22
    %p31 = scmp.eq.s32.totalorder %s14, 1
    %p32 = por %p30, %p31
    %p33 = scmp.ne.s32.totalorder %s22, %s23
    %p34 = scmp.eq.s32.totalorder %s14, 0
    %p35 = por %p33, %p34
    %p36 = scmp.ne.s32.totalorder %s22, %s23
    %p37 = scmp.eq.s32.totalorder %s15, 1
    %p38 = por %p36, %p37
    %p40 = scmp.ne.s32.totalorder %s23, %s39
    %p41 = scmp.eq.s32.totalorder %s15, 0
    %p42 = por %p40, %p41
    %s44 = sadd.s32 %s43, 1
    %p47 = scmp.eq.s32.totalorder %s9, 1
    %p48 = scmp.ne.s32.totalorder %s43, %s45
    %p49 = scmp.eq.s32.totalorder %s9, 0
    %p50 = por %p48, %p49
    %p51 = scmp.ne.s32.totalorder %s43, %s45
    %p52 = scmp.eq.s32.totalorder %s14, 1
    %p53 = por %p51, %p52
    %p54 = scmp.ne.s32.totalorder %s45, %s46
    %p55 = scmp.eq.s32.totalorder %s14, 0
    %p56 = por %p54, %p55
    %p57 = scmp.ne.s32.totalorder %s45, %s46
    %p58 = scmp.eq.s32.totalorder %s15, 1
    %p59 = por %p57, %p58
    %p61 = scmp.ne.s32.totalorder %s46, %s60
    %p62 = scmp.eq.s32.totalorder %s15, 0
    %p63 = por %p61, %p62
    %s65 = sadd.s32 %s64, 1
    %p68 = scmp.eq.s32.totalorder %s9, 1
    %p69 = scmp.ne.s32.totalorder %s64, %s66
    %p70 = scmp.eq.s32.totalorder %s9, 0
    %p71 = por %p69, %p70
    %p72 = scmp.ne.s32.totalorder %s64, %s66
    %p73 = scmp.eq.s32.totalorder %s14, 1
    %p74 = por %p72, %p73
    %p75 = scmp.ne.s32.totalorder %s66, %s67
    %p76 = scmp.eq.s32.totalorder %s14, 0
    %p77 = por %p75, %p76
    %p78 = scmp.ne.s32.totalorder %s66, %s67
    %p79 = scmp.eq.s32.totalorder %s15, 1
    %p80 = por %p78, %p79
    %p82 = scmp.ne.s32.totalorder %s67, %s81
    %p83 = scmp.eq.s32.totalorder %s15, 0
    %p84 = por %p82, %p83
    %s85 = ssub.s32 %s9, %s16
    %p86 = scmp.eq.s32.totalorder %s85, 0
    %s88 = sadd.s32 %s87, 1
    %s89 = scalar_select %p86, %s87, %s88
    %p92 = pneg %p86
    %p93 = scmp.eq.s32.totalorder %s9, 1
    %p94 = por %p92, %p93
    %p95 = scmp.ne.s32.totalorder %s87, %s90
    %p96 = scmp.eq.s32.totalorder %s9, 0
    %p97 = por %p95, %p96
    %p98 = scmp.ne.s32.totalorder %s87, %s90
    %p99 = scmp.eq.s32.totalorder %s14, 1
    %p100 = por %p98, %p99
    %p101 = scmp.ne.s32.totalorder %s90, %s91
    %p102 = scmp.eq.s32.totalorder %s14, 0
    %p103 = por %p101, %p102
    %p104 = scmp.ne.s32.totalorder %s90, %s91
    %p105 = scmp.eq.s32.totalorder %s15, 1
    %p106 = por %p104, %p105
    %p108 = scmp.ne.s32.totalorder %s91, %s107
    %p109 = scmp.eq.s32.totalorder %s15, 0
    %p110 = por %p108, %p109
    %p111 = scmp.le.s32.totalorder 1, %s9
    %p112 = scmp.lt.s32.totalorder %s9, 3
    %p113 = pnand %p111, %p112
    %p114 = pneg %p113
    // Predicated region
    $region9: #{_lambda_.2} parent=5 // pred_check
      _
    $region10: #{_lambda_.2} parent=5 // pred_check_branch
      %116 = sbr.rel (%p113) target = $region12
    $region11: #{_lambda_.2} parent=5 // pred_region
      %s117 = ssub.s32 %s9, 1
      // Predicated region
      $region13: #{_lambda_.2} parent=11 // pred_check
        %p118 = pneg %p56
      $region14: #{_lambda_.2} parent=11 // pred_check_branch
        %120 = sbr.rel (%p118) target = $region16
      $region15: #{_lambda_.2} parent=11 // pred_region
        _
      $region16: #{_lambda_.2} parent=11 // pred_fallthru
        _
      // Predicated region
      $region17: #{_lambda_.2} parent=11 // pred_check
        %p121 = pneg %p77
      $region18: #{_lambda_.2} parent=11 // pred_check_branch
        %123 = sbr.rel (%p121) target = $region20
      $region19: #{_lambda_.2} parent=11 // pred_region
        _
      $region20: #{_lambda_.2} parent=11 // pred_fallthru
        _
    $region12: #{_lambda_.2} parent=5 // pred_fallthru
      _
    %p124 = scmp.lt.s32.totalorder %s9, 2
    // Predicated region
    $region21: #{_lambda_.2} parent=5 // pred_check
      %p125 = pneg %p124
    $region22: #{_lambda_.2} parent=5 // pred_check_branch
      %127 = sbr.rel (%p125) target = $region24
    $region23: #{_lambda_.2} parent=5 // pred_region
      // Predicated region
      $region25: #{_lambda_.2} parent=23 // pred_check
        %p128 = pneg %p29
      $region26: #{_lambda_.2} parent=23 // pred_check_branch
        %130 = sbr.rel (%p128) target = $region28
      $region27: #{_lambda_.2} parent=23 // pred_region
        %s131 = smul.u32 2, %s9
        %p132 = scmp.lt.s32.totalorder %s131, 3
        %s133 = scalar_select %p132, %s131, 3
        %s134 = smul.addr %s133, 20
        %s135 = smul.addr %s134, 8
        %s136 = scalar_lea.vmem %s0, %s135
        %s137 = smul.u32 2, %s9
      $region28: #{_lambda_.2} parent=23 // pred_fallthru
        _
    $region24: #{_lambda_.2} parent=5 // pred_fallthru
      _
    %p138 = scmp.le.s32.totalorder 1, %s9
    %p139 = scmp.lt.s32.totalorder %s9, 3
    %p140 = pnand %p138, %p139
    %p141 = pneg %p140
    // Predicated region
    $region29: #{_lambda_.2} parent=5 // pred_check
      _
    $region30: #{_lambda_.2} parent=5 // pred_check_branch
      %143 = sbr.rel (%p140) target = $region32
    $region31: #{_lambda_.2} parent=5 // pred_region
      %s144 = ssub.s32 %s9, 1
      %s145 = smul.u32 2, %s14
      %p146 = scmp.lt.s32.totalorder %s145, 3
      %s147 = scalar_select %p146, %s145, 3
      %s148 = smul.addr %s147, 20
      %s149 = smul.addr %s148, 8
      %s150 = scalar_lea.vmem %s0, %s149
      %p151 = pneg %p35
      %p152 = pneg %p32
      %p153 = pneg %p56
      %p154 = pneg %p53
      %p155 = pneg %p77
      %p156 = pneg %p74
      %p157 = pneg %p103
      %p158 = pneg %p100
      %s159 = smul.u32 2, %s14
      %p160 = scmp.lt.s32.totalorder %s159, 3
      %s161 = scalar_select %p160, %s159, 3
      %s162 = smul.addr %s161, 8
      %s163 = smul.addr %s162, 8
      %s164 = scalar_lea.vmem %s3, %s163
      %s165 = smul.u32 2, %s14
      %p166 = scmp.lt.s32.totalorder %s165, 3
      %s167 = scalar_select %p166, %s165, 3
      %s168 = smul.addr %s167, 20
      %s169 = smul.addr %s168, 8
      %s170 = scalar_lea.vmem %s0, %s169
      %s171 = smul.u32 2, %s14
      %s172 = smul.u32 2, %s14
      %p173 = scmp.lt.s32.totalorder %s172, 3
      %s174 = scalar_select %p173, %s172, 3
      %s175 = smul.addr %s174, 8
      %s176 = smul.addr %s175, 8
      %s177 = scalar_lea.vmem %s3, %s176
      %s178 = smul.u32 2, %s14
      %v180 = vld [vmem:[%s1] sm:$0xf]
      %v181 = vld [vmem:[%s1 + $0x4] sm:$0xf]
      %v182 = vld [vmem:[%s1 + $0x8] sm:$0xf]
      %v183 = vld [vmem:[%s1 + $0xc] sm:$0xf]
      %v184 = vld [vmem:[%s1 + $0x10] sm:$0xf]
      %v185 = vld [vmem:[%s1 + $0x14] sm:$0xf]
      %v186 = vld [vmem:[%s1 + $0x18] sm:$0xf]
      %v187 = vld [vmem:[%s1 + $0x1c] sm:$0xf]
      %v188 = vld [vmem:[%s1 + $0x20] sm:$0xf]
      %v189 = vld [vmem:[%s1 + $0x24] sm:$0xf]
      %v190 = vld [vmem:[%s1 + $0x28] sm:$0xf]
      %v191 = vld [vmem:[%s1 + $0x2c] sm:$0xf]
      %v192 = vld [vmem:[%s1 + $0x30] sm:$0xf]
      %v193 = vld [vmem:[%s1 + $0x34] sm:$0xf]
      %v194 = vld [vmem:[%s1 + $0x38] sm:$0xf]
      %v195 = vld [vmem:[%s1 + $0x3c] sm:$0xf]
      %v196 = vld [vmem:[%s1 + $0x40] sm:$0xf]
      %v197 = vld [vmem:[%s1 + $0x44] sm:$0xf]
      %v198 = vld [vmem:[%s1 + $0x48] sm:$0xf]
      %v199 = vld [vmem:[%s1 + $0x4c] sm:$0xf]
      %v200 = vld [vmem:[%s1 + $0x50] sm:$0xf]
      %v201 = vld [vmem:[%s1 + $0x54] sm:$0xf]
      %v202 = vld [vmem:[%s1 + $0x58] sm:$0xf]
      %v203 = vld [vmem:[%s1 + $0x5c] sm:$0xf]
      %v204 = vld [vmem:[%s1 + $0x60] sm:$0xf]
      %v205 = vld [vmem:[%s1 + $0x64] sm:$0xf]
      %v206 = vld [vmem:[%s1 + $0x68] sm:$0xf]
      %v207 = vld [vmem:[%s1 + $0x6c] sm:$0xf]
      %v208 = vld [vmem:[%s1 + $0x70] sm:$0xf]
      %v209 = vld [vmem:[%s1 + $0x74] sm:$0xf]
      %v210 = vld [vmem:[%s1 + $0x78] sm:$0xf]
      %v211 = vld [vmem:[%s1 + $0x7c] sm:$0xf]
      %v212 = vld [vmem:[%s1 + $0x80] sm:$0xf]
      %v213 = vld [vmem:[%s1 + $0x84] sm:$0xf]
      %v214 = vld [vmem:[%s1 + $0x88] sm:$0xf]
      %v215 = vld [vmem:[%s1 + $0x8c] sm:$0xf]
      %v216 = vld [vmem:[%s170] sm:$0xff]
      %v217 = vld [vmem:[%s170 + $0x8] sm:$0x3]
      %v218 = vld [vmem:[%s170 + $0x10] sm:$0xff]
      %v219 = vld [vmem:[%s170 + $0x18] sm:$0x3]
      %v220 = vld [vmem:[%s170 + $0x20] sm:$0xff]
      %v221 = vld [vmem:[%s170 + $0x28] sm:$0x3]
      %v222 = vld [vmem:[%s170 + $0x30] sm:$0xff]
      %v223 = vld [vmem:[%s170 + $0x38] sm:$0x3]
      %v224 = vld [vmem:[%s170 + $0x40] sm:$0xff]
      %v225 = vld [vmem:[%s170 + $0x48] sm:$0x3]
      %v226 = vld [vmem:[%s170 + $0x50] sm:$0xff]
      %v227 = vld [vmem:[%s170 + $0x58] sm:$0x3]
      %v228 = vld [vmem:[%s170 + $0x60] sm:$0xff]
      %v229 = vld [vmem:[%s170 + $0x68] sm:$0x3]
      %v230 = vld [vmem:[%s170 + $0x70] sm:$0xff]
      %v231 = vld [vmem:[%s170 + $0x78] sm:$0x3]
      %v232 = vld [vmem:[%s170 + $0x80] sm:$0xff]
      %v233 = vld [vmem:[%s170 + $0x88] sm:$0x3]
      %v234 = vld [vmem:[%s170 + $0x90] sm:$0xff]
      %v235 = vld [vmem:[%s170 + $0x98] sm:$0x3]
      %vm252 = vcmask 1046528
      %v253 = vrot.slane %v216, 1
      %v254 = vrot.slane %v217, 1
      %v255 = vsel %vm252, %v253, %v254
      %v256 = vrot.slane %v218, 1
      %v257 = vrot.slane %v219, 1
      %v258 = vsel %vm252, %v256, %v257
      %v259 = vrot.slane %v220, 1
      %v260 = vrot.slane %v221, 1
      %v261 = vsel %vm252, %v259, %v260
      %v262 = vrot.slane %v222, 1
      %v263 = vrot.slane %v223, 1
      %v264 = vsel %vm252, %v262, %v263
      %v265 = vrot.slane %v224, 1
      %v266 = vrot.slane %v225, 1
      %v267 = vsel %vm252, %v265, %v266
      %v268 = vrot.slane %v226, 1
      %v269 = vrot.slane %v227, 1
      %v270 = vsel %vm252, %v268, %v269
      %v271 = vrot.slane %v228, 1
      %v272 = vrot.slane %v229, 1
      %v273 = vsel %vm252, %v271, %v272
      %v274 = vrot.slane %v230, 1
      %v275 = vrot.slane %v231, 1
      %v276 = vsel %vm252, %v274, %v275
      %vm277 = vcmask 1045504
      %v278 = vrot.slane %v216, 2
      %v279 = vrot.slane %v217, 2
      %v280 = vsel %vm277, %v278, %v279
      %v281 = vrot.slane %v218, 2
      %v282 = vrot.slane %v219, 2
      %v283 = vsel %vm277, %v281, %v282
      %v284 = vrot.slane %v220, 2
      %v285 = vrot.slane %v221, 2
      %v286 = vsel %vm277, %v284, %v285
      %v287 = vrot.slane %v222, 2
      %v288 = vrot.slane %v223, 2
      %v289 = vsel %vm277, %v287, %v288
      %v290 = vrot.slane %v224, 2
      %v291 = vrot.slane %v225, 2
      %v292 = vsel %vm277, %v290, %v291
      %v293 = vrot.slane %v226, 2
      %v294 = vrot.slane %v227, 2
      %v295 = vsel %vm277, %v293, %v294
      %v296 = vrot.slane %v228, 2
      %v297 = vrot.slane %v229, 2
      %v298 = vsel %vm277, %v296, %v297
      %v299 = vrot.slane %v230, 2
      %v300 = vrot.slane %v231, 2
      %v301 = vsel %vm277, %v299, %v300
      %v304 = vrot.slane %v232, 1
      %v305 = vrot.slane %v233, 1
      %v306 = vsel %vm252, %v304, %v305
      %v315 = vrot.slane %v232, 2
      %v316 = vrot.slane %v233, 2
      %v317 = vsel %vm277, %v315, %v316
      %v320 = vrot.slane %v234, 1
      %v321 = vrot.slane %v235, 1
      %v322 = vsel %vm252, %v320, %v321
      %v323 = vrot.slane %v234, 2
      %v324 = vrot.slane %v235, 2
      %v325 = vsel %vm277, %v323, %v324
      %334 = vrot.lane.b32.xlu0 %v255, 32
      %v335 = vpop.permute.xlu0 %334
      %336 = vrot.lane.b32.xlu0 %v258, 32
      %v337 = vpop.permute.xlu0 %336
      %338 = vrot.lane.b32.xlu0 %v261, 32
      %v339 = vpop.permute.xlu0 %338
      %340 = vrot.lane.b32.xlu0 %v264, 32
      %v341 = vpop.permute.xlu0 %340
      %342 = vrot.lane.b32.xlu0 %v267, 32
      %v343 = vpop.permute.xlu0 %342
      %344 = vrot.lane.b32.xlu0 %v270, 32
      %v345 = vpop.permute.xlu0 %344
      %346 = vrot.lane.b32.xlu0 %v273, 32
      %v347 = vpop.permute.xlu0 %346
      %348 = vrot.lane.b32.xlu0 %v276, 32
      %v349 = vpop.permute.xlu0 %348
      %358 = vrot.lane.b32.xlu0 %v280, 64
      %v359 = vpop.permute.xlu0 %358
      %360 = vrot.lane.b32.xlu0 %v283, 64
      %v361 = vpop.permute.xlu0 %360
      %362 = vrot.lane.b32.xlu0 %v286, 64
      %v363 = vpop.permute.xlu0 %362
      %364 = vrot.lane.b32.xlu0 %v289, 64
      %v365 = vpop.permute.xlu0 %364
      %366 = vrot.lane.b32.xlu0 %v292, 64
      %v367 = vpop.permute.xlu0 %366
      %368 = vrot.lane.b32.xlu0 %v295, 64
      %v369 = vpop.permute.xlu0 %368
      %370 = vrot.lane.b32.xlu0 %v298, 64
      %v371 = vpop.permute.xlu0 %370
      %372 = vrot.lane.b32.xlu0 %v301, 64
      %v373 = vpop.permute.xlu0 %372
      %382 = vrot.lane.b32.xlu0 %v218, 96
      %v383 = vpop.permute.xlu0 %382
      %384 = vrot.lane.b32.xlu0 %v220, 96
      %v385 = vpop.permute.xlu0 %384
      %386 = vrot.lane.b32.xlu0 %v222, 96
      %v387 = vpop.permute.xlu0 %386
      %388 = vrot.lane.b32.xlu0 %v224, 96
      %v389 = vpop.permute.xlu0 %388
      %390 = vrot.lane.b32.xlu0 %v226, 96
      %v391 = vpop.permute.xlu0 %390
      %392 = vrot.lane.b32.xlu0 %v228, 96
      %v393 = vpop.permute.xlu0 %392
      %394 = vrot.lane.b32.xlu0 %v230, 96
      %v395 = vpop.permute.xlu0 %394
      %396 = vrot.lane.b32.xlu0 %v232, 96
      %v397 = vpop.permute.xlu0 %396
      %406 = vrot.lane.b32.xlu0 %v283, 32
      %v407 = vpop.permute.xlu0 %406
      %408 = vrot.lane.b32.xlu0 %v286, 32
      %v409 = vpop.permute.xlu0 %408
      %410 = vrot.lane.b32.xlu0 %v289, 32
      %v411 = vpop.permute.xlu0 %410
      %412 = vrot.lane.b32.xlu0 %v292, 32
      %v413 = vpop.permute.xlu0 %412
      %414 = vrot.lane.b32.xlu0 %v295, 32
      %v415 = vpop.permute.xlu0 %414
      %416 = vrot.lane.b32.xlu0 %v298, 32
      %v417 = vpop.permute.xlu0 %416
      %418 = vrot.lane.b32.xlu0 %v301, 32
      %v419 = vpop.permute.xlu0 %418
      %420 = vrot.lane.b32.xlu0 %v317, 32
      %v421 = vpop.permute.xlu0 %420
      %430 = vrot.lane.b32.xlu0 %v220, 64
      %v431 = vpop.permute.xlu0 %430
      %432 = vrot.lane.b32.xlu0 %v222, 64
      %v433 = vpop.permute.xlu0 %432
      %434 = vrot.lane.b32.xlu0 %v224, 64
      %v435 = vpop.permute.xlu0 %434
      %436 = vrot.lane.b32.xlu0 %v226, 64
      %v437 = vpop.permute.xlu0 %436
      %438 = vrot.lane.b32.xlu0 %v228, 64
      %v439 = vpop.permute.xlu0 %438
      %440 = vrot.lane.b32.xlu0 %v230, 64
      %v441 = vpop.permute.xlu0 %440
      %442 = vrot.lane.b32.xlu0 %v232, 64
      %v443 = vpop.permute.xlu0 %442
      %444 = vrot.lane.b32.xlu0 %v234, 64
      %v445 = vpop.permute.xlu0 %444
      %454 = vrot.lane.b32.xlu0 %v261, 96
      %v455 = vpop.permute.xlu0 %454
      %456 = vrot.lane.b32.xlu0 %v264, 96
      %v457 = vpop.permute.xlu0 %456
      %458 = vrot.lane.b32.xlu0 %v267, 96
      %v459 = vpop.permute.xlu0 %458
      %460 = vrot.lane.b32.xlu0 %v270, 96
      %v461 = vpop.permute.xlu0 %460
      %462 = vrot.lane.b32.xlu0 %v273, 96
      %v463 = vpop.permute.xlu0 %462
      %464 = vrot.lane.b32.xlu0 %v276, 96
      %v465 = vpop.permute.xlu0 %464
      %466 = vrot.lane.b32.xlu0 %v306, 96
      %v467 = vpop.permute.xlu0 %466
      %468 = vrot.lane.b32.xlu0 %v322, 96
      %v469 = vpop.permute.xlu0 %468
      %vm478 = vcmask 261120
      %v479 = vsel %vm478, %v216, %v335
      %v480 = vsel %vm478, %v218, %v337
      %v481 = vsel %vm478, %v220, %v339
      %v482 = vsel %vm478, %v222, %v341
      %v483 = vsel %vm478, %v224, %v343
      %v484 = vsel %vm478, %v226, %v345
      %v485 = vsel %vm478, %v228, %v347
      %v486 = vsel %vm478, %v230, %v349
      %vm487 = vcmask 523264
      %v488 = vsel %vm487, %v479, %v359
      %v489 = vsel %vm487, %v480, %v361
      %v490 = vsel %vm487, %v481, %v363
      %v491 = vsel %vm487, %v482, %v365
      %v492 = vsel %vm487, %v483, %v367
      %v493 = vsel %vm487, %v484, %v369
      %v494 = vsel %vm487, %v485, %v371
      %v495 = vsel %vm487, %v486, %v373
      %vm496 = vcmask 785408
      %v497 = vsel %vm496, %v488, %v383
      %v498 = vsel %vm496, %v489, %v385
      %v499 = vsel %vm496, %v490, %v387
      %v500 = vsel %vm496, %v491, %v389
      %v501 = vsel %vm496, %v492, %v391
      %v502 = vsel %vm496, %v493, %v393
      %v503 = vsel %vm496, %v494, %v395
      %v504 = vsel %vm496, %v495, %v397
      %v505 = vsel %vm478, %v258, %v407
      %v506 = vsel %vm478, %v261, %v409
      %v507 = vsel %vm478, %v264, %v411
      %v508 = vsel %vm478, %v267, %v413
      %v509 = vsel %vm478, %v270, %v415
      %v510 = vsel %vm478, %v273, %v417
      %v511 = vsel %vm478, %v276, %v419
      %v512 = vsel %vm478, %v306, %v421
      %v513 = vsel %vm487, %v505, %v431
      %v514 = vsel %vm487, %v506, %v433
      %v515 = vsel %vm487, %v507, %v435
      %v516 = vsel %vm487, %v508, %v437
      %v517 = vsel %vm487, %v509, %v439
      %v518 = vsel %vm487, %v510, %v441
      %v519 = vsel %vm487, %v511, %v443
      %v520 = vsel %vm487, %v512, %v445
      %v521 = vsel %vm496, %v513, %v455
      %v522 = vsel %vm496, %v514, %v457
      %v523 = vsel %vm496, %v515, %v459
      %v524 = vsel %vm496, %v516, %v461
      %v525 = vsel %vm496, %v517, %v463
      %v526 = vsel %vm496, %v518, %v465
      %v527 = vsel %vm496, %v519, %v467
      %v528 = vsel %vm496, %v520, %v469
      %s529 = scalar_lea.vmem %s170, 160
      %v530 = vld [vmem:[%s529] sm:$0xff]
      %v531 = vld [vmem:[%s529 + $0x8] sm:$0x3]
      %v532 = vld [vmem:[%s529 + $0x10] sm:$0xff]
      %v533 = vld [vmem:[%s529 + $0x18] sm:$0x3]
      %v534 = vld [vmem:[%s529 + $0x20] sm:$0xff]
      %v535 = vld [vmem:[%s529 + $0x28] sm:$0x3]
      %v536 = vld [vmem:[%s529 + $0x30] sm:$0xff]
      %v537 = vld [vmem:[%s529 + $0x38] sm:$0x3]
      %v538 = vld [vmem:[%s529 + $0x40] sm:$0xff]
      %v539 = vld [vmem:[%s529 + $0x48] sm:$0x3]
      %v540 = vld [vmem:[%s529 + $0x50] sm:$0xff]
      %v541 = vld [vmem:[%s529 + $0x58] sm:$0x3]
      %v542 = vld [vmem:[%s529 + $0x60] sm:$0xff]
      %v543 = vld [vmem:[%s529 + $0x68] sm:$0x3]
      %v544 = vld [vmem:[%s529 + $0x70] sm:$0xff]
      %v545 = vld [vmem:[%s529 + $0x78] sm:$0x3]
      %v546 = vld [vmem:[%s529 + $0x80] sm:$0xff]
      %v547 = vld [vmem:[%s529 + $0x88] sm:$0x3]
      %v548 = vld [vmem:[%s529 + $0x90] sm:$0xff]
      %v549 = vld [vmem:[%s529 + $0x98] sm:$0x3]
      %v566 = vrot.slane %v530, 1
      %v567 = vrot.slane %v531, 1
      %v568 = vsel %vm252, %v566, %v567
      %v569 = vrot.slane %v532, 1
      %v570 = vrot.slane %v533, 1
      %v571 = vsel %vm252, %v569, %v570
      %v572 = vrot.slane %v534, 1
      %v573 = vrot.slane %v535, 1
      %v574 = vsel %vm252, %v572, %v573
      %v575 = vrot.slane %v536, 1
      %v576 = vrot.slane %v537, 1
      %v577 = vsel %vm252, %v575, %v576
      %v578 = vrot.slane %v538, 1
      %v579 = vrot.slane %v539, 1
      %v580 = vsel %vm252, %v578, %v579
      %v581 = vrot.slane %v540, 1
      %v582 = vrot.slane %v541, 1
      %v583 = vsel %vm252, %v581, %v582
      %v584 = vrot.slane %v542, 1
      %v585 = vrot.slane %v543, 1
      %v586 = vsel %vm252, %v584, %v585
      %v587 = vrot.slane %v544, 1
      %v588 = vrot.slane %v545, 1
      %v589 = vsel %vm252, %v587, %v588
      %v590 = vrot.slane %v530, 2
      %v591 = vrot.slane %v531, 2
      %v592 = vsel %vm277, %v590, %v591
      %v593 = vrot.slane %v532, 2
      %v594 = vrot.slane %v533, 2
      %v595 = vsel %vm277, %v593, %v594
      %v596 = vrot.slane %v534, 2
      %v597 = vrot.slane %v535, 2
      %v598 = vsel %vm277, %v596, %v597
      %v599 = vrot.slane %v536, 2
      %v600 = vrot.slane %v537, 2
      %v601 = vsel %vm277, %v599, %v600
      %v602 = vrot.slane %v538, 2
      %v603 = vrot.slane %v539, 2
      %v604 = vsel %vm277, %v602, %v603
      %v605 = vrot.slane %v540, 2
      %v606 = vrot.slane %v541, 2
      %v607 = vsel %vm277, %v605, %v606
      %v608 = vrot.slane %v542, 2
      %v609 = vrot.slane %v543, 2
      %v610 = vsel %vm277, %v608, %v609
      %v611 = vrot.slane %v544, 2
      %v612 = vrot.slane %v545, 2
      %v613 = vsel %vm277, %v611, %v612
      %v616 = vrot.slane %v546, 1
      %v617 = vrot.slane %v547, 1
      %v618 = vsel %vm252, %v616, %v617
      %v627 = vrot.slane %v546, 2
      %v628 = vrot.slane %v547, 2
      %v629 = vsel %vm277, %v627, %v628
      %v632 = vrot.slane %v548, 1
      %v633 = vrot.slane %v549, 1
      %v634 = vsel %vm252, %v632, %v633
      %v635 = vrot.slane %v548, 2
      %v636 = vrot.slane %v549, 2
      %v637 = vsel %vm277, %v635, %v636
      %646 = vrot.lane.b32.xlu0 %v568, 32
      %v647 = vpop.permute.xlu0 %646
      %648 = vrot.lane.b32.xlu0 %v571, 32
      %v649 = vpop.permute.xlu0 %648
      %650 = vrot.lane.b32.xlu0 %v574, 32
      %v651 = vpop.permute.xlu0 %650
      %652 = vrot.lane.b32.xlu0 %v577, 32
      %v653 = vpop.permute.xlu0 %652
      %654 = vrot.lane.b32.xlu0 %v580, 32
      %v655 = vpop.permute.xlu0 %654
      %656 = vrot.lane.b32.xlu0 %v583, 32
      %v657 = vpop.permute.xlu0 %656
      %658 = vrot.lane.b32.xlu0 %v586, 32
      %v659 = vpop.permute.xlu0 %658
      %660 = vrot.lane.b32.xlu0 %v589, 32
      %v661 = vpop.permute.xlu0 %660
      %670 = vrot.lane.b32.xlu0 %v592, 64
      %v671 = vpop.permute.xlu0 %670
      %672 = vrot.lane.b32.xlu0 %v595, 64
      %v673 = vpop.permute.xlu0 %672
      %674 = vrot.lane.b32.xlu0 %v598, 64
      %v675 = vpop.permute.xlu0 %674
      %676 = vrot.lane.b32.xlu0 %v601, 64
      %v677 = vpop.permute.xlu0 %676
      %678 = vrot.lane.b32.xlu0 %v604, 64
      %v679 = vpop.permute.xlu0 %678
      %680 = vrot.lane.b32.xlu0 %v607, 64
      %v681 = vpop.permute.xlu0 %680
      %682 = vrot.lane.b32.xlu0 %v610, 64
      %v683 = vpop.permute.xlu0 %682
      %684 = vrot.lane.b32.xlu0 %v613, 64
      %v685 = vpop.permute.xlu0 %684
      %694 = vrot.lane.b32.xlu0 %v532, 96
      %v695 = vpop.permute.xlu0 %694
      %696 = vrot.lane.b32.xlu0 %v534, 96
      %v697 = vpop.permute.xlu0 %696
      %698 = vrot.lane.b32.xlu0 %v536, 96
      %v699 = vpop.permute.xlu0 %698
      %700 = vrot.lane.b32.xlu0 %v538, 96
      %v701 = vpop.permute.xlu0 %700
      %702 = vrot.lane.b32.xlu0 %v540, 96
      %v703 = vpop.permute.xlu0 %702
      %704 = vrot.lane.b32.xlu0 %v542, 96
      %v705 = vpop.permute.xlu0 %704
      %706 = vrot.lane.b32.xlu0 %v544, 96
      %v707 = vpop.permute.xlu0 %706
      %708 = vrot.lane.b32.xlu0 %v546, 96
      %v709 = vpop.permute.xlu0 %708
      %718 = vrot.lane.b32.xlu0 %v595, 32
      %v719 = vpop.permute.xlu0 %718
      %720 = vrot.lane.b32.xlu0 %v598, 32
      %v721 = vpop.permute.xlu0 %720
      %722 = vrot.lane.b32.xlu0 %v601, 32
      %v723 = vpop.permute.xlu0 %722
      %724 = vrot.lane.b32.xlu0 %v604, 32
      %v725 = vpop.permute.xlu0 %724
      %726 = vrot.lane.b32.xlu0 %v607, 32
      %v727 = vpop.permute.xlu0 %726
      %728 = vrot.lane.b32.xlu0 %v610, 32
      %v729 = vpop.permute.xlu0 %728
      %730 = vrot.lane.b32.xlu0 %v613, 32
      %v731 = vpop.permute.xlu0 %730
      %732 = vrot.lane.b32.xlu0 %v629, 32
      %v733 = vpop.permute.xlu0 %732
      %742 = vrot.lane.b32.xlu0 %v534, 64
      %v743 = vpop.permute.xlu0 %742
      %744 = vrot.lane.b32.xlu0 %v536, 64
      %v745 = vpop.permute.xlu0 %744
      %746 = vrot.lane.b32.xlu0 %v538, 64
      %v747 = vpop.permute.xlu0 %746
      %748 = vrot.lane.b32.xlu0 %v540, 64
      %v749 = vpop.permute.xlu0 %748
      %750 = vrot.lane.b32.xlu0 %v542, 64
      %v751 = vpop.permute.xlu0 %750
      %752 = vrot.lane.b32.xlu0 %v544, 64
      %v753 = vpop.permute.xlu0 %752
      %754 = vrot.lane.b32.xlu0 %v546, 64
      %v755 = vpop.permute.xlu0 %754
      %756 = vrot.lane.b32.xlu0 %v548, 64
      %v757 = vpop.permute.xlu0 %756
      %766 = vrot.lane.b32.xlu0 %v574, 96
      %v767 = vpop.permute.xlu0 %766
      %768 = vrot.lane.b32.xlu0 %v577, 96
      %v769 = vpop.permute.xlu0 %768
      %770 = vrot.lane.b32.xlu0 %v580, 96
      %v771 = vpop.permute.xlu0 %770
      %772 = vrot.lane.b32.xlu0 %v583, 96
      %v773 = vpop.permute.xlu0 %772
      %774 = vrot.lane.b32.xlu0 %v586, 96
      %v775 = vpop.permute.xlu0 %774
      %776 = vrot.lane.b32.xlu0 %v589, 96
      %v777 = vpop.permute.xlu0 %776
      %778 = vrot.lane.b32.xlu0 %v618, 96
      %v779 = vpop.permute.xlu0 %778
      %780 = vrot.lane.b32.xlu0 %v634, 96
      %v781 = vpop.permute.xlu0 %780
      %v790 = vsel %vm478, %v530, %v647
      %v791 = vsel %vm478, %v532, %v649
      %v792 = vsel %vm478, %v534, %v651
      %v793 = vsel %vm478, %v536, %v653
      %v794 = vsel %vm478, %v538, %v655
      %v795 = vsel %vm478, %v540, %v657
      %v796 = vsel %vm478, %v542, %v659
      %v797 = vsel %vm478, %v544, %v661
      %v798 = vsel %vm487, %v790, %v671
      %v799 = vsel %vm487, %v791, %v673
      %v800 = vsel %vm487, %v792, %v675
      %v801 = vsel %vm487, %v793, %v677
      %v802 = vsel %vm487, %v794, %v679
      %v803 = vsel %vm487, %v795, %v681
      %v804 = vsel %vm487, %v796, %v683
      %v805 = vsel %vm487, %v797, %v685
      %v806 = vsel %vm496, %v798, %v695
      %v807 = vsel %vm496, %v799, %v697
      %v808 = vsel %vm496, %v800, %v699
      %v809 = vsel %vm496, %v801, %v701
      %v810 = vsel %vm496, %v802, %v703
      %v811 = vsel %vm496, %v803, %v705
      %v812 = vsel %vm496, %v804, %v707
      %v813 = vsel %vm496, %v805, %v709
      %v814 = vsel %vm478, %v571, %v719
      %v815 = vsel %vm478, %v574, %v721
      %v816 = vsel %vm478, %v577, %v723
      %v817 = vsel %vm478, %v580, %v725
      %v818 = vsel %vm478, %v583, %v727
      %v819 = vsel %vm478, %v586, %v729
      %v820 = vsel %vm478, %v589, %v731
      %v821 = vsel %vm478, %v618, %v733
      %v822 = vsel %vm487, %v814, %v743
      %v823 = vsel %vm487, %v815, %v745
      %v824 = vsel %vm487, %v816, %v747
      %v825 = vsel %vm487, %v817, %v749
      %v826 = vsel %vm487, %v818, %v751
      %v827 = vsel %vm487, %v819, %v753
      %v828 = vsel %vm487, %v820, %v755
      %v829 = vsel %vm487, %v821, %v757
      %v830 = vsel %vm496, %v822, %v767
      %v831 = vsel %vm496, %v823, %v769
      %v832 = vsel %vm496, %v824, %v771
      %v833 = vsel %vm496, %v825, %v773
      %v834 = vsel %vm496, %v826, %v775
      %v835 = vsel %vm496, %v827, %v777
      %v836 = vsel %vm496, %v828, %v779
      %v837 = vsel %vm496, %v829, %v781
      %v838 = vpack.c.bf16 %v498, %v497
      %v839 = vpack.c.bf16 %v522, %v521
      %v840 = vpack.c.bf16 %v289, %v286
      %v841 = vpack.c.bf16 %v500, %v499
      %v842 = vpack.c.bf16 %v524, %v523
      %v843 = vpack.c.bf16 %v295, %v292
      %v844 = vpack.c.bf16 %v502, %v501
      %v845 = vpack.c.bf16 %v526, %v525
      %v846 = vpack.c.bf16 %v301, %v298
      %v847 = vpack.c.bf16 %v504, %v503
      %v848 = vpack.c.bf16 %v528, %v527
      %v849 = vpack.c.bf16 %v325, %v317
      %v850 = vpack.c.bf16 %v807, %v806
      %v851 = vpack.c.bf16 %v831, %v830
      %v852 = vpack.c.bf16 %v601, %v598
      %v853 = vpack.c.bf16 %v809, %v808
      %v854 = vpack.c.bf16 %v833, %v832
      %v855 = vpack.c.bf16 %v607, %v604
      %v856 = vpack.c.bf16 %v811, %v810
      %v857 = vpack.c.bf16 %v835, %v834
      %v858 = vpack.c.bf16 %v613, %v610
      %v859 = vpack.c.bf16 %v813, %v812
      %v860 = vpack.c.bf16 %v837, %v836
      %v861 = vpack.c.bf16 %v637, %v629
      %v862 = vld [vmem:[%s2] sm:$0x1]
      %v864 = vlaneseq
      %v865 = vshrl.u32 %v864, 7
      %v866 = vsub.s32 0, %v865
      %v867 = vrot.slane %v862, %v866
      %v905 = vunpack.c.l.b16 %v180
      %v906 = vunpack.c.l.b16 %v181
      %v907 = vunpack.c.l.b16 %v182
      %v908 = vunpack.c.l.b16 %v183
      %v909 = vunpack.c.l.b16 %v184
      %v910 = vunpack.c.l.b16 %v185
      %v911 = vunpack.c.l.b16 %v186
      %v912 = vunpack.c.l.b16 %v187
      %v913 = vunpack.c.l.b16 %v188
      %v914 = vunpack.c.l.b16 %v189
      %v915 = vunpack.c.l.b16 %v190
      %v916 = vunpack.c.l.b16 %v191
      %v917 = vunpack.c.l.b16 %v192
      %v918 = vunpack.c.l.b16 %v193
      %v919 = vunpack.c.l.b16 %v194
      %v920 = vunpack.c.l.b16 %v195
      %v921 = vunpack.c.l.b16 %v196
      %v922 = vunpack.c.l.b16 %v197
      %v923 = vunpack.c.l.b16 %v198
      %v924 = vunpack.c.l.b16 %v199
      %v925 = vunpack.c.l.b16 %v200
      %v926 = vunpack.c.l.b16 %v201
      %v927 = vunpack.c.l.b16 %v202
      %v928 = vunpack.c.l.b16 %v203
      %v929 = vunpack.c.l.b16 %v204
      %v930 = vunpack.c.l.b16 %v205
      %v931 = vunpack.c.l.b16 %v206
      %v932 = vunpack.c.l.b16 %v207
      %v933 = vunpack.c.l.b16 %v208
      %v934 = vunpack.c.l.b16 %v209
      %v935 = vunpack.c.l.b16 %v210
      %v936 = vunpack.c.l.b16 %v211
      %v937 = vunpack.c.l.b16 %v212
      %v938 = vunpack.c.l.b16 %v213
      %v939 = vunpack.c.l.b16 %v214
      %v940 = vunpack.c.l.b16 %v215
      %v941 = vpack.c.b16 %v906, %v905
      %v942 = vpack.c.b16 %v908, %v907
      %v943 = vpack.c.b16 %v910, %v909
      %v944 = vpack.c.b16 %v912, %v911
      %v945 = vpack.c.b16 %v914, %v913
      %v946 = vpack.c.b16 %v916, %v915
      %v947 = vpack.c.b16 %v918, %v917
      %v948 = vpack.c.b16 %v920, %v919
      %v949 = vpack.c.b16 %v922, %v921
      %v950 = vpack.c.b16 %v924, %v923
      %v951 = vpack.c.b16 %v926, %v925
      %v952 = vpack.c.b16 %v928, %v927
      %v953 = vpack.c.b16 %v930, %v929
      %v954 = vpack.c.b16 %v932, %v931
      %v955 = vpack.c.b16 %v934, %v933
      %v956 = vpack.c.b16 %v936, %v935
      %v957 = vpack.c.b16 %v938, %v937
      %v958 = vpack.c.b16 %v940, %v939
      %v978 = vsel %vm478, %v840, 0
      %v981 = vsel %vm478, %v843, 0
      %v984 = vsel %vm478, %v846, 0
      %v987 = vsel %vm478, %v849, 0
      %v990 = vsel %vm478, %v852, 0
      %v993 = vsel %vm478, %v855, 0
      %v996 = vsel %vm478, %v858, 0
      %v999 = vsel %vm478, %v861, 0
      %1001 = vmatprep.subr.bf16.mxu0 0
      %1002 = vmatpush1.bf16.msra.mxu0 %v941
      %1003 = vmatprep.subr.bf16.mxu0 0
      %1004 = vmatpush1.bf16.msra.mxu0 %v942
      %1005 = vmatprep.subr.bf16.mxu0 0
      %1006 = vmatpush1.bf16.msra.mxu0 %v943
      %1007 = vmatprep.subr.bf16.mxu0 0
      %1008 = vmatpush1.bf16.msra.mxu0 %v944
      %1009 = vmatprep.subr.bf16.mxu0 0
      %1010 = vmatpush1.bf16.msra.mxu0 %v945
      %1011 = vmatprep.subr.bf16.mxu0 0
      %1012 = vmatpush1.bf16.msra.mxu0 %v946
      %1013 = vmatprep.subr.bf16.mxu0 0
      %1014 = vmatpush1.bf16.msra.mxu0 %v947
      %1015 = vmatprep.subr.bf16.mxu0 0
      %1016 = vmatpush1.bf16.msra.mxu0 %v948
      %1017 = vmatprep.subr.bf16.mxu0 0
      %1018 = vmatpush1.bf16.msra.mxu0 %v949
      %1019 = vmatprep.subr.bf16.mxu0 0
      %1020 = vmatpush1.bf16.msra.mxu0 %v950
      %1021 = vmatprep.subr.bf16.mxu0 0
      %1022 = vmatpush1.bf16.msra.mxu0 %v951
      %1023 = vmatprep.subr.bf16.mxu0 0
      %1024 = vmatpush1.bf16.msra.mxu0 %v952
      %1025 = vmatprep.subr.bf16.mxu0 0
      %1026 = vmatpush1.bf16.msra.mxu0 %v953
      %1027 = vmatprep.subr.bf16.mxu0 0
      %1028 = vmatpush1.bf16.msra.mxu0 %v954
      %1029 = vmatprep.subr.bf16.mxu0 0
      %1030 = vmatpush1.bf16.msra.mxu0 %v955
      %1031 = vmatprep.subr.bf16.mxu0 0
      %1032 = vmatpush1.bf16.msra.mxu0 %v956
      %1033 = vmatprep.mubr.bf16.mxu0 %v839
      %1034 = vmatmul.mubr.bf16.gmra.mrb[0].mxu0 %v838
      %v1035 = vpop.f32.mrb[0].mxu0
      %v1036 = vadd.f32 %v867, %v1035
      %v1037 = vpop.f32.mrb[0].mxu0
      %v1038 = vpop.f32.mrb[0].mxu0
      %v1039 = vadd.f32 %v867, %v1038
      %v1040 = vpop.f32.mrb[0].mxu0
      %1041 = vmatprep.mubr.bf16.mxu0 %v842
      %1042 = vmatmul.mubr.bf16.gmra.mrb[0].mxu0 %v841
      %v1043 = vpop.f32.mrb[0].mxu0
      %v1044 = vadd.f32 %v867, %v1043
      %v1045 = vpop.f32.mrb[0].mxu0
      %v1046 = vpop.f32.mrb[0].mxu0
      %v1047 = vadd.f32 %v867, %v1046
      %v1048 = vpop.f32.mrb[0].mxu0
      %1049 = vmatprep.mubr.bf16.mxu0 %v845
      %1050 = vmatmul.mubr.bf16.gmra.mrb[0].mxu0 %v844
      %v1051 = vpop.f32.mrb[0].mxu0
      %v1052 = vadd.f32 %v867, %v1051
      %v1053 = vpop.f32.mrb[0].mxu0
      %v1054 = vpop.f32.mrb[0].mxu0
      %v1055 = vadd.f32 %v867, %v1054
      %v1056 = vpop.f32.mrb[0].mxu0
      %1057 = vmatprep.mubr.bf16.mxu0 %v848
      %1058 = vmatmul.mubr.bf16.gmra.mrb[0].mxu0 %v847
      %v1059 = vpop.f32.mrb[0].mxu0
      %v1060 = vadd.f32 %v867, %v1059
      %v1061 = vpop.f32.mrb[0].mxu0
      %v1062 = vpop.f32.mrb[0].mxu0
      %v1063 = vadd.f32 %v867, %v1062
      %v1064 = vpop.f32.mrb[0].mxu0
      %1065 = vmatprep.mubr.bf16.mxu0 %v851
      %1066 = vmatmul.mubr.bf16.gmra.mrb[0].mxu0 %v850
      %v1067 = vpop.f32.mrb[0].mxu0
      %v1068 = vadd.f32 %v867, %v1067
      %v1069 = vpop.f32.mrb[0].mxu0
      %v1070 = vpop.f32.mrb[0].mxu0
      %v1071 = vadd.f32 %v867, %v1070
      %v1072 = vpop.f32.mrb[0].mxu0
      %1073 = vmatprep.mubr.bf16.mxu0 %v854
      %1074 = vmatmul.mubr.bf16.gmra.mrb[0].mxu0 %v853
      %v1075 = vpop.f32.mrb[0].mxu0
      %v1076 = vadd.f32 %v867, %v1075
      %v1077 = vpop.f32.mrb[0].mxu0
      %v1078 = vpop.f32.mrb[0].mxu0
      %v1079 = vadd.f32 %v867, %v1078
      %v1080 = vpop.f32.mrb[0].mxu0
      %1081 = vmatprep.mubr.bf16.mxu0 %v857
      %1082 = vmatmul.mubr.bf16.gmra.mrb[0].mxu0 %v856
      %v1083 = vpop.f32.mrb[0].mxu0
      %v1084 = vadd.f32 %v867, %v1083
      %v1085 = vpop.f32.mrb[0].mxu0
      %v1086 = vpop.f32.mrb[0].mxu0
      %v1087 = vadd.f32 %v867, %v1086
      %v1088 = vpop.f32.mrb[0].mxu0
      %1089 = vmatprep.mubr.bf16.mxu0 %v860
      %1090 = vmatmul.mubr.bf16.gmra.mrb[0].mxu0 %v859
      %v1091 = vpop.f32.mrb[0].mxu0
      %v1092 = vadd.f32 %v867, %v1091
      %v1093 = vpop.f32.mrb[0].mxu0
      %v1094 = vpop.f32.mrb[0].mxu0
      %v1095 = vadd.f32 %v867, %v1094
      %v1096 = vpop.f32.mrb[0].mxu0
      %1097 = vdwg.mxu0
      %1098 = vmatprep.subr.bf16.mxu0 0
      %1099 = vmatpush1.bf16.msra.mxu0 %v957
      %1100 = vmatprep.subr.bf16.mxu0 0
      %1101 = vmatpush1.bf16.msra.mxu0 %v958
      %1102 = vmatprep.subr.bf16.mxu0 0
      %1103 = vmatpush1.bf16.msra.mxu0 0
      %1104 = vmatprep.subr.bf16.mxu0 0
      %1105 = vmatpush1.bf16.msra.mxu0 0
      %1106 = vmatprep.subr.bf16.mxu0 0
      %1107 = vmatpush1.bf16.msra.mxu0 0
      %1108 = vmatprep.subr.bf16.mxu0 0
      %1109 = vmatpush1.bf16.msra.mxu0 0
      %1110 = vmatprep.subr.bf16.mxu0 0
      %1111 = vmatpush1.bf16.msra.mxu0 0
      %1112 = vmatprep.subr.bf16.mxu0 0
      %1113 = vmatpush1.bf16.msra.mxu0 0
      %1114 = vmatprep.subr.bf16.mxu0 0
      %1115 = vmatpush1.bf16.msra.mxu0 0
      %1116 = vmatprep.subr.bf16.mxu0 0
      %1117 = vmatpush1.bf16.msra.mxu0 0
      %1118 = vmatprep.subr.bf16.mxu0 0
      %1119 = vmatpush1.bf16.msra.mxu0 0
      %1120 = vmatprep.subr.bf16.mxu0 0
      %1121 = vmatpush1.bf16.msra.mxu0 0
      %1122 = vmatprep.subr.bf16.mxu0 0
      %1123 = vmatpush1.bf16.msra.mxu0 0
      %1124 = vmatprep.subr.bf16.mxu0 0
      %1125 = vmatpush1.bf16.msra.mxu0 0
      %1126 = vmatprep.subr.bf16.mxu0 0
      %1127 = vmatpush1.bf16.msra.mxu0 0
      %1128 = vmatprep.subr.bf16.mxu0 0
      %1129 = vmatpush1.bf16.msra.mxu0 0
      %1130 = vmatprep.mubr.bf16.mxu0 0
      %1131 = vmatmul.mubr.bf16.gmra.mrb[0].mxu0 %v978
      %v1132 = vpop.f32.mrb[0].mxu0
      %v1133 = vadd.f32 %v1036, %v1132
      %v1134 = vpop.f32.mrb[0].mxu0
      %v1135 = vpop.f32.mrb[0].mxu0
      %v1136 = vadd.f32 %v1039, %v1135
      %v1137 = vpop.f32.mrb[0].mxu0
      %1138 = vmatprep.mubr.bf16.mxu0 0
      %1139 = vmatmul.mubr.bf16.gmra.mrb[0].mxu0 %v981
      %v1140 = vpop.f32.mrb[0].mxu0
      %v1141 = vadd.f32 %v1044, %v1140
      %v1142 = vpop.f32.mrb[0].mxu0
      %v1143 = vpop.f32.mrb[0].mxu0
      %v1144 = vadd.f32 %v1047, %v1143
      %v1145 = vpop.f32.mrb[0].mxu0
      %1146 = vmatprep.mubr.bf16.mxu0 0
      %1147 = vmatmul.mubr.bf16.gmra.mrb[0].mxu0 %v984
      %v1148 = vpop.f32.mrb[0].mxu0
      %v1149 = vadd.f32 %v1052, %v1148
      %v1150 = vpop.f32.mrb[0].mxu0
      %v1151 = vpop.f32.mrb[0].mxu0
      %v1152 = vadd.f32 %v1055, %v1151
      %v1153 = vpop.f32.mrb[0].mxu0
      %1154 = vmatprep.mubr.bf16.mxu0 0
      %1155 = vmatmul.mubr.bf16.gmra.mrb[0].mxu0 %v987
      %v1156 = vpop.f32.mrb[0].mxu0
      %v1157 = vadd.f32 %v1060, %v1156
      %v1158 = vpop.f32.mrb[0].mxu0
      %v1159 = vpop.f32.mrb[0].mxu0
      %v1160 = vadd.f32 %v1063, %v1159
      %v1161 = vpop.f32.mrb[0].mxu0
      %1162 = vmatprep.mubr.bf16.mxu0 0
      %1163 = vmatmul.mubr.bf16.gmra.mrb[0].mxu0 %v990
      %v1164 = vpop.f32.mrb[0].mxu0
      %v1165 = vadd.f32 %v1068, %v1164
      %v1166 = vpop.f32.mrb[0].mxu0
      %v1167 = vpop.f32.mrb[0].mxu0
      %v1168 = vadd.f32 %v1071, %v1167
      %v1169 = vpop.f32.mrb[0].mxu0
      %1170 = vmatprep.mubr.bf16.mxu0 0
      %1171 = vmatmul.mubr.bf16.gmra.mrb[0].mxu0 %v993
      %v1172 = vpop.f32.mrb[0].mxu0
      %v1173 = vadd.f32 %v1076, %v1172
      %v1174 = vpop.f32.mrb[0].mxu0
      %v1175 = vpop.f32.mrb[0].mxu0
      %v1176 = vadd.f32 %v1079, %v1175
      %v1177 = vpop.f32.mrb[0].mxu0
      %1178 = vmatprep.mubr.bf16.mxu0 0
      %1179 = vmatmul.mubr.bf16.gmra.mrb[0].mxu0 %v996
      %v1180 = vpop.f32.mrb[0].mxu0
      %v1181 = vadd.f32 %v1084, %v1180
      %v1182 = vpop.f32.mrb[0].mxu0
      %v1183 = vpop.f32.mrb[0].mxu0
      %v1184 = vadd.f32 %v1087, %v1183
      %v1185 = vpop.f32.mrb[0].mxu0
      %1186 = vmatprep.mubr.bf16.mxu0 0
      %1187 = vmatmul.mubr.bf16.gmra.mrb[0].mxu0 %v999
      %v1188 = vpop.f32.mrb[0].mxu0
      %v1189 = vadd.f32 %v1092, %v1188
      %v1190 = vpop.f32.mrb[0].mxu0
      %v1191 = vpop.f32.mrb[0].mxu0
      %v1192 = vadd.f32 %v1095, %v1191
      %v1193 = vpop.f32.mrb[0].mxu0
      %1194 = vdwg.mxu0
      %vm1195 = vcmp.ge.f32.partialorder %v1133, 0.0
      %vm1196 = vcmp.ge.f32.partialorder %v1136, 0.0
      %vm1197 = vcmp.ge.f32.partialorder %v1141, 0.0
      %vm1198 = vcmp.ge.f32.partialorder %v1144, 0.0
      %vm1199 = vcmp.ge.f32.partialorder %v1149, 0.0
      %vm1200 = vcmp.ge.f32.partialorder %v1152, 0.0
      %vm1201 = vcmp.ge.f32.partialorder %v1157, 0.0
      %vm1202 = vcmp.ge.f32.partialorder %v1160, 0.0
      %vm1203 = vcmp.ge.f32.partialorder %v1165, 0.0
      %vm1204 = vcmp.ge.f32.partialorder %v1168, 0.0
      %vm1205 = vcmp.ge.f32.partialorder %v1173, 0.0
      %vm1206 = vcmp.ge.f32.partialorder %v1176, 0.0
      %vm1207 = vcmp.ge.f32.partialorder %v1181, 0.0
      %vm1208 = vcmp.ge.f32.partialorder %v1184, 0.0
      %vm1209 = vcmp.ge.f32.partialorder %v1189, 0.0
      %vm1210 = vcmp.ge.f32.partialorder %v1192, 0.0
      %v1211 = vmul.f32 %v1133, 0.1
      %v1212 = vmul.f32 %v1136, 0.1
      %v1213 = vmul.f32 %v1141, 0.1
      %v1214 = vmul.f32 %v1144, 0.1
      %v1215 = vmul.f32 %v1149, 0.1
      %v1216 = vmul.f32 %v1152, 0.1
      %v1217 = vmul.f32 %v1157, 0.1
      %v1218 = vmul.f32 %v1160, 0.1
      %v1219 = vmul.f32 %v1165, 0.1
      %v1220 = vmul.f32 %v1168, 0.1
      %v1221 = vmul.f32 %v1173, 0.1
      %v1222 = vmul.f32 %v1176, 0.1
      %v1223 = vmul.f32 %v1181, 0.1
      %v1224 = vmul.f32 %v1184, 0.1
      %v1225 = vmul.f32 %v1189, 0.1
      %v1226 = vmul.f32 %v1192, 0.1
      %v1227 = vsel %vm1195, %v1133, %v1211
      %v1228 = vsel %vm1196, %v1136, %v1212
      %v1229 = vsel %vm1197, %v1141, %v1213
      %v1230 = vsel %vm1198, %v1144, %v1214
      %v1231 = vsel %vm1199, %v1149, %v1215
      %v1232 = vsel %vm1200, %v1152, %v1216
      %v1233 = vsel %vm1201, %v1157, %v1217
      %v1234 = vsel %vm1202, %v1160, %v1218
      %v1235 = vsel %vm1203, %v1165, %v1219
      %v1236 = vsel %vm1204, %v1168, %v1220
      %v1237 = vsel %vm1205, %v1173, %v1221
      %v1238 = vsel %vm1206, %v1176, %v1222
      %v1239 = vsel %vm1207, %v1181, %v1223
      %v1240 = vsel %vm1208, %v1184, %v1224
      %v1241 = vsel %vm1209, %v1189, %v1225
      %v1242 = vsel %vm1210, %v1192, %v1226
      %1243 = vst.msk [vmem:[%s177] sm:$0xff] %vm487, %v1227
      %1244 = vst.msk [vmem:[%s177 + $0x8] sm:$0xff] %vm487, %v1228
      %1245 = vst.msk [vmem:[%s177 + $0x10] sm:$0xff] %vm487, %v1229
      %1246 = vst.msk [vmem:[%s177 + $0x18] sm:$0xff] %vm487, %v1230
      %1247 = vst.msk [vmem:[%s177 + $0x20] sm:$0xff] %vm487, %v1231
      %1248 = vst.msk [vmem:[%s177 + $0x28] sm:$0xff] %vm487, %v1232
      %1249 = vst.msk [vmem:[%s177 + $0x30] sm:$0xff] %vm487, %v1233
      %1250 = vst.msk [vmem:[%s177 + $0x38] sm:$0xff] %vm487, %v1234
      %s1251 = scalar_lea.vmem %s177, 64
      %1252 = vst.msk [vmem:[%s1251] sm:$0xff] %vm487, %v1235
      %1253 = vst.msk [vmem:[%s1251 + $0x8] sm:$0xff] %vm487, %v1236
      %1254 = vst.msk [vmem:[%s1251 + $0x10] sm:$0xff] %vm487, %v1237
      %1255 = vst.msk [vmem:[%s1251 + $0x18] sm:$0xff] %vm487, %v1238
      %1256 = vst.msk [vmem:[%s1251 + $0x20] sm:$0xff] %vm487, %v1239
      %1257 = vst.msk [vmem:[%s1251 + $0x28] sm:$0xff] %vm487, %v1240
      %1258 = vst.msk [vmem:[%s1251 + $0x30] sm:$0xff] %vm487, %v1241
      %1259 = vst.msk [vmem:[%s1251 + $0x38] sm:$0xff] %vm487, %v1242
      %s1260 = smul.u32 2, %s14
      %p1261 = scmp.lt.s32.totalorder %s1260, 3
      %s1262 = scalar_select %p1261, %s1260, 3
      %s1263 = smul.addr %s1262, 8
      %s1264 = smul.addr %s1263, 8
      %s1265 = scalar_lea.vmem %s3, %s1264
      // Predicated region
      $region33: #{_lambda_.2} parent=31 // pred_check
        %p1266 = pneg %p100
      $region34: #{_lambda_.2} parent=31 // pred_check_branch
        %1268 = sbr.rel (%p1266) target = $region36
      $region35: #{_lambda_.2} parent=31 // pred_region
        %s1269 = smul.u32 2, %s14
      $region36: #{_lambda_.2} parent=31 // pred_fallthru
        _
    $region32: #{_lambda_.2} parent=5 // pred_fallthru
      _
    %p1270 = scmp.le.s32.totalorder 2, %s9
    // Predicated region
    $region37: #{_lambda_.2} parent=5 // pred_check
      %p1271 = pneg %p1270
    $region38: #{_lambda_.2} parent=5 // pred_check_branch
      %1273 = sbr.rel (%p1271) target = $region40
    $region39: #{_lambda_.2} parent=5 // pred_region
      %s1274 = ssub.s32 %s9, 2
      // Predicated region
      $region41: #{_lambda_.2} parent=39 // pred_check
        %p1275 = pneg %p106
      $region42: #{_lambda_.2} parent=39 // pred_check_branch
        %1277 = sbr.rel (%p1275) target = $region44
      $region43: #{_lambda_.2} parent=39 // pred_region
        %s1278 = smul.u32 2, %s15
        %p1279 = scmp.lt.s32.totalorder %s1278, 3
        %s1280 = scalar_select %p1279, %s1278, 3
        %s1281 = smul.addr %s1280, 8
        %s1282 = smul.addr %s1281, 8
        %s1283 = scalar_lea.vmem %s3, %s1282
      $region44: #{_lambda_.2} parent=39 // pred_fallthru
        _
    $region40: #{_lambda_.2} parent=5 // pred_fallthru
      _
  $region6: #{_lambda_.2} parent=0 // loop_footer
    %s13 = sadd.s32 1, %s9
  $region7: #{_lambda_.2} parent=0 // loop_footer_branch
    %8 = sbr.rel target = $region3
  $region8: #{_lambda_.2} parent=0 // loop_exit
    _

// kernel: _lambda_.3
$region0: #{_lambda_.3}
  #allocation0 [shape = 'u32[]', space=smem, size = 0x4, offset = 0x4, fixed_abs, tag = 'smem constant byte address 0x4 - core index']
  #allocation1 [shape = 'u32[144,128]{1,0:T(1,128)}', space=vmem, size = 0x12000, scoped, tag = 'internal scratch']
  %s0 = inlined_call_operand.vmem [shape: f32[4,18,18,16], index: 0, kind: input, shape index: {}]
  %s1 = inlined_call_operand.vmem [shape: bf16[144,16], index: 1, kind: input, shape index: {}]
  %s2 = inlined_call_operand.vmem [shape: f32[1,16], index: 2, kind: input, shape index: {}]
  %s3 = inlined_call_operand.vmem [shape: f32[2,16,512], index: 3, kind: output, shape index: {}]
  %s4 = sld [smem:[#allocation0]]
  $region45: #{_lambda_.3} parent=0
    _
  %s6 = ssub.s32 1, %s4
  %s7 = scalar_select 0, %s6, %s4
  loop: start=0, step=1, limit=4
  $region2: #{_lambda_.3} parent=0 // loop_pre_header
    _
  $region3: #{_lambda_.3} parent=0 // loop_header
    %s9 = sphi 0, %s13
    %p10 = scmp.ge.s32.totalorder %s9, 4
    %s19 = sphi 0, %s21
    %s22 = sphi 0, %s19
    %s23 = sphi 0, %s22
    %s39 = sphi 0, %s23
    %s43 = sphi 0, %s43
    %s45 = sphi 0, %s43
    %s46 = sphi 0, %s45
    %s60 = sphi 0, %s46
    %s64 = sphi 0, %s64
    %s66 = sphi 0, %s64
    %s67 = sphi 0, %s66
    %s81 = sphi 0, %s67
    %s87 = sphi 0, %s89
    %s90 = sphi 0, %s87
    %s91 = sphi 0, %s90
    %s107 = sphi 0, %s91
  $region4: #{_lambda_.3} parent=0 // loop_header_branch
    %12 = sbr.rel (%p10) target = $region8
  $region5: #{_lambda_.3} parent=0 // loop_body
    %s14 = ssub.s32 %s9, 1
    %s15 = ssub.s32 %s9, 2
    %s16 = sadd.s32 %s9, 1
    %s17 = ssub.s32 %s9, %s16
    %p18 = scmp.eq.s32.totalorder %s17, 0
    %s20 = sadd.s32 %s19, 1
    %s21 = scalar_select %p18, %s19, %s20
    %p24 = pneg %p18
    %p25 = scmp.eq.s32.totalorder %s9, 1
    %p26 = por %p24, %p25
    %p27 = scmp.ne.s32.totalorder %s19, %s22
    %p28 = scmp.eq.s32.totalorder %s9, 0
    %p29 = por %p27, %p28
    %p30 = scmp.ne.s32.totalorder %s19, %s22
    %p31 = scmp.eq.s32.totalorder %s14, 1
    %p32 = por %p30, %p31
    %p33 = scmp.ne.s32.totalorder %s22, %s23
    %p34 = scmp.eq.s32.totalorder %s14, 0
    %p35 = por %p33, %p34
    %p36 = scmp.ne.s32.totalorder %s22, %s23
    %p37 = scmp.eq.s32.totalorder %s15, 1
    %p38 = por %p36, %p37
    %p40 = scmp.ne.s32.totalorder %s23, %s39
    %p41 = scmp.eq.s32.totalorder %s15, 0
    %p42 = por %p40, %p41
    %s44 = sadd.s32 %s43, 1
    %p47 = scmp.eq.s32.totalorder %s9, 1
    %p48 = scmp.ne.s32.totalorder %s43, %s45
    %p49 = scmp.eq.s32.totalorder %s9, 0
    %p50 = por %p48, %p49
    %p51 = scmp.ne.s32.totalorder %s43, %s45
    %p52 = scmp.eq.s32.totalorder %s14, 1
    %p53 = por %p51, %p52
    %p54 = scmp.ne.s32.totalorder %s45, %s46
    %p55 = scmp.eq.s32.totalorder %s14, 0
    %p56 = por %p54, %p55
    %p57 = scmp.ne.s32.totalorder %s45, %s46
    %p58 = scmp.eq.s32.totalorder %s15, 1
    %p59 = por %p57, %p58
    %p61 = scmp.ne.s32.totalorder %s46, %s60
    %p62 = scmp.eq.s32.totalorder %s15, 0
    %p63 = por %p61, %p62
    %s65 = sadd.s32 %s64, 1
    %p68 = scmp.eq.s32.totalorder %s9, 1
    %p69 = scmp.ne.s32.totalorder %s64, %s66
    %p70 = scmp.eq.s32.totalorder %s9, 0
    %p71 = por %p69, %p70
    %p72 = scmp.ne.s32.totalorder %s64, %s66
    %p73 = scmp.eq.s32.totalorder %s14, 1
    %p74 = por %p72, %p73
    %p75 = scmp.ne.s32.totalorder %s66, %s67
    %p76 = scmp.eq.s32.totalorder %s14, 0
    %p77 = por %p75, %p76
    %p78 = scmp.ne.s32.totalorder %s66, %s67
    %p79 = scmp.eq.s32.totalorder %s15, 1
    %p80 = por %p78, %p79
    %p82 = scmp.ne.s32.totalorder %s67, %s81
    %p83 = scmp.eq.s32.totalorder %s15, 0
    %p84 = por %p82, %p83
    %s85 = ssub.s32 %s9, %s16
    %p86 = scmp.eq.s32.totalorder %s85, 0
    %s88 = sadd.s32 %s87, 1
    %s89 = scalar_select %p86, %s87, %s88
    %p92 = pneg %p86
    %p93 = scmp.eq.s32.totalorder %s9, 1
    %p94 = por %p92, %p93
    %p95 = scmp.ne.s32.totalorder %s87, %s90
    %p96 = scmp.eq.s32.totalorder %s9, 0
    %p97 = por %p95, %p96
    %p98 = scmp.ne.s32.totalorder %s87, %s90
    %p99 = scmp.eq.s32.totalorder %s14, 1
    %p100 = por %p98, %p99
    %p101 = scmp.ne.s32.totalorder %s90, %s91
    %p102 = scmp.eq.s32.totalorder %s14, 0
    %p103 = por %p101, %p102
    %p104 = scmp.ne.s32.totalorder %s90, %s91
    %p105 = scmp.eq.s32.totalorder %s15, 1
    %p106 = por %p104, %p105
    %p108 = scmp.ne.s32.totalorder %s91, %s107
    %p109 = scmp.eq.s32.totalorder %s15, 0
    %p110 = por %p108, %p109
    %p111 = scmp.le.s32.totalorder 1, %s9
    %p112 = scmp.lt.s32.totalorder %s9, 3
    %p113 = pnand %p111, %p112
    %p114 = pneg %p113
    // Predicated region
    $region9: #{_lambda_.3} parent=5 // pred_check
      _
    $region10: #{_lambda_.3} parent=5 // pred_check_branch
      %116 = sbr.rel (%p113) target = $region12
    $region11: #{_lambda_.3} parent=5 // pred_region
      %s117 = ssub.s32 %s9, 1
      // Predicated region
      $region13: #{_lambda_.3} parent=11 // pred_check
        %p118 = pneg %p56
      $region14: #{_lambda_.3} parent=11 // pred_check_branch
        %120 = sbr.rel (%p118) target = $region16
      $region15: #{_lambda_.3} parent=11 // pred_region
        _
      $region16: #{_lambda_.3} parent=11 // pred_fallthru
        _
      // Predicated region
      $region17: #{_lambda_.3} parent=11 // pred_check
        %p121 = pneg %p77
      $region18: #{_lambda_.3} parent=11 // pred_check_branch
        %123 = sbr.rel (%p121) target = $region20
      $region19: #{_lambda_.3} parent=11 // pred_region
        _
      $region20: #{_lambda_.3} parent=11 // pred_fallthru
        _
    $region12: #{_lambda_.3} parent=5 // pred_fallthru
      _
    %p124 = scmp.lt.s32.totalorder %s9, 2
    // Predicated region
    $region21: #{_lambda_.3} parent=5 // pred_check
      %p125 = pneg %p124
    $region22: #{_lambda_.3} parent=5 // pred_check_branch
      %127 = sbr.rel (%p125) target = $region24
    $region23: #{_lambda_.3} parent=5 // pred_region
      // Predicated region
      $region25: #{_lambda_.3} parent=23 // pred_check
        %p128 = pneg %p29
      $region26: #{_lambda_.3} parent=23 // pred_check_branch
        %130 = sbr.rel (%p128) target = $region28
      $region27: #{_lambda_.3} parent=23 // pred_region
        %s131 = smul.u32 2, %s9
        %p132 = scmp.lt.s32.totalorder %s131, 3
        %s133 = scalar_select %p132, %s131, 3
        %s134 = smul.addr %s133, 54
        %s135 = smul.addr %s134, 8
        %s136 = scalar_lea.vmem %s0, %s135
        %s137 = smul.u32 2, %s9
      $region28: #{_lambda_.3} parent=23 // pred_fallthru
        _
    $region24: #{_lambda_.3} parent=5 // pred_fallthru
      _
    %p138 = scmp.le.s32.totalorder 1, %s9
    %p139 = scmp.lt.s32.totalorder %s9, 3
    %p140 = pnand %p138, %p139
    %p141 = pneg %p140
    // Predicated region
    $region29: #{_lambda_.3} parent=5 // pred_check
      _
    $region30: #{_lambda_.3} parent=5 // pred_check_branch
      %143 = sbr.rel (%p140) target = $region32
    $region31: #{_lambda_.3} parent=5 // pred_region
      %s144 = ssub.s32 %s9, 1
      %s145 = smul.u32 2, %s14
      %p146 = scmp.lt.s32.totalorder %s145, 3
      %s147 = scalar_select %p146, %s145, 3
      %s148 = smul.addr %s147, 54
      %s149 = smul.addr %s148, 8
      %s150 = scalar_lea.vmem %s0, %s149
      %p151 = pneg %p35
      %p152 = pneg %p32
      %p153 = pneg %p56
      %p154 = pneg %p53
      %p155 = pneg %p77
      %p156 = pneg %p74
      %p157 = pneg %p103
      %p158 = pneg %p100
      %p159 = scmp.lt.s32.totalorder %s14, 1
      %s160 = scalar_select %p159, %s14, 1
      %s161 = smul.addr %s160, 8
      %s162 = smul.addr %s161, 8
      %s163 = scalar_lea.vmem %s3, %s162
      %s164 = smul.u32 2, %s14
      %p165 = scmp.lt.s32.totalorder %s164, 3
      %s166 = scalar_select %p165, %s164, 3
      %s167 = smul.addr %s166, 54
      %s168 = smul.addr %s167, 8
      %s169 = scalar_lea.vmem %s0, %s168
      %s170 = smul.u32 2, %s14
      %p171 = scmp.lt.s32.totalorder %s14, 1
      %s172 = scalar_select %p171, %s14, 1
      %s173 = smul.addr %s172, 8
      %s174 = smul.addr %s173, 8
      %s175 = scalar_lea.vmem %s3, %s174
      %v177 = vld [vmem:[%s1] sm:$0xf]
      %v178 = vld [vmem:[%s1 + $0x4] sm:$0xf]
      %v179 = vld [vmem:[%s1 + $0x8] sm:$0xf]
      %v180 = vld [vmem:[%s1 + $0xc] sm:$0xf]
      %v181 = vld [vmem:[%s1 + $0x10] sm:$0xf]
      %v182 = vld [vmem:[%s1 + $0x14] sm:$0xf]
      %v183 = vld [vmem:[%s1 + $0x18] sm:$0xf]
      %v184 = vld [vmem:[%s1 + $0x1c] sm:$0xf]
      %v185 = vld [vmem:[%s1 + $0x20] sm:$0xf]
      %v186 = vld [vmem:[%s1 + $0x24] sm:$0xf]
      %v187 = vld [vmem:[%s1 + $0x28] sm:$0xf]
      %v188 = vld [vmem:[%s1 + $0x2c] sm:$0xf]
      %v189 = vld [vmem:[%s1 + $0x30] sm:$0xf]
      %v190 = vld [vmem:[%s1 + $0x34] sm:$0xf]
      %v191 = vld [vmem:[%s1 + $0x38] sm:$0xf]
      %v192 = vld [vmem:[%s1 + $0x3c] sm:$0xf]
      %v193 = vld [vmem:[%s1 + $0x40] sm:$0xf]
      %v194 = vld [vmem:[%s1 + $0x44] sm:$0xf]
      %v195 = vld [vmem:[%s169] sm:$0xff]
      %v196 = vld [vmem:[%s169 + $0x8] sm:$0xff]
      %v197 = vld [vmem:[%s169 + $0x10] sm:$0x3]
      %v198 = vld [vmem:[%s169 + $0x18] sm:$0xff]
      %v199 = vld [vmem:[%s169 + $0x20] sm:$0xff]
      %v200 = vld [vmem:[%s169 + $0x28] sm:$0x3]
      %v201 = vld [vmem:[%s169 + $0x30] sm:$0xff]
      %v202 = vld [vmem:[%s169 + $0x38] sm:$0xff]
      %v203 = vld [vmem:[%s169 + $0x40] sm:$0x3]
      %v204 = vld [vmem:[%s169 + $0x48] sm:$0xff]
      %v205 = vld [vmem:[%s169 + $0x50] sm:$0xff]
      %v206 = vld [vmem:[%s169 + $0x58] sm:$0x3]
      %v207 = vld [vmem:[%s169 + $0x60] sm:$0xff]
      %v208 = vld [vmem:[%s169 + $0x68] sm:$0xff]
      %v209 = vld [vmem:[%s169 + $0x70] sm:$0x3]
      %v210 = vld [vmem:[%s169 + $0x78] sm:$0xff]
      %v211 = vld [vmem:[%s169 + $0x80] sm:$0xff]
      %v212 = vld [vmem:[%s169 + $0x88] sm:$0x3]
      %v213 = vld [vmem:[%s169 + $0x90] sm:$0xff]
      %v214 = vld [vmem:[%s169 + $0x98] sm:$0xff]
      %v215 = vld [vmem:[%s169 + $0xa0] sm:$0x3]
      %v216 = vld [vmem:[%s169 + $0xa8] sm:$0xff]
      %v217 = vld [vmem:[%s169 + $0xb0] sm:$0xff]
      %v218 = vld [vmem:[%s169 + $0xb8] sm:$0x3]
      %v219 = vld [vmem:[%s169 + $0xc0] sm:$0xff]
      %v220 = vld [vmem:[%s169 + $0xc8] sm:$0xff]
      %v221 = vld [vmem:[%s169 + $0xd0] sm:$0x3]
      %v222 = vld [vmem:[%s169 + $0xd8] sm:$0xff]
      %v223 = vld [vmem:[%s169 + $0xe0] sm:$0xff]
      %v224 = vld [vmem:[%s169 + $0xe8] sm:$0x3]
      %v225 = vld [vmem:[%s169 + $0xf0] sm:$0xff]
      %v226 = vld [vmem:[%s169 + $0xf8] sm:$0xff]
      %v227 = vld [vmem:[%s169 + $0x100] sm:$0x3]
      %v228 = vld [vmem:[%s169 + $0x108] sm:$0xff]
      %v229 = vld [vmem:[%s169 + $0x110] sm:$0xff]
      %v230 = vld [vmem:[%s169 + $0x118] sm:$0x3]
      %v231 = vld [vmem:[%s169 + $0x120] sm:$0xff]
      %v232 = vld [vmem:[%s169 + $0x128] sm:$0xff]
      %v233 = vld [vmem:[%s169 + $0x130] sm:$0x3]
      %v234 = vld [vmem:[%s169 + $0x138] sm:$0xff]
      %v235 = vld [vmem:[%s169 + $0x140] sm:$0xff]
      %v236 = vld [vmem:[%s169 + $0x148] sm:$0x3]
      %v237 = vld [vmem:[%s169 + $0x150] sm:$0xff]
      %v238 = vld [vmem:[%s169 + $0x158] sm:$0xff]
      %v239 = vld [vmem:[%s169 + $0x160] sm:$0x3]
      %v240 = vld [vmem:[%s169 + $0x168] sm:$0xff]
      %v241 = vld [vmem:[%s169 + $0x170] sm:$0xff]
      %v242 = vld [vmem:[%s169 + $0x178] sm:$0x3]
      %v243 = vld [vmem:[%s169 + $0x180] sm:$0xff]
      %v244 = vld [vmem:[%s169 + $0x188] sm:$0xff]
      %v245 = vld [vmem:[%s169 + $0x190] sm:$0x3]
      %v246 = vld [vmem:[%s169 + $0x198] sm:$0xff]
      %v247 = vld [vmem:[%s169 + $0x1a0] sm:$0xff]
      %v248 = vld [vmem:[%s169 + $0x1a8] sm:$0x3]
      %vm297 = vcmask 1046528
      %v298 = vrot.slane %v195, 1
      %v299 = vrot.slane %v196, 1
      %v300 = vsel %vm297, %v298, %v299
      %v301 = vrot.slane %v197, 1
      %v302 = vsel %vm297, %v299, %v301
      %v303 = vrot.slane %v198, 1
      %v304 = vrot.slane %v199, 1
      %v305 = vsel %vm297, %v303, %v304
      %v306 = vrot.slane %v200, 1
      %v307 = vsel %vm297, %v304, %v306
      %v308 = vrot.slane %v201, 1
      %v309 = vrot.slane %v202, 1
      %v310 = vsel %vm297, %v308, %v309
      %v311 = vrot.slane %v203, 1
      %v312 = vsel %vm297, %v309, %v311
      %v313 = vrot.slane %v204, 1
      %v314 = vrot.slane %v205, 1
      %v315 = vsel %vm297, %v313, %v314
      %v316 = vrot.slane %v206, 1
      %v317 = vsel %vm297, %v314, %v316
      %v318 = vrot.slane %v207, 1
      %v319 = vrot.slane %v208, 1
      %v320 = vsel %vm297, %v318, %v319
      %v321 = vrot.slane %v209, 1
      %v322 = vsel %vm297, %v319, %v321
      %v323 = vrot.slane %v210, 1
      %v324 = vrot.slane %v211, 1
      %v325 = vsel %vm297, %v323, %v324
      %v326 = vrot.slane %v212, 1
      %v327 = vsel %vm297, %v324, %v326
      %v328 = vrot.slane %v213, 1
      %v329 = vrot.slane %v214, 1
      %v330 = vsel %vm297, %v328, %v329
      %v331 = vrot.slane %v215, 1
      %v332 = vsel %vm297, %v329, %v331
      %v333 = vrot.slane %v216, 1
      %v334 = vrot.slane %v217, 1
      %v335 = vsel %vm297, %v333, %v334
      %v336 = vrot.slane %v218, 1
      %v337 = vsel %vm297, %v334, %v336
      %v338 = vrot.slane %v219, 1
      %v339 = vrot.slane %v220, 1
      %v340 = vsel %vm297, %v338, %v339
      %v341 = vrot.slane %v221, 1
      %v342 = vsel %vm297, %v339, %v341
      %v343 = vrot.slane %v222, 1
      %v344 = vrot.slane %v223, 1
      %v345 = vsel %vm297, %v343, %v344
      %v346 = vrot.slane %v224, 1
      %v347 = vsel %vm297, %v344, %v346
      %v348 = vrot.slane %v225, 1
      %v349 = vrot.slane %v226, 1
      %v350 = vsel %vm297, %v348, %v349
      %v351 = vrot.slane %v227, 1
      %v352 = vsel %vm297, %v349, %v351
      %v353 = vrot.slane %v228, 1
      %v354 = vrot.slane %v229, 1
      %v355 = vsel %vm297, %v353, %v354
      %v356 = vrot.slane %v230, 1
      %v357 = vsel %vm297, %v354, %v356
      %v358 = vrot.slane %v231, 1
      %v359 = vrot.slane %v232, 1
      %v360 = vsel %vm297, %v358, %v359
      %v361 = vrot.slane %v233, 1
      %v362 = vsel %vm297, %v359, %v361
      %v363 = vrot.slane %v234, 1
      %v364 = vrot.slane %v235, 1
      %v365 = vsel %vm297, %v363, %v364
      %v366 = vrot.slane %v236, 1
      %v367 = vsel %vm297, %v364, %v366
      %v368 = vrot.slane %v237, 1
      %v369 = vrot.slane %v238, 1
      %v370 = vsel %vm297, %v368, %v369
      %v371 = vrot.slane %v239, 1
      %v372 = vsel %vm297, %v369, %v371
      %v373 = vrot.slane %v240, 1
      %v374 = vrot.slane %v241, 1
      %v375 = vsel %vm297, %v373, %v374
      %v376 = vrot.slane %v242, 1
      %v377 = vsel %vm297, %v374, %v376
      %vm378 = vcmask 1045504
      %v379 = vrot.slane %v195, 2
      %v380 = vrot.slane %v196, 2
      %v381 = vsel %vm378, %v379, %v380
      %v382 = vrot.slane %v197, 2
      %v383 = vsel %vm378, %v380, %v382
      %v384 = vrot.slane %v198, 2
      %v385 = vrot.slane %v199, 2
      %v386 = vsel %vm378, %v384, %v385
      %v387 = vrot.slane %v200, 2
      %v388 = vsel %vm378, %v385, %v387
      %v389 = vrot.slane %v201, 2
      %v390 = vrot.slane %v202, 2
      %v391 = vsel %vm378, %v389, %v390
      %v392 = vrot.slane %v203, 2
      %v393 = vsel %vm378, %v390, %v392
      %v394 = vrot.slane %v204, 2
      %v395 = vrot.slane %v205, 2
      %v396 = vsel %vm378, %v394, %v395
      %v397 = vrot.slane %v206, 2
      %v398 = vsel %vm378, %v395, %v397
      %v399 = vrot.slane %v207, 2
      %v400 = vrot.slane %v208, 2
      %v401 = vsel %vm378, %v399, %v400
      %v402 = vrot.slane %v209, 2
      %v403 = vsel %vm378, %v400, %v402
      %v404 = vrot.slane %v210, 2
      %v405 = vrot.slane %v211, 2
      %v406 = vsel %vm378, %v404, %v405
      %v407 = vrot.slane %v212, 2
      %v408 = vsel %vm378, %v405, %v407
      %v409 = vrot.slane %v213, 2
      %v410 = vrot.slane %v214, 2
      %v411 = vsel %vm378, %v409, %v410
      %v412 = vrot.slane %v215, 2
      %v413 = vsel %vm378, %v410, %v412
      %v414 = vrot.slane %v216, 2
      %v415 = vrot.slane %v217, 2
      %v416 = vsel %vm378, %v414, %v415
      %v417 = vrot.slane %v218, 2
      %v418 = vsel %vm378, %v415, %v417
      %v419 = vrot.slane %v219, 2
      %v420 = vrot.slane %v220, 2
      %v421 = vsel %vm378, %v419, %v420
      %v422 = vrot.slane %v221, 2
      %v423 = vsel %vm378, %v420, %v422
      %v424 = vrot.slane %v222, 2
      %v425 = vrot.slane %v223, 2
      %v426 = vsel %vm378, %v424, %v425
      %v427 = vrot.slane %v224, 2
      %v428 = vsel %vm378, %v425, %v427
      %v429 = vrot.slane %v225, 2
      %v430 = vrot.slane %v226, 2
      %v431 = vsel %vm378, %v429, %v430
      %v432 = vrot.slane %v227, 2
      %v433 = vsel %vm378, %v430, %v432
      %v434 = vrot.slane %v228, 2
      %v435 = vrot.slane %v229, 2
      %v436 = vsel %vm378, %v434, %v435
      %v437 = vrot.slane %v230, 2
      %v438 = vsel %vm378, %v435, %v437
      %v439 = vrot.slane %v231, 2
      %v440 = vrot.slane %v232, 2
      %v441 = vsel %vm378, %v439, %v440
      %v442 = vrot.slane %v233, 2
      %v443 = vsel %vm378, %v440, %v442
      %v444 = vrot.slane %v234, 2
      %v445 = vrot.slane %v235, 2
      %v446 = vsel %vm378, %v444, %v445
      %v447 = vrot.slane %v236, 2
      %v448 = vsel %vm378, %v445, %v447
      %v449 = vrot.slane %v237, 2
      %v450 = vrot.slane %v238, 2
      %v451 = vsel %vm378, %v449, %v450
      %v452 = vrot.slane %v239, 2
      %v453 = vsel %vm378, %v450, %v452
      %v454 = vrot.slane %v240, 2
      %v455 = vrot.slane %v241, 2
      %v456 = vsel %vm378, %v454, %v455
      %v457 = vrot.slane %v242, 2
      %v458 = vsel %vm378, %v455, %v457
      %v462 = vrot.slane %v243, 1
      %v463 = vrot.slane %v244, 1
      %v464 = vsel %vm297, %v462, %v463
      %v465 = vrot.slane %v245, 1
      %v466 = vsel %vm297, %v463, %v465
      %v467 = vrot.slane %v243, 2
      %v468 = vrot.slane %v244, 2
      %v469 = vsel %vm378, %v467, %v468
      %v470 = vrot.slane %v245, 2
      %v471 = vsel %vm378, %v468, %v470
      %v475 = vrot.slane %v246, 1
      %v476 = vrot.slane %v247, 1
      %v477 = vsel %vm297, %v475, %v476
      %v478 = vrot.slane %v248, 1
      %v479 = vsel %vm297, %v476, %v478
      %v480 = vrot.slane %v246, 2
      %v481 = vrot.slane %v247, 2
      %v482 = vsel %vm378, %v480, %v481
      %v483 = vrot.slane %v248, 2
      %v484 = vsel %vm378, %v481, %v483
      %517 = vrot.lane.b32.xlu0 %v300, 16
      %v518 = vpop.permute.xlu0 %517
      %519 = vrot.lane.b32.xlu0 %v302, 16
      %v520 = vpop.permute.xlu0 %519
      %521 = vrot.lane.b32.xlu0 %v305, 16
      %v522 = vpop.permute.xlu0 %521
      %523 = vrot.lane.b32.xlu0 %v307, 16
      %v524 = vpop.permute.xlu0 %523
      %525 = vrot.lane.b32.xlu0 %v310, 16
      %v526 = vpop.permute.xlu0 %525
      %527 = vrot.lane.b32.xlu0 %v312, 16
      %v528 = vpop.permute.xlu0 %527
      %529 = vrot.lane.b32.xlu0 %v315, 16
      %v530 = vpop.permute.xlu0 %529
      %531 = vrot.lane.b32.xlu0 %v317, 16
      %v532 = vpop.permute.xlu0 %531
      %533 = vrot.lane.b32.xlu0 %v320, 16
      %v534 = vpop.permute.xlu0 %533
      %535 = vrot.lane.b32.xlu0 %v322, 16
      %v536 = vpop.permute.xlu0 %535
      %537 = vrot.lane.b32.xlu0 %v325, 16
      %v538 = vpop.permute.xlu0 %537
      %539 = vrot.lane.b32.xlu0 %v327, 16
      %v540 = vpop.permute.xlu0 %539
      %541 = vrot.lane.b32.xlu0 %v330, 16
      %v542 = vpop.permute.xlu0 %541
      %543 = vrot.lane.b32.xlu0 %v332, 16
      %v544 = vpop.permute.xlu0 %543
      %545 = vrot.lane.b32.xlu0 %v335, 16
      %v546 = vpop.permute.xlu0 %545
      %547 = vrot.lane.b32.xlu0 %v337, 16
      %v548 = vpop.permute.xlu0 %547
      %549 = vrot.lane.b32.xlu0 %v340, 16
      %v550 = vpop.permute.xlu0 %549
      %551 = vrot.lane.b32.xlu0 %v342, 16
      %v552 = vpop.permute.xlu0 %551
      %553 = vrot.lane.b32.xlu0 %v345, 16
      %v554 = vpop.permute.xlu0 %553
      %555 = vrot.lane.b32.xlu0 %v347, 16
      %v556 = vpop.permute.xlu0 %555
      %557 = vrot.lane.b32.xlu0 %v350, 16
      %v558 = vpop.permute.xlu0 %557
      %559 = vrot.lane.b32.xlu0 %v352, 16
      %v560 = vpop.permute.xlu0 %559
      %561 = vrot.lane.b32.xlu0 %v355, 16
      %v562 = vpop.permute.xlu0 %561
      %563 = vrot.lane.b32.xlu0 %v357, 16
      %v564 = vpop.permute.xlu0 %563
      %565 = vrot.lane.b32.xlu0 %v360, 16
      %v566 = vpop.permute.xlu0 %565
      %567 = vrot.lane.b32.xlu0 %v362, 16
      %v568 = vpop.permute.xlu0 %567
      %569 = vrot.lane.b32.xlu0 %v365, 16
      %v570 = vpop.permute.xlu0 %569
      %571 = vrot.lane.b32.xlu0 %v367, 16
      %v572 = vpop.permute.xlu0 %571
      %573 = vrot.lane.b32.xlu0 %v370, 16
      %v574 = vpop.permute.xlu0 %573
      %575 = vrot.lane.b32.xlu0 %v372, 16
      %v576 = vpop.permute.xlu0 %575
      %577 = vrot.lane.b32.xlu0 %v375, 16
      %v578 = vpop.permute.xlu0 %577
      %579 = vrot.lane.b32.xlu0 %v377, 16
      %v580 = vpop.permute.xlu0 %579
      %613 = vrot.lane.b32.xlu0 %v381, 32
      %v614 = vpop.permute.xlu0 %613
      %615 = vrot.lane.b32.xlu0 %v383, 32
      %v616 = vpop.permute.xlu0 %615
      %617 = vrot.lane.b32.xlu0 %v386, 32
      %v618 = vpop.permute.xlu0 %617
      %619 = vrot.lane.b32.xlu0 %v388, 32
      %v620 = vpop.permute.xlu0 %619
      %621 = vrot.lane.b32.xlu0 %v391, 32
      %v622 = vpop.permute.xlu0 %621
      %623 = vrot.lane.b32.xlu0 %v393, 32
      %v624 = vpop.permute.xlu0 %623
      %625 = vrot.lane.b32.xlu0 %v396, 32
      %v626 = vpop.permute.xlu0 %625
      %627 = vrot.lane.b32.xlu0 %v398, 32
      %v628 = vpop.permute.xlu0 %627
      %629 = vrot.lane.b32.xlu0 %v401, 32
      %v630 = vpop.permute.xlu0 %629
      %631 = vrot.lane.b32.xlu0 %v403, 32
      %v632 = vpop.permute.xlu0 %631
      %633 = vrot.lane.b32.xlu0 %v406, 32
      %v634 = vpop.permute.xlu0 %633
      %635 = vrot.lane.b32.xlu0 %v408, 32
      %v636 = vpop.permute.xlu0 %635
      %637 = vrot.lane.b32.xlu0 %v411, 32
      %v638 = vpop.permute.xlu0 %637
      %639 = vrot.lane.b32.xlu0 %v413, 32
      %v640 = vpop.permute.xlu0 %639
      %641 = vrot.lane.b32.xlu0 %v416, 32
      %v642 = vpop.permute.xlu0 %641
      %643 = vrot.lane.b32.xlu0 %v418, 32
      %v644 = vpop.permute.xlu0 %643
      %645 = vrot.lane.b32.xlu0 %v421, 32
      %v646 = vpop.permute.xlu0 %645
      %647 = vrot.lane.b32.xlu0 %v423, 32
      %v648 = vpop.permute.xlu0 %647
      %649 = vrot.lane.b32.xlu0 %v426, 32
      %v650 = vpop.permute.xlu0 %649
      %651 = vrot.lane.b32.xlu0 %v428, 32
      %v652 = vpop.permute.xlu0 %651
      %653 = vrot.lane.b32.xlu0 %v431, 32
      %v654 = vpop.permute.xlu0 %653
      %655 = vrot.lane.b32.xlu0 %v433, 32
      %v656 = vpop.permute.xlu0 %655
      %657 = vrot.lane.b32.xlu0 %v436, 32
      %v658 = vpop.permute.xlu0 %657
      %659 = vrot.lane.b32.xlu0 %v438, 32
      %v660 = vpop.permute.xlu0 %659
      %661 = vrot.lane.b32.xlu0 %v441, 32
      %v662 = vpop.permute.xlu0 %661
      %663 = vrot.lane.b32.xlu0 %v443, 32
      %v664 = vpop.permute.xlu0 %663
      %665 = vrot.lane.b32.xlu0 %v446, 32
      %v666 = vpop.permute.xlu0 %665
      %667 = vrot.lane.b32.xlu0 %v448, 32
      %v668 = vpop.permute.xlu0 %667
      %669 = vrot.lane.b32.xlu0 %v451, 32
      %v670 = vpop.permute.xlu0 %669
      %671 = vrot.lane.b32.xlu0 %v453, 32
      %v672 = vpop.permute.xlu0 %671
      %673 = vrot.lane.b32.xlu0 %v456, 32
      %v674 = vpop.permute.xlu0 %673
      %675 = vrot.lane.b32.xlu0 %v458, 32
      %v676 = vpop.permute.xlu0 %675
      %709 = vrot.lane.b32.xlu0 %v198, 48
      %v710 = vpop.permute.xlu0 %709
      %711 = vrot.lane.b32.xlu0 %v199, 48
      %v712 = vpop.permute.xlu0 %711
      %713 = vrot.lane.b32.xlu0 %v201, 48
      %v714 = vpop.permute.xlu0 %713
      %715 = vrot.lane.b32.xlu0 %v202, 48
      %v716 = vpop.permute.xlu0 %715
      %717 = vrot.lane.b32.xlu0 %v204, 48
      %v718 = vpop.permute.xlu0 %717
      %719 = vrot.lane.b32.xlu0 %v205, 48
      %v720 = vpop.permute.xlu0 %719
      %721 = vrot.lane.b32.xlu0 %v207, 48
      %v722 = vpop.permute.xlu0 %721
      %723 = vrot.lane.b32.xlu0 %v208, 48
      %v724 = vpop.permute.xlu0 %723
      %725 = vrot.lane.b32.xlu0 %v210, 48
      %v726 = vpop.permute.xlu0 %725
      %727 = vrot.lane.b32.xlu0 %v211, 48
      %v728 = vpop.permute.xlu0 %727
      %729 = vrot.lane.b32.xlu0 %v213, 48
      %v730 = vpop.permute.xlu0 %729
      %731 = vrot.lane.b32.xlu0 %v214, 48
      %v732 = vpop.permute.xlu0 %731
      %733 = vrot.lane.b32.xlu0 %v216, 48
      %v734 = vpop.permute.xlu0 %733
      %735 = vrot.lane.b32.xlu0 %v217, 48
      %v736 = vpop.permute.xlu0 %735
      %737 = vrot.lane.b32.xlu0 %v219, 48
      %v738 = vpop.permute.xlu0 %737
      %739 = vrot.lane.b32.xlu0 %v220, 48
      %v740 = vpop.permute.xlu0 %739
      %741 = vrot.lane.b32.xlu0 %v222, 48
      %v742 = vpop.permute.xlu0 %741
      %743 = vrot.lane.b32.xlu0 %v223, 48
      %v744 = vpop.permute.xlu0 %743
      %745 = vrot.lane.b32.xlu0 %v225, 48
      %v746 = vpop.permute.xlu0 %745
      %747 = vrot.lane.b32.xlu0 %v226, 48
      %v748 = vpop.permute.xlu0 %747
      %749 = vrot.lane.b32.xlu0 %v228, 48
      %v750 = vpop.permute.xlu0 %749
      %751 = vrot.lane.b32.xlu0 %v229, 48
      %v752 = vpop.permute.xlu0 %751
      %753 = vrot.lane.b32.xlu0 %v231, 48
      %v754 = vpop.permute.xlu0 %753
      %755 = vrot.lane.b32.xlu0 %v232, 48
      %v756 = vpop.permute.xlu0 %755
      %757 = vrot.lane.b32.xlu0 %v234, 48
      %v758 = vpop.permute.xlu0 %757
      %759 = vrot.lane.b32.xlu0 %v235, 48
      %v760 = vpop.permute.xlu0 %759
      %761 = vrot.lane.b32.xlu0 %v237, 48
      %v762 = vpop.permute.xlu0 %761
      %763 = vrot.lane.b32.xlu0 %v238, 48
      %v764 = vpop.permute.xlu0 %763
      %765 = vrot.lane.b32.xlu0 %v240, 48
      %v766 = vpop.permute.xlu0 %765
      %767 = vrot.lane.b32.xlu0 %v241, 48
      %v768 = vpop.permute.xlu0 %767
      %769 = vrot.lane.b32.xlu0 %v243, 48
      %v770 = vpop.permute.xlu0 %769
      %771 = vrot.lane.b32.xlu0 %v244, 48
      %v772 = vpop.permute.xlu0 %771
      %805 = vrot.lane.b32.xlu0 %v305, 64
      %v806 = vpop.permute.xlu0 %805
      %807 = vrot.lane.b32.xlu0 %v307, 64
      %v808 = vpop.permute.xlu0 %807
      %809 = vrot.lane.b32.xlu0 %v310, 64
      %v810 = vpop.permute.xlu0 %809
      %811 = vrot.lane.b32.xlu0 %v312, 64
      %v812 = vpop.permute.xlu0 %811
      %813 = vrot.lane.b32.xlu0 %v315, 64
      %v814 = vpop.permute.xlu0 %813
      %815 = vrot.lane.b32.xlu0 %v317, 64
      %v816 = vpop.permute.xlu0 %815
      %817 = vrot.lane.b32.xlu0 %v320, 64
      %v818 = vpop.permute.xlu0 %817
      %819 = vrot.lane.b32.xlu0 %v322, 64
      %v820 = vpop.permute.xlu0 %819
      %821 = vrot.lane.b32.xlu0 %v325, 64
      %v822 = vpop.permute.xlu0 %821
      %823 = vrot.lane.b32.xlu0 %v327, 64
      %v824 = vpop.permute.xlu0 %823
      %825 = vrot.lane.b32.xlu0 %v330, 64
      %v826 = vpop.permute.xlu0 %825
      %827 = vrot.lane.b32.xlu0 %v332, 64
      %v828 = vpop.permute.xlu0 %827
      %829 = vrot.lane.b32.xlu0 %v335, 64
      %v830 = vpop.permute.xlu0 %829
      %831 = vrot.lane.b32.xlu0 %v337, 64
      %v832 = vpop.permute.xlu0 %831
      %833 = vrot.lane.b32.xlu0 %v340, 64
      %v834 = vpop.permute.xlu0 %833
      %835 = vrot.lane.b32.xlu0 %v342, 64
      %v836 = vpop.permute.xlu0 %835
      %837 = vrot.lane.b32.xlu0 %v345, 64
      %v838 = vpop.permute.xlu0 %837
      %839 = vrot.lane.b32.xlu0 %v347, 64
      %v840 = vpop.permute.xlu0 %839
      %841 = vrot.lane.b32.xlu0 %v350, 64
      %v842 = vpop.permute.xlu0 %841
      %843 = vrot.lane.b32.xlu0 %v352, 64
      %v844 = vpop.permute.xlu0 %843
      %845 = vrot.lane.b32.xlu0 %v355, 64
      %v846 = vpop.permute.xlu0 %845
      %847 = vrot.lane.b32.xlu0 %v357, 64
      %v848 = vpop.permute.xlu0 %847
      %849 = vrot.lane.b32.xlu0 %v360, 64
      %v850 = vpop.permute.xlu0 %849
      %851 = vrot.lane.b32.xlu0 %v362, 64
      %v852 = vpop.permute.xlu0 %851
      %853 = vrot.lane.b32.xlu0 %v365, 64
      %v854 = vpop.permute.xlu0 %853
      %855 = vrot.lane.b32.xlu0 %v367, 64
      %v856 = vpop.permute.xlu0 %855
      %857 = vrot.lane.b32.xlu0 %v370, 64
      %v858 = vpop.permute.xlu0 %857
      %859 = vrot.lane.b32.xlu0 %v372, 64
      %v860 = vpop.permute.xlu0 %859
      %861 = vrot.lane.b32.xlu0 %v375, 64
      %v862 = vpop.permute.xlu0 %861
      %863 = vrot.lane.b32.xlu0 %v377, 64
      %v864 = vpop.permute.xlu0 %863
      %865 = vrot.lane.b32.xlu0 %v464, 64
      %v866 = vpop.permute.xlu0 %865
      %867 = vrot.lane.b32.xlu0 %v466, 64
      %v868 = vpop.permute.xlu0 %867
      %901 = vrot.lane.b32.xlu0 %v386, 80
      %v902 = vpop.permute.xlu0 %901
      %903 = vrot.lane.b32.xlu0 %v388, 80
      %v904 = vpop.permute.xlu0 %903
      %905 = vrot.lane.b32.xlu0 %v391, 80
      %v906 = vpop.permute.xlu0 %905
      %907 = vrot.lane.b32.xlu0 %v393, 80
      %v908 = vpop.permute.xlu0 %907
      %909 = vrot.lane.b32.xlu0 %v396, 80
      %v910 = vpop.permute.xlu0 %909
      %911 = vrot.lane.b32.xlu0 %v398, 80
      %v912 = vpop.permute.xlu0 %911
      %913 = vrot.lane.b32.xlu0 %v401, 80
      %v914 = vpop.permute.xlu0 %913
      %915 = vrot.lane.b32.xlu0 %v403, 80
      %v916 = vpop.permute.xlu0 %915
      %917 = vrot.lane.b32.xlu0 %v406, 80
      %v918 = vpop.permute.xlu0 %917
      %919 = vrot.lane.b32.xlu0 %v408, 80
      %v920 = vpop.permute.xlu0 %919
      %921 = vrot.lane.b32.xlu0 %v411, 80
      %v922 = vpop.permute.xlu0 %921
      %923 = vrot.lane.b32.xlu0 %v413, 80
      %v924 = vpop.permute.xlu0 %923
      %925 = vrot.lane.b32.xlu0 %v416, 80
      %v926 = vpop.permute.xlu0 %925
      %927 = vrot.lane.b32.xlu0 %v418, 80
      %v928 = vpop.permute.xlu0 %927
      %929 = vrot.lane.b32.xlu0 %v421, 80
      %v930 = vpop.permute.xlu0 %929
      %931 = vrot.lane.b32.xlu0 %v423, 80
      %v932 = vpop.permute.xlu0 %931
      %933 = vrot.lane.b32.xlu0 %v426, 80
      %v934 = vpop.permute.xlu0 %933
      %935 = vrot.lane.b32.xlu0 %v428, 80
      %v936 = vpop.permute.xlu0 %935
      %937 = vrot.lane.b32.xlu0 %v431, 80
      %v938 = vpop.permute.xlu0 %937
      %939 = vrot.lane.b32.xlu0 %v433, 80
      %v940 = vpop.permute.xlu0 %939
      %941 = vrot.lane.b32.xlu0 %v436, 80
      %v942 = vpop.permute.xlu0 %941
      %943 = vrot.lane.b32.xlu0 %v438, 80
      %v944 = vpop.permute.xlu0 %943
      %945 = vrot.lane.b32.xlu0 %v441, 80
      %v946 = vpop.permute.xlu0 %945
      %947 = vrot.lane.b32.xlu0 %v443, 80
      %v948 = vpop.permute.xlu0 %947
      %949 = vrot.lane.b32.xlu0 %v446, 80
      %v950 = vpop.permute.xlu0 %949
      %951 = vrot.lane.b32.xlu0 %v448, 80
      %v952 = vpop.permute.xlu0 %951
      %953 = vrot.lane.b32.xlu0 %v451, 80
      %v954 = vpop.permute.xlu0 %953
      %955 = vrot.lane.b32.xlu0 %v453, 80
      %v956 = vpop.permute.xlu0 %955
      %957 = vrot.lane.b32.xlu0 %v456, 80
      %v958 = vpop.permute.xlu0 %957
      %959 = vrot.lane.b32.xlu0 %v458, 80
      %v960 = vpop.permute.xlu0 %959
      %961 = vrot.lane.b32.xlu0 %v469, 80
      %v962 = vpop.permute.xlu0 %961
      %963 = vrot.lane.b32.xlu0 %v471, 80
      %v964 = vpop.permute.xlu0 %963
      %997 = vrot.lane.b32.xlu0 %v201, 96
      %v998 = vpop.permute.xlu0 %997
      %999 = vrot.lane.b32.xlu0 %v202, 96
      %v1000 = vpop.permute.xlu0 %999
      %1001 = vrot.lane.b32.xlu0 %v204, 96
      %v1002 = vpop.permute.xlu0 %1001
      %1003 = vrot.lane.b32.xlu0 %v205, 96
      %v1004 = vpop.permute.xlu0 %1003
      %1005 = vrot.lane.b32.xlu0 %v207, 96
      %v1006 = vpop.permute.xlu0 %1005
      %1007 = vrot.lane.b32.xlu0 %v208, 96
      %v1008 = vpop.permute.xlu0 %1007
      %1009 = vrot.lane.b32.xlu0 %v210, 96
      %v1010 = vpop.permute.xlu0 %1009
      %1011 = vrot.lane.b32.xlu0 %v211, 96
      %v1012 = vpop.permute.xlu0 %1011
      %1013 = vrot.lane.b32.xlu0 %v213, 96
      %v1014 = vpop.permute.xlu0 %1013
      %1015 = vrot.lane.b32.xlu0 %v214, 96
      %v1016 = vpop.permute.xlu0 %1015
      %1017 = vrot.lane.b32.xlu0 %v216, 96
      %v1018 = vpop.permute.xlu0 %1017
      %1019 = vrot.lane.b32.xlu0 %v217, 96
      %v1020 = vpop.permute.xlu0 %1019
      %1021 = vrot.lane.b32.xlu0 %v219, 96
      %v1022 = vpop.permute.xlu0 %1021
      %1023 = vrot.lane.b32.xlu0 %v220, 96
      %v1024 = vpop.permute.xlu0 %1023
      %1025 = vrot.lane.b32.xlu0 %v222, 96
      %v1026 = vpop.permute.xlu0 %1025
      %1027 = vrot.lane.b32.xlu0 %v223, 96
      %v1028 = vpop.permute.xlu0 %1027
      %1029 = vrot.lane.b32.xlu0 %v225, 96
      %v1030 = vpop.permute.xlu0 %1029
      %1031 = vrot.lane.b32.xlu0 %v226, 96
      %v1032 = vpop.permute.xlu0 %1031
      %1033 = vrot.lane.b32.xlu0 %v228, 96
      %v1034 = vpop.permute.xlu0 %1033
      %1035 = vrot.lane.b32.xlu0 %v229, 96
      %v1036 = vpop.permute.xlu0 %1035
      %1037 = vrot.lane.b32.xlu0 %v231, 96
      %v1038 = vpop.permute.xlu0 %1037
      %1039 = vrot.lane.b32.xlu0 %v232, 96
      %v1040 = vpop.permute.xlu0 %1039
      %1041 = vrot.lane.b32.xlu0 %v234, 96
      %v1042 = vpop.permute.xlu0 %1041
      %1043 = vrot.lane.b32.xlu0 %v235, 96
      %v1044 = vpop.permute.xlu0 %1043
      %1045 = vrot.lane.b32.xlu0 %v237, 96
      %v1046 = vpop.permute.xlu0 %1045
      %1047 = vrot.lane.b32.xlu0 %v238, 96
      %v1048 = vpop.permute.xlu0 %1047
      %1049 = vrot.lane.b32.xlu0 %v240, 96
      %v1050 = vpop.permute.xlu0 %1049
      %1051 = vrot.lane.b32.xlu0 %v241, 96
      %v1052 = vpop.permute.xlu0 %1051
      %1053 = vrot.lane.b32.xlu0 %v243, 96
      %v1054 = vpop.permute.xlu0 %1053
      %1055 = vrot.lane.b32.xlu0 %v244, 96
      %v1056 = vpop.permute.xlu0 %1055
      %1057 = vrot.lane.b32.xlu0 %v246, 96
      %v1058 = vpop.permute.xlu0 %1057
      %1059 = vrot.lane.b32.xlu0 %v247, 96
      %v1060 = vpop.permute.xlu0 %1059
      %1093 = vrot.lane.b32.xlu0 %v310, 112
      %v1094 = vpop.permute.xlu0 %1093
      %1095 = vrot.lane.b32.xlu0 %v312, 112
      %v1096 = vpop.permute.xlu0 %1095
      %1097 = vrot.lane.b32.xlu0 %v315, 112
      %v1098 = vpop.permute.xlu0 %1097
      %1099 = vrot.lane.b32.xlu0 %v317, 112
      %v1100 = vpop.permute.xlu0 %1099
      %1101 = vrot.lane.b32.xlu0 %v320, 112
      %v1102 = vpop.permute.xlu0 %1101
      %1103 = vrot.lane.b32.xlu0 %v322, 112
      %v1104 = vpop.permute.xlu0 %1103
      %1105 = vrot.lane.b32.xlu0 %v325, 112
      %v1106 = vpop.permute.xlu0 %1105
      %1107 = vrot.lane.b32.xlu0 %v327, 112
      %v1108 = vpop.permute.xlu0 %1107
      %1109 = vrot.lane.b32.xlu0 %v330, 112
      %v1110 = vpop.permute.xlu0 %1109
      %1111 = vrot.lane.b32.xlu0 %v332, 112
      %v1112 = vpop.permute.xlu0 %1111
      %1113 = vrot.lane.b32.xlu0 %v335, 112
      %v1114 = vpop.permute.xlu0 %1113
      %1115 = vrot.lane.b32.xlu0 %v337, 112
      %v1116 = vpop.permute.xlu0 %1115
      %1117 = vrot.lane.b32.xlu0 %v340, 112
      %v1118 = vpop.permute.xlu0 %1117
      %1119 = vrot.lane.b32.xlu0 %v342, 112
      %v1120 = vpop.permute.xlu0 %1119
      %1121 = vrot.lane.b32.xlu0 %v345, 112
      %v1122 = vpop.permute.xlu0 %1121
      %1123 = vrot.lane.b32.xlu0 %v347, 112
      %v1124 = vpop.permute.xlu0 %1123
      %1125 = vrot.lane.b32.xlu0 %v350, 112
      %v1126 = vpop.permute.xlu0 %1125
      %1127 = vrot.lane.b32.xlu0 %v352, 112
      %v1128 = vpop.permute.xlu0 %1127
      %1129 = vrot.lane.b32.xlu0 %v355, 112
      %v1130 = vpop.permute.xlu0 %1129
      %1131 = vrot.lane.b32.xlu0 %v357, 112
      %v1132 = vpop.permute.xlu0 %1131
      %1133 = vrot.lane.b32.xlu0 %v360, 112
      %v1134 = vpop.permute.xlu0 %1133
      %1135 = vrot.lane.b32.xlu0 %v362, 112
      %v1136 = vpop.permute.xlu0 %1135
      %1137 = vrot.lane.b32.xlu0 %v365, 112
      %v1138 = vpop.permute.xlu0 %1137
      %1139 = vrot.lane.b32.xlu0 %v367, 112
      %v1140 = vpop.permute.xlu0 %1139
      %1141 = vrot.lane.b32.xlu0 %v370, 112
      %v1142 = vpop.permute.xlu0 %1141
      %1143 = vrot.lane.b32.xlu0 %v372, 112
      %v1144 = vpop.permute.xlu0 %1143
      %1145 = vrot.lane.b32.xlu0 %v375, 112
      %v1146 = vpop.permute.xlu0 %1145
      %1147 = vrot.lane.b32.xlu0 %v377, 112
      %v1148 = vpop.permute.xlu0 %1147
      %1149 = vrot.lane.b32.xlu0 %v464, 112
      %v1150 = vpop.permute.xlu0 %1149
      %1151 = vrot.lane.b32.xlu0 %v466, 112
      %v1152 = vpop.permute.xlu0 %1151
      %1153 = vrot.lane.b32.xlu0 %v477, 112
      %v1154 = vpop.permute.xlu0 %1153
      %1155 = vrot.lane.b32.xlu0 %v479, 112
      %v1156 = vpop.permute.xlu0 %1155
      %vm1189 = vcmask 130048
      %v1190 = vsel %vm1189, %v195, %v518
      %v1191 = vsel %vm1189, %v196, %v520
      %v1192 = vsel %vm1189, %v198, %v522
      %v1193 = vsel %vm1189, %v199, %v524
      %v1194 = vsel %vm1189, %v201, %v526
      %v1195 = vsel %vm1189, %v202, %v528
      %v1196 = vsel %vm1189, %v204, %v530
      %v1197 = vsel %vm1189, %v205, %v532
      %v1198 = vsel %vm1189, %v207, %v534
      %v1199 = vsel %vm1189, %v208, %v536
      %v1200 = vsel %vm1189, %v210, %v538
      %v1201 = vsel %vm1189, %v211, %v540
      %v1202 = vsel %vm1189, %v213, %v542
      %v1203 = vsel %vm1189, %v214, %v544
      %v1204 = vsel %vm1189, %v216, %v546
      %v1205 = vsel %vm1189, %v217, %v548
      %v1206 = vsel %vm1189, %v219, %v550
      %v1207 = vsel %vm1189, %v220, %v552
      %v1208 = vsel %vm1189, %v222, %v554
      %v1209 = vsel %vm1189, %v223, %v556
      %v1210 = vsel %vm1189, %v225, %v558
      %v1211 = vsel %vm1189, %v226, %v560
      %v1212 = vsel %vm1189, %v228, %v562
      %v1213 = vsel %vm1189, %v229, %v564
      %v1214 = vsel %vm1189, %v231, %v566
      %v1215 = vsel %vm1189, %v232, %v568
      %v1216 = vsel %vm1189, %v234, %v570
      %v1217 = vsel %vm1189, %v235, %v572
      %v1218 = vsel %vm1189, %v237, %v574
      %v1219 = vsel %vm1189, %v238, %v576
      %v1220 = vsel %vm1189, %v240, %v578
      %v1221 = vsel %vm1189, %v241, %v580
      %vm1222 = vcmask 261120
      %v1223 = vsel %vm1222, %v1190, %v614
      %v1224 = vsel %vm1222, %v1191, %v616
      %v1225 = vsel %vm1222, %v1192, %v618
      %v1226 = vsel %vm1222, %v1193, %v620
      %v1227 = vsel %vm1222, %v1194, %v622
      %v1228 = vsel %vm1222, %v1195, %v624
      %v1229 = vsel %vm1222, %v1196, %v626
      %v1230 = vsel %vm1222, %v1197, %v628
      %v1231 = vsel %vm1222, %v1198, %v630
      %v1232 = vsel %vm1222, %v1199, %v632
      %v1233 = vsel %vm1222, %v1200, %v634
      %v1234 = vsel %vm1222, %v1201, %v636
      %v1235 = vsel %vm1222, %v1202, %v638
      %v1236 = vsel %vm1222, %v1203, %v640
      %v1237 = vsel %vm1222, %v1204, %v642
      %v1238 = vsel %vm1222, %v1205, %v644
      %v1239 = vsel %vm1222, %v1206, %v646
      %v1240 = vsel %vm1222, %v1207, %v648
      %v1241 = vsel %vm1222, %v1208, %v650
      %v1242 = vsel %vm1222, %v1209, %v652
      %v1243 = vsel %vm1222, %v1210, %v654
      %v1244 = vsel %vm1222, %v1211, %v656
      %v1245 = vsel %vm1222, %v1212, %v658
      %v1246 = vsel %vm1222, %v1213, %v660
      %v1247 = vsel %vm1222, %v1214, %v662
      %v1248 = vsel %vm1222, %v1215, %v664
      %v1249 = vsel %vm1222, %v1216, %v666
      %v1250 = vsel %vm1222, %v1217, %v668
      %v1251 = vsel %vm1222, %v1218, %v670
      %v1252 = vsel %vm1222, %v1219, %v672
      %v1253 = vsel %vm1222, %v1220, %v674
      %v1254 = vsel %vm1222, %v1221, %v676
      %vm1255 = vcmask 392192
      %v1256 = vsel %vm1255, %v1223, %v710
      %v1257 = vsel %vm1255, %v1224, %v712
      %v1258 = vsel %vm1255, %v1225, %v714
      %v1259 = vsel %vm1255, %v1226, %v716
      %v1260 = vsel %vm1255, %v1227, %v718
      %v1261 = vsel %vm1255, %v1228, %v720
      %v1262 = vsel %vm1255, %v1229, %v722
      %v1263 = vsel %vm1255, %v1230, %v724
      %v1264 = vsel %vm1255, %v1231, %v726
      %v1265 = vsel %vm1255, %v1232, %v728
      %v1266 = vsel %vm1255, %v1233, %v730
      %v1267 = vsel %vm1255, %v1234, %v732
      %v1268 = vsel %vm1255, %v1235, %v734
      %v1269 = vsel %vm1255, %v1236, %v736
      %v1270 = vsel %vm1255, %v1237, %v738
      %v1271 = vsel %vm1255, %v1238, %v740
      %v1272 = vsel %vm1255, %v1239, %v742
      %v1273 = vsel %vm1255, %v1240, %v744
      %v1274 = vsel %vm1255, %v1241, %v746
      %v1275 = vsel %vm1255, %v1242, %v748
      %v1276 = vsel %vm1255, %v1243, %v750
      %v1277 = vsel %vm1255, %v1244, %v752
      %v1278 = vsel %vm1255, %v1245, %v754
      %v1279 = vsel %vm1255, %v1246, %v756
      %v1280 = vsel %vm1255, %v1247, %v758
      %v1281 = vsel %vm1255, %v1248, %v760
      %v1282 = vsel %vm1255, %v1249, %v762
      %v1283 = vsel %vm1255, %v1250, %v764
      %v1284 = vsel %vm1255, %v1251, %v766
      %v1285 = vsel %vm1255, %v1252, %v768
      %v1286 = vsel %vm1255, %v1253, %v770
      %v1287 = vsel %vm1255, %v1254, %v772
      %vm1288 = vcmask 523264
      %v1289 = vsel %vm1288, %v1256, %v806
      %v1290 = vsel %vm1288, %v1257, %v808
      %v1291 = vsel %vm1288, %v1258, %v810
      %v1292 = vsel %vm1288, %v1259, %v812
      %v1293 = vsel %vm1288, %v1260, %v814
      %v1294 = vsel %vm1288, %v1261, %v816
      %v1295 = vsel %vm1288, %v1262, %v818
      %v1296 = vsel %vm1288, %v1263, %v820
      %v1297 = vsel %vm1288, %v1264, %v822
      %v1298 = vsel %vm1288, %v1265, %v824
      %v1299 = vsel %vm1288, %v1266, %v826
      %v1300 = vsel %vm1288, %v1267, %v828
      %v1301 = vsel %vm1288, %v1268, %v830
      %v1302 = vsel %vm1288, %v1269, %v832
      %v1303 = vsel %vm1288, %v1270, %v834
      %v1304 = vsel %vm1288, %v1271, %v836
      %v1305 = vsel %vm1288, %v1272, %v838
      %v1306 = vsel %vm1288, %v1273, %v840
      %v1307 = vsel %vm1288, %v1274, %v842
      %v1308 = vsel %vm1288, %v1275, %v844
      %v1309 = vsel %vm1288, %v1276, %v846
      %v1310 = vsel %vm1288, %v1277, %v848
      %v1311 = vsel %vm1288, %v1278, %v850
      %v1312 = vsel %vm1288, %v1279, %v852
      %v1313 = vsel %vm1288, %v1280, %v854
      %v1314 = vsel %vm1288, %v1281, %v856
      %v1315 = vsel %vm1288, %v1282, %v858
      %v1316 = vsel %vm1288, %v1283, %v860
      %v1317 = vsel %vm1288, %v1284, %v862
      %v1318 = vsel %vm1288, %v1285, %v864
      %v1319 = vsel %vm1288, %v1286, %v866
      %v1320 = vsel %vm1288, %v1287, %v868
      %vm1321 = vcmask 654336
      %v1322 = vsel %vm1321, %v1289, %v902
      %v1323 = vsel %vm1321, %v1290, %v904
      %v1324 = vsel %vm1321, %v1291, %v906
      %v1325 = vsel %vm1321, %v1292, %v908
      %v1326 = vsel %vm1321, %v1293, %v910
      %v1327 = vsel %vm1321, %v1294, %v912
      %v1328 = vsel %vm1321, %v1295, %v914
      %v1329 = vsel %vm1321, %v1296, %v916
      %v1330 = vsel %vm1321, %v1297, %v918
      %v1331 = vsel %vm1321, %v1298, %v920
      %v1332 = vsel %vm1321, %v1299, %v922
      %v1333 = vsel %vm1321, %v1300, %v924
      %v1334 = vsel %vm1321, %v1301, %v926
      %v1335 = vsel %vm1321, %v1302, %v928
      %v1336 = vsel %vm1321, %v1303, %v930
      %v1337 = vsel %vm1321, %v1304, %v932
      %v1338 = vsel %vm1321, %v1305, %v934
      %v1339 = vsel %vm1321, %v1306, %v936
      %v1340 = vsel %vm1321, %v1307, %v938
      %v1341 = vsel %vm1321, %v1308, %v940
      %v1342 = vsel %vm1321, %v1309, %v942
      %v1343 = vsel %vm1321, %v1310, %v944
      %v1344 = vsel %vm1321, %v1311, %v946
      %v1345 = vsel %vm1321, %v1312, %v948
      %v1346 = vsel %vm1321, %v1313, %v950
      %v1347 = vsel %vm1321, %v1314, %v952
      %v1348 = vsel %vm1321, %v1315, %v954
      %v1349 = vsel %vm1321, %v1316, %v956
      %v1350 = vsel %vm1321, %v1317, %v958
      %v1351 = vsel %vm1321, %v1318, %v960
      %v1352 = vsel %vm1321, %v1319, %v962
      %v1353 = vsel %vm1321, %v1320, %v964
      %vm1354 = vcmask 785408
      %v1355 = vsel %vm1354, %v1322, %v998
      %v1356 = vsel %vm1354, %v1323, %v1000
      %v1357 = vsel %vm1354, %v1324, %v1002
      %v1358 = vsel %vm1354, %v1325, %v1004
      %v1359 = vsel %vm1354, %v1326, %v1006
      %v1360 = vsel %vm1354, %v1327, %v1008
      %v1361 = vsel %vm1354, %v1328, %v1010
      %v1362 = vsel %vm1354, %v1329, %v1012
      %v1363 = vsel %vm1354, %v1330, %v1014
      %v1364 = vsel %vm1354, %v1331, %v1016
      %v1365 = vsel %vm1354, %v1332, %v1018
      %v1366 = vsel %vm1354, %v1333, %v1020
      %v1367 = vsel %vm1354, %v1334, %v1022
      %v1368 = vsel %vm1354, %v1335, %v1024
      %v1369 = vsel %vm1354, %v1336, %v1026
      %v1370 = vsel %vm1354, %v1337, %v1028
      %v1371 = vsel %vm1354, %v1338, %v1030
      %v1372 = vsel %vm1354, %v1339, %v1032
      %v1373 = vsel %vm1354, %v1340, %v1034
      %v1374 = vsel %vm1354, %v1341, %v1036
      %v1375 = vsel %vm1354, %v1342, %v1038
      %v1376 = vsel %vm1354, %v1343, %v1040
      %v1377 = vsel %vm1354, %v1344, %v1042
      %v1378 = vsel %vm1354, %v1345, %v1044
      %v1379 = vsel %vm1354, %v1346, %v1046
      %v1380 = vsel %vm1354, %v1347, %v1048
      %v1381 = vsel %vm1354, %v1348, %v1050
      %v1382 = vsel %vm1354, %v1349, %v1052
      %v1383 = vsel %vm1354, %v1350, %v1054
      %v1384 = vsel %vm1354, %v1351, %v1056
      %v1385 = vsel %vm1354, %v1352, %v1058
      %v1386 = vsel %vm1354, %v1353, %v1060
      %vm1387 = vcmask 916480
      %v1388 = vsel %vm1387, %v1355, %v1094
      %v1389 = vsel %vm1387, %v1356, %v1096
      %v1390 = vsel %vm1387, %v1357, %v1098
      %v1391 = vsel %vm1387, %v1358, %v1100
      %v1392 = vsel %vm1387, %v1359, %v1102
      %v1393 = vsel %vm1387, %v1360, %v1104
      %v1394 = vsel %vm1387, %v1361, %v1106
      %v1395 = vsel %vm1387, %v1362, %v1108
      %v1396 = vsel %vm1387, %v1363, %v1110
      %v1397 = vsel %vm1387, %v1364, %v1112
      %v1398 = vsel %vm1387, %v1365, %v1114
      %v1399 = vsel %vm1387, %v1366, %v1116
      %v1400 = vsel %vm1387, %v1367, %v1118
      %v1401 = vsel %vm1387, %v1368, %v1120
      %v1402 = vsel %vm1387, %v1369, %v1122
      %v1403 = vsel %vm1387, %v1370, %v1124
      %v1404 = vsel %vm1387, %v1371, %v1126
      %v1405 = vsel %vm1387, %v1372, %v1128
      %v1406 = vsel %vm1387, %v1373, %v1130
      %v1407 = vsel %vm1387, %v1374, %v1132
      %v1408 = vsel %vm1387, %v1375, %v1134
      %v1409 = vsel %vm1387, %v1376, %v1136
      %v1410 = vsel %vm1387, %v1377, %v1138
      %v1411 = vsel %vm1387, %v1378, %v1140
      %v1412 = vsel %vm1387, %v1379, %v1142
      %v1413 = vsel %vm1387, %v1380, %v1144
      %v1414 = vsel %vm1387, %v1381, %v1146
      %v1415 = vsel %vm1387, %v1382, %v1148
      %v1416 = vsel %vm1387, %v1383, %v1150
      %v1417 = vsel %vm1387, %v1384, %v1152
      %v1418 = vsel %vm1387, %v1385, %v1154
      %v1419 = vsel %vm1387, %v1386, %v1156
      %s1420 = scalar_lea.vmem %s169, 432
      %v1421 = vld [vmem:[%s1420] sm:$0xff]
      %v1422 = vld [vmem:[%s1420 + $0x8] sm:$0xff]
      %v1423 = vld [vmem:[%s1420 + $0x10] sm:$0x3]
      %v1424 = vld [vmem:[%s1420 + $0x18] sm:$0xff]
      %v1425 = vld [vmem:[%s1420 + $0x20] sm:$0xff]
      %v1426 = vld [vmem:[%s1420 + $0x28] sm:$0x3]
      %v1427 = vld [vmem:[%s1420 + $0x30] sm:$0xff]
      %v1428 = vld [vmem:[%s1420 + $0x38] sm:$0xff]
      %v1429 = vld [vmem:[%s1420 + $0x40] sm:$0x3]
      %v1430 = vld [vmem:[%s1420 + $0x48] sm:$0xff]
      %v1431 = vld [vmem:[%s1420 + $0x50] sm:$0xff]
      %v1432 = vld [vmem:[%s1420 + $0x58] sm:$0x3]
      %v1433 = vld [vmem:[%s1420 + $0x60] sm:$0xff]
      %v1434 = vld [vmem:[%s1420 + $0x68] sm:$0xff]
      %v1435 = vld [vmem:[%s1420 + $0x70] sm:$0x3]
      %v1436 = vld [vmem:[%s1420 + $0x78] sm:$0xff]
      %v1437 = vld [vmem:[%s1420 + $0x80] sm:$0xff]
      %v1438 = vld [vmem:[%s1420 + $0x88] sm:$0x3]
      %v1439 = vld [vmem:[%s1420 + $0x90] sm:$0xff]
      %v1440 = vld [vmem:[%s1420 + $0x98] sm:$0xff]
      %v1441 = vld [vmem:[%s1420 + $0xa0] sm:$0x3]
      %v1442 = vld [vmem:[%s1420 + $0xa8] sm:$0xff]
      %v1443 = vld [vmem:[%s1420 + $0xb0] sm:$0xff]
      %v1444 = vld [vmem:[%s1420 + $0xb8] sm:$0x3]
      %v1445 = vld [vmem:[%s1420 + $0xc0] sm:$0xff]
      %v1446 = vld [vmem:[%s1420 + $0xc8] sm:$0xff]
      %v1447 = vld [vmem:[%s1420 + $0xd0] sm:$0x3]
      %v1448 = vld [vmem:[%s1420 + $0xd8] sm:$0xff]
      %v1449 = vld [vmem:[%s1420 + $0xe0] sm:$0xff]
      %v1450 = vld [vmem:[%s1420 + $0xe8] sm:$0x3]
      %v1451 = vld [vmem:[%s1420 + $0xf0] sm:$0xff]
      %v1452 = vld [vmem:[%s1420 + $0xf8] sm:$0xff]
      %v1453 = vld [vmem:[%s1420 + $0x100] sm:$0x3]
      %v1454 = vld [vmem:[%s1420 + $0x108] sm:$0xff]
      %v1455 = vld [vmem:[%s1420 + $0x110] sm:$0xff]
      %v1456 = vld [vmem:[%s1420 + $0x118] sm:$0x3]
      %v1457 = vld [vmem:[%s1420 + $0x120] sm:$0xff]
      %v1458 = vld [vmem:[%s1420 + $0x128] sm:$0xff]
      %v1459 = vld [vmem:[%s1420 + $0x130] sm:$0x3]
      %v1460 = vld [vmem:[%s1420 + $0x138] sm:$0xff]
      %v1461 = vld [vmem:[%s1420 + $0x140] sm:$0xff]
      %v1462 = vld [vmem:[%s1420 + $0x148] sm:$0x3]
      %v1463 = vld [vmem:[%s1420 + $0x150] sm:$0xff]
      %v1464 = vld [vmem:[%s1420 + $0x158] sm:$0xff]
      %v1465 = vld [vmem:[%s1420 + $0x160] sm:$0x3]
      %v1466 = vld [vmem:[%s1420 + $0x168] sm:$0xff]
      %v1467 = vld [vmem:[%s1420 + $0x170] sm:$0xff]
      %v1468 = vld [vmem:[%s1420 + $0x178] sm:$0x3]
      %v1469 = vld [vmem:[%s1420 + $0x180] sm:$0xff]
      %v1470 = vld [vmem:[%s1420 + $0x188] sm:$0xff]
      %v1471 = vld [vmem:[%s1420 + $0x190] sm:$0x3]
      %v1472 = vld [vmem:[%s1420 + $0x198] sm:$0xff]
      %v1473 = vld [vmem:[%s1420 + $0x1a0] sm:$0xff]
      %v1474 = vld [vmem:[%s1420 + $0x1a8] sm:$0x3]
      %v1523 = vrot.slane %v1421, 1
      %v1524 = vrot.slane %v1422, 1
      %v1525 = vsel %vm297, %v1523, %v1524
      %v1526 = vrot.slane %v1423, 1
      %v1527 = vsel %vm297, %v1524, %v1526
      %v1528 = vrot.slane %v1424, 1
      %v1529 = vrot.slane %v1425, 1
      %v1530 = vsel %vm297, %v1528, %v1529
      %v1531 = vrot.slane %v1426, 1
      %v1532 = vsel %vm297, %v1529, %v1531
      %v1533 = vrot.slane %v1427, 1
      %v1534 = vrot.slane %v1428, 1
      %v1535 = vsel %vm297, %v1533, %v1534
      %v1536 = vrot.slane %v1429, 1
      %v1537 = vsel %vm297, %v1534, %v1536
      %v1538 = vrot.slane %v1430, 1
      %v1539 = vrot.slane %v1431, 1
      %v1540 = vsel %vm297, %v1538, %v1539
      %v1541 = vrot.slane %v1432, 1
      %v1542 = vsel %vm297, %v1539, %v1541
      %v1543 = vrot.slane %v1433, 1
      %v1544 = vrot.slane %v1434, 1
      %v1545 = vsel %vm297, %v1543, %v1544
      %v1546 = vrot.slane %v1435, 1
      %v1547 = vsel %vm297, %v1544, %v1546
      %v1548 = vrot.slane %v1436, 1
      %v1549 = vrot.slane %v1437, 1
      %v1550 = vsel %vm297, %v1548, %v1549
      %v1551 = vrot.slane %v1438, 1
      %v1552 = vsel %vm297, %v1549, %v1551
      %v1553 = vrot.slane %v1439, 1
      %v1554 = vrot.slane %v1440, 1
      %v1555 = vsel %vm297, %v1553, %v1554
      %v1556 = vrot.slane %v1441, 1
      %v1557 = vsel %vm297, %v1554, %v1556
      %v1558 = vrot.slane %v1442, 1
      %v1559 = vrot.slane %v1443, 1
      %v1560 = vsel %vm297, %v1558, %v1559
      %v1561 = vrot.slane %v1444, 1
      %v1562 = vsel %vm297, %v1559, %v1561
      %v1563 = vrot.slane %v1445, 1
      %v1564 = vrot.slane %v1446, 1
      %v1565 = vsel %vm297, %v1563, %v1564
      %v1566 = vrot.slane %v1447, 1
      %v1567 = vsel %vm297, %v1564, %v1566
      %v1568 = vrot.slane %v1448, 1
      %v1569 = vrot.slane %v1449, 1
      %v1570 = vsel %vm297, %v1568, %v1569
      %v1571 = vrot.slane %v1450, 1
      %v1572 = vsel %vm297, %v1569, %v1571
      %v1573 = vrot.slane %v1451, 1
      %v1574 = vrot.slane %v1452, 1
      %v1575 = vsel %vm297, %v1573, %v1574
      %v1576 = vrot.slane %v1453, 1
      %v1577 = vsel %vm297, %v1574, %v1576
      %v1578 = vrot.slane %v1454, 1
      %v1579 = vrot.slane %v1455, 1
      %v1580 = vsel %vm297, %v1578, %v1579
      %v1581 = vrot.slane %v1456, 1
      %v1582 = vsel %vm297, %v1579, %v1581
      %v1583 = vrot.slane %v1457, 1
      %v1584 = vrot.slane %v1458, 1
      %v1585 = vsel %vm297, %v1583, %v1584
      %v1586 = vrot.slane %v1459, 1
      %v1587 = vsel %vm297, %v1584, %v1586
      %v1588 = vrot.slane %v1460, 1
      %v1589 = vrot.slane %v1461, 1
      %v1590 = vsel %vm297, %v1588, %v1589
      %v1591 = vrot.slane %v1462, 1
      %v1592 = vsel %vm297, %v1589, %v1591
      %v1593 = vrot.slane %v1463, 1
      %v1594 = vrot.slane %v1464, 1
      %v1595 = vsel %vm297, %v1593, %v1594
      %v1596 = vrot.slane %v1465, 1
      %v1597 = vsel %vm297, %v1594, %v1596
      %v1598 = vrot.slane %v1466, 1
      %v1599 = vrot.slane %v1467, 1
      %v1600 = vsel %vm297, %v1598, %v1599
      %v1601 = vrot.slane %v1468, 1
      %v1602 = vsel %vm297, %v1599, %v1601
      %v1603 = vrot.slane %v1421, 2
      %v1604 = vrot.slane %v1422, 2
      %v1605 = vsel %vm378, %v1603, %v1604
      %v1606 = vrot.slane %v1423, 2
      %v1607 = vsel %vm378, %v1604, %v1606
      %v1608 = vrot.slane %v1424, 2
      %v1609 = vrot.slane %v1425, 2
      %v1610 = vsel %vm378, %v1608, %v1609
      %v1611 = vrot.slane %v1426, 2
      %v1612 = vsel %vm378, %v1609, %v1611
      %v1613 = vrot.slane %v1427, 2
      %v1614 = vrot.slane %v1428, 2
      %v1615 = vsel %vm378, %v1613, %v1614
      %v1616 = vrot.slane %v1429, 2
      %v1617 = vsel %vm378, %v1614, %v1616
      %v1618 = vrot.slane %v1430, 2
      %v1619 = vrot.slane %v1431, 2
      %v1620 = vsel %vm378, %v1618, %v1619
      %v1621 = vrot.slane %v1432, 2
      %v1622 = vsel %vm378, %v1619, %v1621
      %v1623 = vrot.slane %v1433, 2
      %v1624 = vrot.slane %v1434, 2
      %v1625 = vsel %vm378, %v1623, %v1624
      %v1626 = vrot.slane %v1435, 2
      %v1627 = vsel %vm378, %v1624, %v1626
      %v1628 = vrot.slane %v1436, 2
      %v1629 = vrot.slane %v1437, 2
      %v1630 = vsel %vm378, %v1628, %v1629
      %v1631 = vrot.slane %v1438, 2
      %v1632 = vsel %vm378, %v1629, %v1631
      %v1633 = vrot.slane %v1439, 2
      %v1634 = vrot.slane %v1440, 2
      %v1635 = vsel %vm378, %v1633, %v1634
      %v1636 = vrot.slane %v1441, 2
      %v1637 = vsel %vm378, %v1634, %v1636
      %v1638 = vrot.slane %v1442, 2
      %v1639 = vrot.slane %v1443, 2
      %v1640 = vsel %vm378, %v1638, %v1639
      %v1641 = vrot.slane %v1444, 2
      %v1642 = vsel %vm378, %v1639, %v1641
      %v1643 = vrot.slane %v1445, 2
      %v1644 = vrot.slane %v1446, 2
      %v1645 = vsel %vm378, %v1643, %v1644
      %v1646 = vrot.slane %v1447, 2
      %v1647 = vsel %vm378, %v1644, %v1646
      %v1648 = vrot.slane %v1448, 2
      %v1649 = vrot.slane %v1449, 2
      %v1650 = vsel %vm378, %v1648, %v1649
      %v1651 = vrot.slane %v1450, 2
      %v1652 = vsel %vm378, %v1649, %v1651
      %v1653 = vrot.slane %v1451, 2
      %v1654 = vrot.slane %v1452, 2
      %v1655 = vsel %vm378, %v1653, %v1654
      %v1656 = vrot.slane %v1453, 2
      %v1657 = vsel %vm378, %v1654, %v1656
      %v1658 = vrot.slane %v1454, 2
      %v1659 = vrot.slane %v1455, 2
      %v1660 = vsel %vm378, %v1658, %v1659
      %v1661 = vrot.slane %v1456, 2
      %v1662 = vsel %vm378, %v1659, %v1661
      %v1663 = vrot.slane %v1457, 2
      %v1664 = vrot.slane %v1458, 2
      %v1665 = vsel %vm378, %v1663, %v1664
      %v1666 = vrot.slane %v1459, 2
      %v1667 = vsel %vm378, %v1664, %v1666
      %v1668 = vrot.slane %v1460, 2
      %v1669 = vrot.slane %v1461, 2
      %v1670 = vsel %vm378, %v1668, %v1669
      %v1671 = vrot.slane %v1462, 2
      %v1672 = vsel %vm378, %v1669, %v1671
      %v1673 = vrot.slane %v1463, 2
      %v1674 = vrot.slane %v1464, 2
      %v1675 = vsel %vm378, %v1673, %v1674
      %v1676 = vrot.slane %v1465, 2
      %v1677 = vsel %vm378, %v1674, %v1676
      %v1678 = vrot.slane %v1466, 2
      %v1679 = vrot.slane %v1467, 2
      %v1680 = vsel %vm378, %v1678, %v1679
      %v1681 = vrot.slane %v1468, 2
      %v1682 = vsel %vm378, %v1679, %v1681
      %v1686 = vrot.slane %v1469, 1
      %v1687 = vrot.slane %v1470, 1
      %v1688 = vsel %vm297, %v1686, %v1687
      %v1689 = vrot.slane %v1471, 1
      %v1690 = vsel %vm297, %v1687, %v1689
      %v1691 = vrot.slane %v1469, 2
      %v1692 = vrot.slane %v1470, 2
      %v1693 = vsel %vm378, %v1691, %v1692
      %v1694 = vrot.slane %v1471, 2
      %v1695 = vsel %vm378, %v1692, %v1694
      %v1699 = vrot.slane %v1472, 1
      %v1700 = vrot.slane %v1473, 1
      %v1701 = vsel %vm297, %v1699, %v1700
      %v1702 = vrot.slane %v1474, 1
      %v1703 = vsel %vm297, %v1700, %v1702
      %v1704 = vrot.slane %v1472, 2
      %v1705 = vrot.slane %v1473, 2
      %v1706 = vsel %vm378, %v1704, %v1705
      %v1707 = vrot.slane %v1474, 2
      %v1708 = vsel %vm378, %v1705, %v1707
      %1741 = vrot.lane.b32.xlu0 %v1525, 16
      %v1742 = vpop.permute.xlu0 %1741
      %1743 = vrot.lane.b32.xlu0 %v1527, 16
      %v1744 = vpop.permute.xlu0 %1743
      %1745 = vrot.lane.b32.xlu0 %v1530, 16
      %v1746 = vpop.permute.xlu0 %1745
      %1747 = vrot.lane.b32.xlu0 %v1532, 16
      %v1748 = vpop.permute.xlu0 %1747
      %1749 = vrot.lane.b32.xlu0 %v1535, 16
      %v1750 = vpop.permute.xlu0 %1749
      %1751 = vrot.lane.b32.xlu0 %v1537, 16
      %v1752 = vpop.permute.xlu0 %1751
      %1753 = vrot.lane.b32.xlu0 %v1540, 16
      %v1754 = vpop.permute.xlu0 %1753
      %1755 = vrot.lane.b32.xlu0 %v1542, 16
      %v1756 = vpop.permute.xlu0 %1755
      %1757 = vrot.lane.b32.xlu0 %v1545, 16
      %v1758 = vpop.permute.xlu0 %1757
      %1759 = vrot.lane.b32.xlu0 %v1547, 16
      %v1760 = vpop.permute.xlu0 %1759
      %1761 = vrot.lane.b32.xlu0 %v1550, 16
      %v1762 = vpop.permute.xlu0 %1761
      %1763 = vrot.lane.b32.xlu0 %v1552, 16
      %v1764 = vpop.permute.xlu0 %1763
      %1765 = vrot.lane.b32.xlu0 %v1555, 16
      %v1766 = vpop.permute.xlu0 %1765
      %1767 = vrot.lane.b32.xlu0 %v1557, 16
      %v1768 = vpop.permute.xlu0 %1767
      %1769 = vrot.lane.b32.xlu0 %v1560, 16
      %v1770 = vpop.permute.xlu0 %1769
      %1771 = vrot.lane.b32.xlu0 %v1562, 16
      %v1772 = vpop.permute.xlu0 %1771
      %1773 = vrot.lane.b32.xlu0 %v1565, 16
      %v1774 = vpop.permute.xlu0 %1773
      %1775 = vrot.lane.b32.xlu0 %v1567, 16
      %v1776 = vpop.permute.xlu0 %1775
      %1777 = vrot.lane.b32.xlu0 %v1570, 16
      %v1778 = vpop.permute.xlu0 %1777
      %1779 = vrot.lane.b32.xlu0 %v1572, 16
      %v1780 = vpop.permute.xlu0 %1779
      %1781 = vrot.lane.b32.xlu0 %v1575, 16
      %v1782 = vpop.permute.xlu0 %1781
      %1783 = vrot.lane.b32.xlu0 %v1577, 16
      %v1784 = vpop.permute.xlu0 %1783
      %1785 = vrot.lane.b32.xlu0 %v1580, 16
      %v1786 = vpop.permute.xlu0 %1785
      %1787 = vrot.lane.b32.xlu0 %v1582, 16
      %v1788 = vpop.permute.xlu0 %1787
      %1789 = vrot.lane.b32.xlu0 %v1585, 16
      %v1790 = vpop.permute.xlu0 %1789
      %1791 = vrot.lane.b32.xlu0 %v1587, 16
      %v1792 = vpop.permute.xlu0 %1791
      %1793 = vrot.lane.b32.xlu0 %v1590, 16
      %v1794 = vpop.permute.xlu0 %1793
      %1795 = vrot.lane.b32.xlu0 %v1592, 16
      %v1796 = vpop.permute.xlu0 %1795
      %1797 = vrot.lane.b32.xlu0 %v1595, 16
      %v1798 = vpop.permute.xlu0 %1797
      %1799 = vrot.lane.b32.xlu0 %v1597, 16
      %v1800 = vpop.permute.xlu0 %1799
      %1801 = vrot.lane.b32.xlu0 %v1600, 16
      %v1802 = vpop.permute.xlu0 %1801
      %1803 = vrot.lane.b32.xlu0 %v1602, 16
      %v1804 = vpop.permute.xlu0 %1803
      %1837 = vrot.lane.b32.xlu0 %v1605, 32
      %v1838 = vpop.permute.xlu0 %1837
      %1839 = vrot.lane.b32.xlu0 %v1607, 32
      %v1840 = vpop.permute.xlu0 %1839
      %1841 = vrot.lane.b32.xlu0 %v1610, 32
      %v1842 = vpop.permute.xlu0 %1841
      %1843 = vrot.lane.b32.xlu0 %v1612, 32
      %v1844 = vpop.permute.xlu0 %1843
      %1845 = vrot.lane.b32.xlu0 %v1615, 32
      %v1846 = vpop.permute.xlu0 %1845
      %1847 = vrot.lane.b32.xlu0 %v1617, 32
      %v1848 = vpop.permute.xlu0 %1847
      %1849 = vrot.lane.b32.xlu0 %v1620, 32
      %v1850 = vpop.permute.xlu0 %1849
      %1851 = vrot.lane.b32.xlu0 %v1622, 32
      %v1852 = vpop.permute.xlu0 %1851
      %1853 = vrot.lane.b32.xlu0 %v1625, 32
      %v1854 = vpop.permute.xlu0 %1853
      %1855 = vrot.lane.b32.xlu0 %v1627, 32
      %v1856 = vpop.permute.xlu0 %1855
      %1857 = vrot.lane.b32.xlu0 %v1630, 32
      %v1858 = vpop.permute.xlu0 %1857
      %1859 = vrot.lane.b32.xlu0 %v1632, 32
      %v1860 = vpop.permute.xlu0 %1859
      %1861 = vrot.lane.b32.xlu0 %v1635, 32
      %v1862 = vpop.permute.xlu0 %1861
      %1863 = vrot.lane.b32.xlu0 %v1637, 32
      %v1864 = vpop.permute.xlu0 %1863
      %1865 = vrot.lane.b32.xlu0 %v1640, 32
      %v1866 = vpop.permute.xlu0 %1865
      %1867 = vrot.lane.b32.xlu0 %v1642, 32
      %v1868 = vpop.permute.xlu0 %1867
      %1869 = vrot.lane.b32.xlu0 %v1645, 32
      %v1870 = vpop.permute.xlu0 %1869
      %1871 = vrot.lane.b32.xlu0 %v1647, 32
      %v1872 = vpop.permute.xlu0 %1871
      %1873 = vrot.lane.b32.xlu0 %v1650, 32
      %v1874 = vpop.permute.xlu0 %1873
      %1875 = vrot.lane.b32.xlu0 %v1652, 32
      %v1876 = vpop.permute.xlu0 %1875
      %1877 = vrot.lane.b32.xlu0 %v1655, 32
      %v1878 = vpop.permute.xlu0 %1877
      %1879 = vrot.lane.b32.xlu0 %v1657, 32
      %v1880 = vpop.permute.xlu0 %1879
      %1881 = vrot.lane.b32.xlu0 %v1660, 32
      %v1882 = vpop.permute.xlu0 %1881
      %1883 = vrot.lane.b32.xlu0 %v1662, 32
      %v1884 = vpop.permute.xlu0 %1883
      %1885 = vrot.lane.b32.xlu0 %v1665, 32
      %v1886 = vpop.permute.xlu0 %1885
      %1887 = vrot.lane.b32.xlu0 %v1667, 32
      %v1888 = vpop.permute.xlu0 %1887
      %1889 = vrot.lane.b32.xlu0 %v1670, 32
      %v1890 = vpop.permute.xlu0 %1889
      %1891 = vrot.lane.b32.xlu0 %v1672, 32
      %v1892 = vpop.permute.xlu0 %1891
      %1893 = vrot.lane.b32.xlu0 %v1675, 32
      %v1894 = vpop.permute.xlu0 %1893
      %1895 = vrot.lane.b32.xlu0 %v1677, 32
      %v1896 = vpop.permute.xlu0 %1895
      %1897 = vrot.lane.b32.xlu0 %v1680, 32
      %v1898 = vpop.permute.xlu0 %1897
      %1899 = vrot.lane.b32.xlu0 %v1682, 32
      %v1900 = vpop.permute.xlu0 %1899
      %1933 = vrot.lane.b32.xlu0 %v1424, 48
      %v1934 = vpop.permute.xlu0 %1933
      %1935 = vrot.lane.b32.xlu0 %v1425, 48
      %v1936 = vpop.permute.xlu0 %1935
      %1937 = vrot.lane.b32.xlu0 %v1427, 48
      %v1938 = vpop.permute.xlu0 %1937
      %1939 = vrot.lane.b32.xlu0 %v1428, 48
      %v1940 = vpop.permute.xlu0 %1939
      %1941 = vrot.lane.b32.xlu0 %v1430, 48
      %v1942 = vpop.permute.xlu0 %1941
      %1943 = vrot.lane.b32.xlu0 %v1431, 48
      %v1944 = vpop.permute.xlu0 %1943
      %1945 = vrot.lane.b32.xlu0 %v1433, 48
      %v1946 = vpop.permute.xlu0 %1945
      %1947 = vrot.lane.b32.xlu0 %v1434, 48
      %v1948 = vpop.permute.xlu0 %1947
      %1949 = vrot.lane.b32.xlu0 %v1436, 48
      %v1950 = vpop.permute.xlu0 %1949
      %1951 = vrot.lane.b32.xlu0 %v1437, 48
      %v1952 = vpop.permute.xlu0 %1951
      %1953 = vrot.lane.b32.xlu0 %v1439, 48
      %v1954 = vpop.permute.xlu0 %1953
      %1955 = vrot.lane.b32.xlu0 %v1440, 48
      %v1956 = vpop.permute.xlu0 %1955
      %1957 = vrot.lane.b32.xlu0 %v1442, 48
      %v1958 = vpop.permute.xlu0 %1957
      %1959 = vrot.lane.b32.xlu0 %v1443, 48
      %v1960 = vpop.permute.xlu0 %1959
      %1961 = vrot.lane.b32.xlu0 %v1445, 48
      %v1962 = vpop.permute.xlu0 %1961
      %1963 = vrot.lane.b32.xlu0 %v1446, 48
      %v1964 = vpop.permute.xlu0 %1963
      %1965 = vrot.lane.b32.xlu0 %v1448, 48
      %v1966 = vpop.permute.xlu0 %1965
      %1967 = vrot.lane.b32.xlu0 %v1449, 48
      %v1968 = vpop.permute.xlu0 %1967
      %1969 = vrot.lane.b32.xlu0 %v1451, 48
      %v1970 = vpop.permute.xlu0 %1969
      %1971 = vrot.lane.b32.xlu0 %v1452, 48
      %v1972 = vpop.permute.xlu0 %1971
      %1973 = vrot.lane.b32.xlu0 %v1454, 48
      %v1974 = vpop.permute.xlu0 %1973
      %1975 = vrot.lane.b32.xlu0 %v1455, 48
      %v1976 = vpop.permute.xlu0 %1975
      %1977 = vrot.lane.b32.xlu0 %v1457, 48
      %v1978 = vpop.permute.xlu0 %1977
      %1979 = vrot.lane.b32.xlu0 %v1458, 48
      %v1980 = vpop.permute.xlu0 %1979
      %1981 = vrot.lane.b32.xlu0 %v1460, 48
      %v1982 = vpop.permute.xlu0 %1981
      %1983 = vrot.lane.b32.xlu0 %v1461, 48
      %v1984 = vpop.permute.xlu0 %1983
      %1985 = vrot.lane.b32.xlu0 %v1463, 48
      %v1986 = vpop.permute.xlu0 %1985
      %1987 = vrot.lane.b32.xlu0 %v1464, 48
      %v1988 = vpop.permute.xlu0 %1987
      %1989 = vrot.lane.b32.xlu0 %v1466, 48
      %v1990 = vpop.permute.xlu0 %1989
      %1991 = vrot.lane.b32.xlu0 %v1467, 48
      %v1992 = vpop.permute.xlu0 %1991
      %1993 = vrot.lane.b32.xlu0 %v1469, 48
      %v1994 = vpop.permute.xlu0 %1993
      %1995 = vrot.lane.b32.xlu0 %v1470, 48
      %v1996 = vpop.permute.xlu0 %1995
      %2029 = vrot.lane.b32.xlu0 %v1530, 64
      %v2030 = vpop.permute.xlu0 %2029
      %2031 = vrot.lane.b32.xlu0 %v1532, 64
      %v2032 = vpop.permute.xlu0 %2031
      %2033 = vrot.lane.b32.xlu0 %v1535, 64
      %v2034 = vpop.permute.xlu0 %2033
      %2035 = vrot.lane.b32.xlu0 %v1537, 64
      %v2036 = vpop.permute.xlu0 %2035
      %2037 = vrot.lane.b32.xlu0 %v1540, 64
      %v2038 = vpop.permute.xlu0 %2037
      %2039 = vrot.lane.b32.xlu0 %v1542, 64
      %v2040 = vpop.permute.xlu0 %2039
      %2041 = vrot.lane.b32.xlu0 %v1545, 64
      %v2042 = vpop.permute.xlu0 %2041
      %2043 = vrot.lane.b32.xlu0 %v1547, 64
      %v2044 = vpop.permute.xlu0 %2043
      %2045 = vrot.lane.b32.xlu0 %v1550, 64
      %v2046 = vpop.permute.xlu0 %2045
      %2047 = vrot.lane.b32.xlu0 %v1552, 64
      %v2048 = vpop.permute.xlu0 %2047
      %2049 = vrot.lane.b32.xlu0 %v1555, 64
      %v2050 = vpop.permute.xlu0 %2049
      %2051 = vrot.lane.b32.xlu0 %v1557, 64
      %v2052 = vpop.permute.xlu0 %2051
      %2053 = vrot.lane.b32.xlu0 %v1560, 64
      %v2054 = vpop.permute.xlu0 %2053
      %2055 = vrot.lane.b32.xlu0 %v1562, 64
      %v2056 = vpop.permute.xlu0 %2055
      %2057 = vrot.lane.b32.xlu0 %v1565, 64
      %v2058 = vpop.permute.xlu0 %2057
      %2059 = vrot.lane.b32.xlu0 %v1567, 64
      %v2060 = vpop.permute.xlu0 %2059
      %2061 = vrot.lane.b32.xlu0 %v1570, 64
      %v2062 = vpop.permute.xlu0 %2061
      %2063 = vrot.lane.b32.xlu0 %v1572, 64
      %v2064 = vpop.permute.xlu0 %2063
      %2065 = vrot.lane.b32.xlu0 %v1575, 64
      %v2066 = vpop.permute.xlu0 %2065
      %2067 = vrot.lane.b32.xlu0 %v1577, 64
      %v2068 = vpop.permute.xlu0 %2067
      %2069 = vrot.lane.b32.xlu0 %v1580, 64
      %v2070 = vpop.permute.xlu0 %2069
      %2071 = vrot.lane.b32.xlu0 %v1582, 64
      %v2072 = vpop.permute.xlu0 %2071
      %2073 = vrot.lane.b32.xlu0 %v1585, 64
      %v2074 = vpop.permute.xlu0 %2073
      %2075 = vrot.lane.b32.xlu0 %v1587, 64
      %v2076 = vpop.permute.xlu0 %2075
      %2077 = vrot.lane.b32.xlu0 %v1590, 64
      %v2078 = vpop.permute.xlu0 %2077
      %2079 = vrot.lane.b32.xlu0 %v1592, 64
      %v2080 = vpop.permute.xlu0 %2079
      %2081 = vrot.lane.b32.xlu0 %v1595, 64
      %v2082 = vpop.permute.xlu0 %2081
      %2083 = vrot.lane.b32.xlu0 %v1597, 64
      %v2084 = vpop.permute.xlu0 %2083
      %2085 = vrot.lane.b32.xlu0 %v1600, 64
      %v2086 = vpop.permute.xlu0 %2085
      %2087 = vrot.lane.b32.xlu0 %v1602, 64
      %v2088 = vpop.permute.xlu0 %2087
      %2089 = vrot.lane.b32.xlu0 %v1688, 64
      %v2090 = vpop.permute.xlu0 %2089
      %2091 = vrot.lane.b32.xlu0 %v1690, 64
      %v2092 = vpop.permute.xlu0 %2091
      %2125 = vrot.lane.b32.xlu0 %v1610, 80
      %v2126 = vpop.permute.xlu0 %2125
      %2127 = vrot.lane.b32.xlu0 %v1612, 80
      %v2128 = vpop.permute.xlu0 %2127
      %2129 = vrot.lane.b32.xlu0 %v1615, 80
      %v2130 = vpop.permute.xlu0 %2129
      %2131 = vrot.lane.b32.xlu0 %v1617, 80
      %v2132 = vpop.permute.xlu0 %2131
      %2133 = vrot.lane.b32.xlu0 %v1620, 80
      %v2134 = vpop.permute.xlu0 %2133
      %2135 = vrot.lane.b32.xlu0 %v1622, 80
      %v2136 = vpop.permute.xlu0 %2135
      %2137 = vrot.lane.b32.xlu0 %v1625, 80
      %v2138 = vpop.permute.xlu0 %2137
      %2139 = vrot.lane.b32.xlu0 %v1627, 80
      %v2140 = vpop.permute.xlu0 %2139
      %2141 = vrot.lane.b32.xlu0 %v1630, 80
      %v2142 = vpop.permute.xlu0 %2141
      %2143 = vrot.lane.b32.xlu0 %v1632, 80
      %v2144 = vpop.permute.xlu0 %2143
      %2145 = vrot.lane.b32.xlu0 %v1635, 80
      %v2146 = vpop.permute.xlu0 %2145
      %2147 = vrot.lane.b32.xlu0 %v1637, 80
      %v2148 = vpop.permute.xlu0 %2147
      %2149 = vrot.lane.b32.xlu0 %v1640, 80
      %v2150 = vpop.permute.xlu0 %2149
      %2151 = vrot.lane.b32.xlu0 %v1642, 80
      %v2152 = vpop.permute.xlu0 %2151
      %2153 = vrot.lane.b32.xlu0 %v1645, 80
      %v2154 = vpop.permute.xlu0 %2153
      %2155 = vrot.lane.b32.xlu0 %v1647, 80
      %v2156 = vpop.permute.xlu0 %2155
      %2157 = vrot.lane.b32.xlu0 %v1650, 80
      %v2158 = vpop.permute.xlu0 %2157
      %2159 = vrot.lane.b32.xlu0 %v1652, 80
      %v2160 = vpop.permute.xlu0 %2159
      %2161 = vrot.lane.b32.xlu0 %v1655, 80
      %v2162 = vpop.permute.xlu0 %2161
      %2163 = vrot.lane.b32.xlu0 %v1657, 80
      %v2164 = vpop.permute.xlu0 %2163
      %2165 = vrot.lane.b32.xlu0 %v1660, 80
      %v2166 = vpop.permute.xlu0 %2165
      %2167 = vrot.lane.b32.xlu0 %v1662, 80
      %v2168 = vpop.permute.xlu0 %2167
      %2169 = vrot.lane.b32.xlu0 %v1665, 80
      %v2170 = vpop.permute.xlu0 %2169
      %2171 = vrot.lane.b32.xlu0 %v1667, 80
      %v2172 = vpop.permute.xlu0 %2171
      %2173 = vrot.lane.b32.xlu0 %v1670, 80
      %v2174 = vpop.permute.xlu0 %2173
      %2175 = vrot.lane.b32.xlu0 %v1672, 80
      %v2176 = vpop.permute.xlu0 %2175
      %2177 = vrot.lane.b32.xlu0 %v1675, 80
      %v2178 = vpop.permute.xlu0 %2177
      %2179 = vrot.lane.b32.xlu0 %v1677, 80
      %v2180 = vpop.permute.xlu0 %2179
      %2181 = vrot.lane.b32.xlu0 %v1680, 80
      %v2182 = vpop.permute.xlu0 %2181
      %2183 = vrot.lane.b32.xlu0 %v1682, 80
      %v2184 = vpop.permute.xlu0 %2183
      %2185 = vrot.lane.b32.xlu0 %v1693, 80
      %v2186 = vpop.permute.xlu0 %2185
      %2187 = vrot.lane.b32.xlu0 %v1695, 80
      %v2188 = vpop.permute.xlu0 %2187
      %2221 = vrot.lane.b32.xlu0 %v1427, 96
      %v2222 = vpop.permute.xlu0 %2221
      %2223 = vrot.lane.b32.xlu0 %v1428, 96
      %v2224 = vpop.permute.xlu0 %2223
      %2225 = vrot.lane.b32.xlu0 %v1430, 96
      %v2226 = vpop.permute.xlu0 %2225
      %2227 = vrot.lane.b32.xlu0 %v1431, 96
      %v2228 = vpop.permute.xlu0 %2227
      %2229 = vrot.lane.b32.xlu0 %v1433, 96
      %v2230 = vpop.permute.xlu0 %2229
      %2231 = vrot.lane.b32.xlu0 %v1434, 96
      %v2232 = vpop.permute.xlu0 %2231
      %2233 = vrot.lane.b32.xlu0 %v1436, 96
      %v2234 = vpop.permute.xlu0 %2233
      %2235 = vrot.lane.b32.xlu0 %v1437, 96
      %v2236 = vpop.permute.xlu0 %2235
      %2237 = vrot.lane.b32.xlu0 %v1439, 96
      %v2238 = vpop.permute.xlu0 %2237
      %2239 = vrot.lane.b32.xlu0 %v1440, 96
      %v2240 = vpop.permute.xlu0 %2239
      %2241 = vrot.lane.b32.xlu0 %v1442, 96
      %v2242 = vpop.permute.xlu0 %2241
      %2243 = vrot.lane.b32.xlu0 %v1443, 96
      %v2244 = vpop.permute.xlu0 %2243
      %2245 = vrot.lane.b32.xlu0 %v1445, 96
      %v2246 = vpop.permute.xlu0 %2245
      %2247 = vrot.lane.b32.xlu0 %v1446, 96
      %v2248 = vpop.permute.xlu0 %2247
      %2249 = vrot.lane.b32.xlu0 %v1448, 96
      %v2250 = vpop.permute.xlu0 %2249
      %2251 = vrot.lane.b32.xlu0 %v1449, 96
      %v2252 = vpop.permute.xlu0 %2251
      %2253 = vrot.lane.b32.xlu0 %v1451, 96
      %v2254 = vpop.permute.xlu0 %2253
      %2255 = vrot.lane.b32.xlu0 %v1452, 96
      %v2256 = vpop.permute.xlu0 %2255
      %2257 = vrot.lane.b32.xlu0 %v1454, 96
      %v2258 = vpop.permute.xlu0 %2257
      %2259 = vrot.lane.b32.xlu0 %v1455, 96
      %v2260 = vpop.permute.xlu0 %2259
      %2261 = vrot.lane.b32.xlu0 %v1457, 96
      %v2262 = vpop.permute.xlu0 %2261
      %2263 = vrot.lane.b32.xlu0 %v1458, 96
      %v2264 = vpop.permute.xlu0 %2263
      %2265 = vrot.lane.b32.xlu0 %v1460, 96
      %v2266 = vpop.permute.xlu0 %2265
      %2267 = vrot.lane.b32.xlu0 %v1461, 96
      %v2268 = vpop.permute.xlu0 %2267
      %2269 = vrot.lane.b32.xlu0 %v1463, 96
      %v2270 = vpop.permute.xlu0 %2269
      %2271 = vrot.lane.b32.xlu0 %v1464, 96
      %v2272 = vpop.permute.xlu0 %2271
      %2273 = vrot.lane.b32.xlu0 %v1466, 96
      %v2274 = vpop.permute.xlu0 %2273
      %2275 = vrot.lane.b32.xlu0 %v1467, 96
      %v2276 = vpop.permute.xlu0 %2275
      %2277 = vrot.lane.b32.xlu0 %v1469, 96
      %v2278 = vpop.permute.xlu0 %2277
      %2279 = vrot.lane.b32.xlu0 %v1470, 96
      %v2280 = vpop.permute.xlu0 %2279
      %2281 = vrot.lane.b32.xlu0 %v1472, 96
      %v2282 = vpop.permute.xlu0 %2281
      %2283 = vrot.lane.b32.xlu0 %v1473, 96
      %v2284 = vpop.permute.xlu0 %2283
      %2317 = vrot.lane.b32.xlu0 %v1535, 112
      %v2318 = vpop.permute.xlu0 %2317
      %2319 = vrot.lane.b32.xlu0 %v1537, 112
      %v2320 = vpop.permute.xlu0 %2319
      %2321 = vrot.lane.b32.xlu0 %v1540, 112
      %v2322 = vpop.permute.xlu0 %2321
      %2323 = vrot.lane.b32.xlu0 %v1542, 112
      %v2324 = vpop.permute.xlu0 %2323
      %2325 = vrot.lane.b32.xlu0 %v1545, 112
      %v2326 = vpop.permute.xlu0 %2325
      %2327 = vrot.lane.b32.xlu0 %v1547, 112
      %v2328 = vpop.permute.xlu0 %2327
      %2329 = vrot.lane.b32.xlu0 %v1550, 112
      %v2330 = vpop.permute.xlu0 %2329
      %2331 = vrot.lane.b32.xlu0 %v1552, 112
      %v2332 = vpop.permute.xlu0 %2331
      %2333 = vrot.lane.b32.xlu0 %v1555, 112
      %v2334 = vpop.permute.xlu0 %2333
      %2335 = vrot.lane.b32.xlu0 %v1557, 112
      %v2336 = vpop.permute.xlu0 %2335
      %2337 = vrot.lane.b32.xlu0 %v1560, 112
      %v2338 = vpop.permute.xlu0 %2337
      %2339 = vrot.lane.b32.xlu0 %v1562, 112
      %v2340 = vpop.permute.xlu0 %2339
      %2341 = vrot.lane.b32.xlu0 %v1565, 112
      %v2342 = vpop.permute.xlu0 %2341
      %2343 = vrot.lane.b32.xlu0 %v1567, 112
      %v2344 = vpop.permute.xlu0 %2343
      %2345 = vrot.lane.b32.xlu0 %v1570, 112
      %v2346 = vpop.permute.xlu0 %2345
      %2347 = vrot.lane.b32.xlu0 %v1572, 112
      %v2348 = vpop.permute.xlu0 %2347
      %2349 = vrot.lane.b32.xlu0 %v1575, 112
      %v2350 = vpop.permute.xlu0 %2349
      %2351 = vrot.lane.b32.xlu0 %v1577, 112
      %v2352 = vpop.permute.xlu0 %2351
      %2353 = vrot.lane.b32.xlu0 %v1580, 112
      %v2354 = vpop.permute.xlu0 %2353
      %2355 = vrot.lane.b32.xlu0 %v1582, 112
      %v2356 = vpop.permute.xlu0 %2355
      %2357 = vrot.lane.b32.xlu0 %v1585, 112
      %v2358 = vpop.permute.xlu0 %2357
      %2359 = vrot.lane.b32.xlu0 %v1587, 112
      %v2360 = vpop.permute.xlu0 %2359
      %2361 = vrot.lane.b32.xlu0 %v1590, 112
      %v2362 = vpop.permute.xlu0 %2361
      %2363 = vrot.lane.b32.xlu0 %v1592, 112
      %v2364 = vpop.permute.xlu0 %2363
      %2365 = vrot.lane.b32.xlu0 %v1595, 112
      %v2366 = vpop.permute.xlu0 %2365
      %2367 = vrot.lane.b32.xlu0 %v1597, 112
      %v2368 = vpop.permute.xlu0 %2367
      %2369 = vrot.lane.b32.xlu0 %v1600, 112
      %v2370 = vpop.permute.xlu0 %2369
      %2371 = vrot.lane.b32.xlu0 %v1602, 112
      %v2372 = vpop.permute.xlu0 %2371
      %2373 = vrot.lane.b32.xlu0 %v1688, 112
      %v2374 = vpop.permute.xlu0 %2373
      %2375 = vrot.lane.b32.xlu0 %v1690, 112
      %v2376 = vpop.permute.xlu0 %2375
      %2377 = vrot.lane.b32.xlu0 %v1701, 112
      %v2378 = vpop.permute.xlu0 %2377
      %2379 = vrot.lane.b32.xlu0 %v1703, 112
      %v2380 = vpop.permute.xlu0 %2379
      %v2413 = vsel %vm1189, %v1421, %v1742
      %v2414 = vsel %vm1189, %v1422, %v1744
      %v2415 = vsel %vm1189, %v1424, %v1746
      %v2416 = vsel %vm1189, %v1425, %v1748
      %v2417 = vsel %vm1189, %v1427, %v1750
      %v2418 = vsel %vm1189, %v1428, %v1752
      %v2419 = vsel %vm1189, %v1430, %v1754
      %v2420 = vsel %vm1189, %v1431, %v1756
      %v2421 = vsel %vm1189, %v1433, %v1758
      %v2422 = vsel %vm1189, %v1434, %v1760
      %v2423 = vsel %vm1189, %v1436, %v1762
      %v2424 = vsel %vm1189, %v1437, %v1764
      %v2425 = vsel %vm1189, %v1439, %v1766
      %v2426 = vsel %vm1189, %v1440, %v1768
      %v2427 = vsel %vm1189, %v1442, %v1770
      %v2428 = vsel %vm1189, %v1443, %v1772
      %v2429 = vsel %vm1189, %v1445, %v1774
      %v2430 = vsel %vm1189, %v1446, %v1776
      %v2431 = vsel %vm1189, %v1448, %v1778
      %v2432 = vsel %vm1189, %v1449, %v1780
      %v2433 = vsel %vm1189, %v1451, %v1782
      %v2434 = vsel %vm1189, %v1452, %v1784
      %v2435 = vsel %vm1189, %v1454, %v1786
      %v2436 = vsel %vm1189, %v1455, %v1788
      %v2437 = vsel %vm1189, %v1457, %v1790
      %v2438 = vsel %vm1189, %v1458, %v1792
      %v2439 = vsel %vm1189, %v1460, %v1794
      %v2440 = vsel %vm1189, %v1461, %v1796
      %v2441 = vsel %vm1189, %v1463, %v1798
      %v2442 = vsel %vm1189, %v1464, %v1800
      %v2443 = vsel %vm1189, %v1466, %v1802
      %v2444 = vsel %vm1189, %v1467, %v1804
      %v2445 = vsel %vm1222, %v2413, %v1838
      %v2446 = vsel %vm1222, %v2414, %v1840
      %v2447 = vsel %vm1222, %v2415, %v1842
      %v2448 = vsel %vm1222, %v2416, %v1844
      %v2449 = vsel %vm1222, %v2417, %v1846
      %v2450 = vsel %vm1222, %v2418, %v1848
      %v2451 = vsel %vm1222, %v2419, %v1850
      %v2452 = vsel %vm1222, %v2420, %v1852
      %v2453 = vsel %vm1222, %v2421, %v1854
      %v2454 = vsel %vm1222, %v2422, %v1856
      %v2455 = vsel %vm1222, %v2423, %v1858
      %v2456 = vsel %vm1222, %v2424, %v1860
      %v2457 = vsel %vm1222, %v2425, %v1862
      %v2458 = vsel %vm1222, %v2426, %v1864
      %v2459 = vsel %vm1222, %v2427, %v1866
      %v2460 = vsel %vm1222, %v2428, %v1868
      %v2461 = vsel %vm1222, %v2429, %v1870
      %v2462 = vsel %vm1222, %v2430, %v1872
      %v2463 = vsel %vm1222, %v2431, %v1874
      %v2464 = vsel %vm1222, %v2432, %v1876
      %v2465 = vsel %vm1222, %v2433, %v1878
      %v2466 = vsel %vm1222, %v2434, %v1880
      %v2467 = vsel %vm1222, %v2435, %v1882
      %v2468 = vsel %vm1222, %v2436, %v1884
      %v2469 = vsel %vm1222, %v2437, %v1886
      %v2470 = vsel %vm1222, %v2438, %v1888
      %v2471 = vsel %vm1222, %v2439, %v1890
      %v2472 = vsel %vm1222, %v2440, %v1892
      %v2473 = vsel %vm1222, %v2441, %v1894
      %v2474 = vsel %vm1222, %v2442, %v1896
      %v2475 = vsel %vm1222, %v2443, %v1898
      %v2476 = vsel %vm1222, %v2444, %v1900
      %v2477 = vsel %vm1255, %v2445, %v1934
      %v2478 = vsel %vm1255, %v2446, %v1936
      %v2479 = vsel %vm1255, %v2447, %v1938
      %v2480 = vsel %vm1255, %v2448, %v1940
      %v2481 = vsel %vm1255, %v2449, %v1942
      %v2482 = vsel %vm1255, %v2450, %v1944
      %v2483 = vsel %vm1255, %v2451, %v1946
      %v2484 = vsel %vm1255, %v2452, %v1948
      %v2485 = vsel %vm1255, %v2453, %v1950
      %v2486 = vsel %vm1255, %v2454, %v1952
      %v2487 = vsel %vm1255, %v2455, %v1954
      %v2488 = vsel %vm1255, %v2456, %v1956
      %v2489 = vsel %vm1255, %v2457, %v1958
      %v2490 = vsel %vm1255, %v2458, %v1960
      %v2491 = vsel %vm1255, %v2459, %v1962
      %v2492 = vsel %vm1255, %v2460, %v1964
      %v2493 = vsel %vm1255, %v2461, %v1966
      %v2494 = vsel %vm1255, %v2462, %v1968
      %v2495 = vsel %vm1255, %v2463, %v1970
      %v2496 = vsel %vm1255, %v2464, %v1972
      %v2497 = vsel %vm1255, %v2465, %v1974
      %v2498 = vsel %vm1255, %v2466, %v1976
      %v2499 = vsel %vm1255, %v2467, %v1978
      %v2500 = vsel %vm1255, %v2468, %v1980
      %v2501 = vsel %vm1255, %v2469, %v1982
      %v2502 = vsel %vm1255, %v2470, %v1984
      %v2503 = vsel %vm1255, %v2471, %v1986
      %v2504 = vsel %vm1255, %v2472, %v1988
      %v2505 = vsel %vm1255, %v2473, %v1990
      %v2506 = vsel %vm1255, %v2474, %v1992
      %v2507 = vsel %vm1255, %v2475, %v1994
      %v2508 = vsel %vm1255, %v2476, %v1996
      %v2509 = vsel %vm1288, %v2477, %v2030
      %v2510 = vsel %vm1288, %v2478, %v2032
      %v2511 = vsel %vm1288, %v2479, %v2034
      %v2512 = vsel %vm1288, %v2480, %v2036
      %v2513 = vsel %vm1288, %v2481, %v2038
      %v2514 = vsel %vm1288, %v2482, %v2040
      %v2515 = vsel %vm1288, %v2483, %v2042
      %v2516 = vsel %vm1288, %v2484, %v2044
      %v2517 = vsel %vm1288, %v2485, %v2046
      %v2518 = vsel %vm1288, %v2486, %v2048
      %v2519 = vsel %vm1288, %v2487, %v2050
      %v2520 = vsel %vm1288, %v2488, %v2052
      %v2521 = vsel %vm1288, %v2489, %v2054
      %v2522 = vsel %vm1288, %v2490, %v2056
      %v2523 = vsel %vm1288, %v2491, %v2058
      %v2524 = vsel %vm1288, %v2492, %v2060
      %v2525 = vsel %vm1288, %v2493, %v2062
      %v2526 = vsel %vm1288, %v2494, %v2064
      %v2527 = vsel %vm1288, %v2495, %v2066
      %v2528 = vsel %vm1288, %v2496, %v2068
      %v2529 = vsel %vm1288, %v2497, %v2070
      %v2530 = vsel %vm1288, %v2498, %v2072
      %v2531 = vsel %vm1288, %v2499, %v2074
      %v2532 = vsel %vm1288, %v2500, %v2076
      %v2533 = vsel %vm1288, %v2501, %v2078
      %v2534 = vsel %vm1288, %v2502, %v2080
      %v2535 = vsel %vm1288, %v2503, %v2082
      %v2536 = vsel %vm1288, %v2504, %v2084
      %v2537 = vsel %vm1288, %v2505, %v2086
      %v2538 = vsel %vm1288, %v2506, %v2088
      %v2539 = vsel %vm1288, %v2507, %v2090
      %v2540 = vsel %vm1288, %v2508, %v2092
      %v2541 = vsel %vm1321, %v2509, %v2126
      %v2542 = vsel %vm1321, %v2510, %v2128
      %v2543 = vsel %vm1321, %v2511, %v2130
      %v2544 = vsel %vm1321, %v2512, %v2132
      %v2545 = vsel %vm1321, %v2513, %v2134
      %v2546 = vsel %vm1321, %v2514, %v2136
      %v2547 = vsel %vm1321, %v2515, %v2138
      %v2548 = vsel %vm1321, %v2516, %v2140
      %v2549 = vsel %vm1321, %v2517, %v2142
      %v2550 = vsel %vm1321, %v2518, %v2144
      %v2551 = vsel %vm1321, %v2519, %v2146
      %v2552 = vsel %vm1321, %v2520, %v2148
      %v2553 = vsel %vm1321, %v2521, %v2150
      %v2554 = vsel %vm1321, %v2522, %v2152
      %v2555 = vsel %vm1321, %v2523, %v2154
      %v2556 = vsel %vm1321, %v2524, %v2156
      %v2557 = vsel %vm1321, %v2525, %v2158
      %v2558 = vsel %vm1321, %v2526, %v2160
      %v2559 = vsel %vm1321, %v2527, %v2162
      %v2560 = vsel %vm1321, %v2528, %v2164
      %v2561 = vsel %vm1321, %v2529, %v2166
      %v2562 = vsel %vm1321, %v2530, %v2168
      %v2563 = vsel %vm1321, %v2531, %v2170
      %v2564 = vsel %vm1321, %v2532, %v2172
      %v2565 = vsel %vm1321, %v2533, %v2174
      %v2566 = vsel %vm1321, %v2534, %v2176
      %v2567 = vsel %vm1321, %v2535, %v2178
      %v2568 = vsel %vm1321, %v2536, %v2180
      %v2569 = vsel %vm1321, %v2537, %v2182
      %v2570 = vsel %vm1321, %v2538, %v2184
      %v2571 = vsel %vm1321, %v2539, %v2186
      %v2572 = vsel %vm1321, %v2540, %v2188
      %v2573 = vsel %vm1354, %v2541, %v2222
      %v2574 = vsel %vm1354, %v2542, %v2224
      %v2575 = vsel %vm1354, %v2543, %v2226
      %v2576 = vsel %vm1354, %v2544, %v2228
      %v2577 = vsel %vm1354, %v2545, %v2230
      %v2578 = vsel %vm1354, %v2546, %v2232
      %v2579 = vsel %vm1354, %v2547, %v2234
      %v2580 = vsel %vm1354, %v2548, %v2236
      %v2581 = vsel %vm1354, %v2549, %v2238
      %v2582 = vsel %vm1354, %v2550, %v2240
      %v2583 = vsel %vm1354, %v2551, %v2242
      %v2584 = vsel %vm1354, %v2552, %v2244
      %v2585 = vsel %vm1354, %v2553, %v2246
      %v2586 = vsel %vm1354, %v2554, %v2248
      %v2587 = vsel %vm1354, %v2555, %v2250
      %v2588 = vsel %vm1354, %v2556, %v2252
      %v2589 = vsel %vm1354, %v2557, %v2254
      %v2590 = vsel %vm1354, %v2558, %v2256
      %v2591 = vsel %vm1354, %v2559, %v2258
      %v2592 = vsel %vm1354, %v2560, %v2260
      %v2593 = vsel %vm1354, %v2561, %v2262
      %v2594 = vsel %vm1354, %v2562, %v2264
      %v2595 = vsel %vm1354, %v2563, %v2266
      %v2596 = vsel %vm1354, %v2564, %v2268
      %v2597 = vsel %vm1354, %v2565, %v2270
      %v2598 = vsel %vm1354, %v2566, %v2272
      %v2599 = vsel %vm1354, %v2567, %v2274
      %v2600 = vsel %vm1354, %v2568, %v2276
      %v2601 = vsel %vm1354, %v2569, %v2278
      %v2602 = vsel %vm1354, %v2570, %v2280
      %v2603 = vsel %vm1354, %v2571, %v2282
      %v2604 = vsel %vm1354, %v2572, %v2284
      %v2605 = vsel %vm1387, %v2573, %v2318
      %v2606 = vsel %vm1387, %v2574, %v2320
      %v2607 = vsel %vm1387, %v2575, %v2322
      %v2608 = vsel %vm1387, %v2576, %v2324
      %v2609 = vsel %vm1387, %v2577, %v2326
      %v2610 = vsel %vm1387, %v2578, %v2328
      %v2611 = vsel %vm1387, %v2579, %v2330
      %v2612 = vsel %vm1387, %v2580, %v2332
      %v2613 = vsel %vm1387, %v2581, %v2334
      %v2614 = vsel %vm1387, %v2582, %v2336
      %v2615 = vsel %vm1387, %v2583, %v2338
      %v2616 = vsel %vm1387, %v2584, %v2340
      %v2617 = vsel %vm1387, %v2585, %v2342
      %v2618 = vsel %vm1387, %v2586, %v2344
      %v2619 = vsel %vm1387, %v2587, %v2346
      %v2620 = vsel %vm1387, %v2588, %v2348
      %v2621 = vsel %vm1387, %v2589, %v2350
      %v2622 = vsel %vm1387, %v2590, %v2352
      %v2623 = vsel %vm1387, %v2591, %v2354
      %v2624 = vsel %vm1387, %v2592, %v2356
      %v2625 = vsel %vm1387, %v2593, %v2358
      %v2626 = vsel %vm1387, %v2594, %v2360
      %v2627 = vsel %vm1387, %v2595, %v2362
      %v2628 = vsel %vm1387, %v2596, %v2364
      %v2629 = vsel %vm1387, %v2597, %v2366
      %v2630 = vsel %vm1387, %v2598, %v2368
      %v2631 = vsel %vm1387, %v2599, %v2370
      %v2632 = vsel %vm1387, %v2600, %v2372
      %v2633 = vsel %vm1387, %v2601, %v2374
      %v2634 = vsel %vm1387, %v2602, %v2376
      %v2635 = vsel %vm1387, %v2603, %v2378
      %v2636 = vsel %vm1387, %v2604, %v2380
      %v2637 = vpack.c.bf16 %v1389, %v1388
      %v2638 = vpack.c.bf16 %v393, %v391
      %v2639 = vpack.c.bf16 %v1391, %v1390
      %v2640 = vpack.c.bf16 %v398, %v396
      %v2641 = vpack.c.bf16 %v1393, %v1392
      %v2642 = vpack.c.bf16 %v403, %v401
      %v2643 = vpack.c.bf16 %v1395, %v1394
      %v2644 = vpack.c.bf16 %v408, %v406
      %v2645 = vpack.c.bf16 %v1397, %v1396
      %v2646 = vpack.c.bf16 %v413, %v411
      %v2647 = vpack.c.bf16 %v1399, %v1398
      %v2648 = vpack.c.bf16 %v418, %v416
      %v2649 = vpack.c.bf16 %v1401, %v1400
      %v2650 = vpack.c.bf16 %v423, %v421
      %v2651 = vpack.c.bf16 %v1403, %v1402
      %v2652 = vpack.c.bf16 %v428, %v426
      %v2653 = vpack.c.bf16 %v1405, %v1404
      %v2654 = vpack.c.bf16 %v433, %v431
      %v2655 = vpack.c.bf16 %v1407, %v1406
      %v2656 = vpack.c.bf16 %v438, %v436
      %v2657 = vpack.c.bf16 %v1409, %v1408
      %v2658 = vpack.c.bf16 %v443, %v441
      %v2659 = vpack.c.bf16 %v1411, %v1410
      %v2660 = vpack.c.bf16 %v448, %v446
      %v2661 = vpack.c.bf16 %v1413, %v1412
      %v2662 = vpack.c.bf16 %v453, %v451
      %v2663 = vpack.c.bf16 %v1415, %v1414
      %v2664 = vpack.c.bf16 %v458, %v456
      %v2665 = vpack.c.bf16 %v1417, %v1416
      %v2666 = vpack.c.bf16 %v471, %v469
      %v2667 = vpack.c.bf16 %v1419, %v1418
      %v2668 = vpack.c.bf16 %v484, %v482
      %v2669 = vpack.c.bf16 %v2606, %v2605
      %v2670 = vpack.c.bf16 %v1617, %v1615
      %v2671 = vpack.c.bf16 %v2608, %v2607
      %v2672 = vpack.c.bf16 %v1622, %v1620
      %v2673 = vpack.c.bf16 %v2610, %v2609
      %v2674 = vpack.c.bf16 %v1627, %v1625
      %v2675 = vpack.c.bf16 %v2612, %v2611
      %v2676 = vpack.c.bf16 %v1632, %v1630
      %v2677 = vpack.c.bf16 %v2614, %v2613
      %v2678 = vpack.c.bf16 %v1637, %v1635
      %v2679 = vpack.c.bf16 %v2616, %v2615
      %v2680 = vpack.c.bf16 %v1642, %v1640
      %v2681 = vpack.c.bf16 %v2618, %v2617
      %v2682 = vpack.c.bf16 %v1647, %v1645
      %v2683 = vpack.c.bf16 %v2620, %v2619
      %v2684 = vpack.c.bf16 %v1652, %v1650
      %v2685 = vpack.c.bf16 %v2622, %v2621
      %v2686 = vpack.c.bf16 %v1657, %v1655
      %v2687 = vpack.c.bf16 %v2624, %v2623
      %v2688 = vpack.c.bf16 %v1662, %v1660
      %v2689 = vpack.c.bf16 %v2626, %v2625
      %v2690 = vpack.c.bf16 %v1667, %v1665
      %v2691 = vpack.c.bf16 %v2628, %v2627
      %v2692 = vpack.c.bf16 %v1672, %v1670
      %v2693 = vpack.c.bf16 %v2630, %v2629
      %v2694 = vpack.c.bf16 %v1677, %v1675
      %v2695 = vpack.c.bf16 %v2632, %v2631
      %v2696 = vpack.c.bf16 %v1682, %v1680
      %v2697 = vpack.c.bf16 %v2634, %v2633
      %v2698 = vpack.c.bf16 %v1695, %v1693
      %v2699 = vpack.c.bf16 %v2636, %v2635
      %v2700 = vpack.c.bf16 %v1708, %v1706
      %v2701 = vld [vmem:[%s2] sm:$0x1]
      %v2703 = vlaneseq
      %v2704 = vshrl.u32 %v2703, 7
      %v2705 = vsub.s32 0, %v2704
      %v2706 = vrot.slane %v2701, %v2705
      %v2726 = vunpack.c.l.b16 %v177
      %v2727 = vunpack.c.l.b16 %v178
      %v2728 = vunpack.c.l.b16 %v179
      %v2729 = vunpack.c.l.b16 %v180
      %v2730 = vunpack.c.l.b16 %v181
      %v2731 = vunpack.c.l.b16 %v182
      %v2732 = vunpack.c.l.b16 %v183
      %v2733 = vunpack.c.l.b16 %v184
      %v2734 = vunpack.c.l.b16 %v185
      %v2735 = vunpack.c.l.b16 %v186
      %v2736 = vunpack.c.l.b16 %v187
      %v2737 = vunpack.c.l.b16 %v188
      %v2738 = vunpack.c.l.b16 %v189
      %v2739 = vunpack.c.l.b16 %v190
      %v2740 = vunpack.c.l.b16 %v191
      %v2741 = vunpack.c.l.b16 %v192
      %v2742 = vunpack.c.l.b16 %v193
      %v2743 = vunpack.c.l.b16 %v194
      %v2744 = vpack.c.b16 %v2727, %v2726
      %v2745 = vpack.c.b16 %v2729, %v2728
      %v2746 = vpack.c.b16 %v2731, %v2730
      %v2747 = vpack.c.b16 %v2733, %v2732
      %v2748 = vpack.c.b16 %v2735, %v2734
      %v2749 = vpack.c.b16 %v2737, %v2736
      %v2750 = vpack.c.b16 %v2739, %v2738
      %v2751 = vpack.c.b16 %v2741, %v2740
      %v2752 = vpack.c.b16 %v2743, %v2742
      %v2763 = vsel %vm1189, %v2638, 0
      %v2766 = vsel %vm1189, %v2640, 0
      %v2769 = vsel %vm1189, %v2642, 0
      %v2772 = vsel %vm1189, %v2644, 0
      %v2775 = vsel %vm1189, %v2646, 0
      %v2778 = vsel %vm1189, %v2648, 0
      %v2781 = vsel %vm1189, %v2650, 0
      %v2784 = vsel %vm1189, %v2652, 0
      %v2787 = vsel %vm1189, %v2654, 0
      %v2790 = vsel %vm1189, %v2656, 0
      %v2793 = vsel %vm1189, %v2658, 0
      %v2796 = vsel %vm1189, %v2660, 0
      %v2799 = vsel %vm1189, %v2662, 0
      %v2802 = vsel %vm1189, %v2664, 0
      %v2805 = vsel %vm1189, %v2666, 0
      %v2808 = vsel %vm1189, %v2668, 0
      %v2811 = vsel %vm1189, %v2670, 0
      %v2814 = vsel %vm1189, %v2672, 0
      %v2817 = vsel %vm1189, %v2674, 0
      %v2820 = vsel %vm1189, %v2676, 0
      %v2823 = vsel %vm1189, %v2678, 0
      %v2826 = vsel %vm1189, %v2680, 0
      %v2829 = vsel %vm1189, %v2682, 0
      %v2832 = vsel %vm1189, %v2684, 0
      %v2835 = vsel %vm1189, %v2686, 0
      %v2838 = vsel %vm1189, %v2688, 0
      %v2841 = vsel %vm1189, %v2690, 0
      %v2844 = vsel %vm1189, %v2692, 0
      %v2847 = vsel %vm1189, %v2694, 0
      %v2850 = vsel %vm1189, %v2696, 0
      %v2853 = vsel %vm1189, %v2698, 0
      %v2856 = vsel %vm1189, %v2700, 0
      %2858 = vmatprep.subr.bf16.mxu0 0
      %2859 = vmatpush1.bf16.msra.mxu0 %v2744
      %2860 = vmatprep.subr.bf16.mxu0 0
      %2861 = vmatpush1.bf16.msra.mxu0 %v2745
      %2862 = vmatprep.subr.bf16.mxu0 0
      %2863 = vmatpush1.bf16.msra.mxu0 %v2746
      %2864 = vmatprep.subr.bf16.mxu0 0
      %2865 = vmatpush1.bf16.msra.mxu0 %v2747
      %2866 = vmatprep.subr.bf16.mxu0 0
      %2867 = vmatpush1.bf16.msra.mxu0 %v2748
      %2868 = vmatprep.subr.bf16.mxu0 0
      %2869 = vmatpush1.bf16.msra.mxu0 %v2749
      %2870 = vmatprep.subr.bf16.mxu0 0
      %2871 = vmatpush1.bf16.msra.mxu0 %v2750
      %2872 = vmatprep.subr.bf16.mxu0 0
      %2873 = vmatpush1.bf16.msra.mxu0 %v2751
      %2874 = vmatprep.subr.bf16.mxu0 0
      %2875 = vmatpush1.bf16.msra.mxu0 %v2752
      %2876 = vmatprep.subr.bf16.mxu0 0
      %2877 = vmatpush1.bf16.msra.mxu0 0
      %2878 = vmatprep.subr.bf16.mxu0 0
      %2879 = vmatpush1.bf16.msra.mxu0 0
      %2880 = vmatprep.subr.bf16.mxu0 0
      %2881 = vmatpush1.bf16.msra.mxu0 0
      %2882 = vmatprep.subr.bf16.mxu0 0
      %2883 = vmatpush1.bf16.msra.mxu0 0
      %2884 = vmatprep.subr.bf16.mxu0 0
      %2885 = vmatpush1.bf16.msra.mxu0 0
      %2886 = vmatprep.subr.bf16.mxu0 0
      %2887 = vmatpush1.bf16.msra.mxu0 0
      %2888 = vmatprep.subr.bf16.mxu0 0
      %2889 = vmatpush1.bf16.msra.mxu0 0
      %2890 = vmatprep.mubr.bf16.mxu0 %v2763
      %2891 = vmatmul.mubr.bf16.gmra.mrb[0].mxu0 %v2637
      %v2892 = vpop.f32.mrb[0].mxu0
      %v2893 = vadd.f32 %v2706, %v2892
      %v2894 = vpop.f32.mrb[0].mxu0
      %v2895 = vpop.f32.mrb[0].mxu0
      %v2896 = vadd.f32 %v2706, %v2895
      %v2897 = vpop.f32.mrb[0].mxu0
      %2898 = vmatprep.mubr.bf16.mxu0 %v2766
      %2899 = vmatmul.mubr.bf16.gmra.mrb[0].mxu0 %v2639
      %v2900 = vpop.f32.mrb[0].mxu0
      %v2901 = vadd.f32 %v2706, %v2900
      %v2902 = vpop.f32.mrb[0].mxu0
      %v2903 = vpop.f32.mrb[0].mxu0
      %v2904 = vadd.f32 %v2706, %v2903
      %v2905 = vpop.f32.mrb[0].mxu0
      %2906 = vmatprep.mubr.bf16.mxu0 %v2769
      %2907 = vmatmul.mubr.bf16.gmra.mrb[0].mxu0 %v2641
      %v2908 = vpop.f32.mrb[0].mxu0
      %v2909 = vadd.f32 %v2706, %v2908
      %v2910 = vpop.f32.mrb[0].mxu0
      %v2911 = vpop.f32.mrb[0].mxu0
      %v2912 = vadd.f32 %v2706, %v2911
      %v2913 = vpop.f32.mrb[0].mxu0
      %2914 = vmatprep.mubr.bf16.mxu0 %v2772
      %2915 = vmatmul.mubr.bf16.gmra.mrb[0].mxu0 %v2643
      %v2916 = vpop.f32.mrb[0].mxu0
      %v2917 = vadd.f32 %v2706, %v2916
      %v2918 = vpop.f32.mrb[0].mxu0
      %v2919 = vpop.f32.mrb[0].mxu0
      %v2920 = vadd.f32 %v2706, %v2919
      %v2921 = vpop.f32.mrb[0].mxu0
      %2922 = vmatprep.mubr.bf16.mxu0 %v2775
      %2923 = vmatmul.mubr.bf16.gmra.mrb[0].mxu0 %v2645
      %v2924 = vpop.f32.mrb[0].mxu0
      %v2925 = vadd.f32 %v2706, %v2924
      %v2926 = vpop.f32.mrb[0].mxu0
      %v2927 = vpop.f32.mrb[0].mxu0
      %v2928 = vadd.f32 %v2706, %v2927
      %v2929 = vpop.f32.mrb[0].mxu0
      %2930 = vmatprep.mubr.bf16.mxu0 %v2778
      %2931 = vmatmul.mubr.bf16.gmra.mrb[0].mxu0 %v2647
      %v2932 = vpop.f32.mrb[0].mxu0
      %v2933 = vadd.f32 %v2706, %v2932
      %v2934 = vpop.f32.mrb[0].mxu0
      %v2935 = vpop.f32.mrb[0].mxu0
      %v2936 = vadd.f32 %v2706, %v2935
      %v2937 = vpop.f32.mrb[0].mxu0
      %2938 = vmatprep.mubr.bf16.mxu0 %v2781
      %2939 = vmatmul.mubr.bf16.gmra.mrb[0].mxu0 %v2649
      %v2940 = vpop.f32.mrb[0].mxu0
      %v2941 = vadd.f32 %v2706, %v2940
      %v2942 = vpop.f32.mrb[0].mxu0
      %v2943 = vpop.f32.mrb[0].mxu0
      %v2944 = vadd.f32 %v2706, %v2943
      %v2945 = vpop.f32.mrb[0].mxu0
      %2946 = vmatprep.mubr.bf16.mxu0 %v2784
      %2947 = vmatmul.mubr.bf16.gmra.mrb[0].mxu0 %v2651
      %v2948 = vpop.f32.mrb[0].mxu0
      %v2949 = vadd.f32 %v2706, %v2948
      %v2950 = vpop.f32.mrb[0].mxu0
      %v2951 = vpop.f32.mrb[0].mxu0
      %v2952 = vadd.f32 %v2706, %v2951
      %v2953 = vpop.f32.mrb[0].mxu0
      %2954 = vmatprep.mubr.bf16.mxu0 %v2787
      %2955 = vmatmul.mubr.bf16.gmra.mrb[0].mxu0 %v2653
      %v2956 = vpop.f32.mrb[0].mxu0
      %v2957 = vadd.f32 %v2706, %v2956
      %v2958 = vpop.f32.mrb[0].mxu0
      %v2959 = vpop.f32.mrb[0].mxu0
      %v2960 = vadd.f32 %v2706, %v2959
      %v2961 = vpop.f32.mrb[0].mxu0
      %2962 = vmatprep.mubr.bf16.mxu0 %v2790
      %2963 = vmatmul.mubr.bf16.gmra.mrb[0].mxu0 %v2655
      %v2964 = vpop.f32.mrb[0].mxu0
      %v2965 = vadd.f32 %v2706, %v2964
      %v2966 = vpop.f32.mrb[0].mxu0
      %v2967 = vpop.f32.mrb[0].mxu0
      %v2968 = vadd.f32 %v2706, %v2967
      %v2969 = vpop.f32.mrb[0].mxu0
      %2970 = vmatprep.mubr.bf16.mxu0 %v2793
      %2971 = vmatmul.mubr.bf16.gmra.mrb[0].mxu0 %v2657
      %v2972 = vpop.f32.mrb[0].mxu0
      %v2973 = vadd.f32 %v2706, %v2972
      %v2974 = vpop.f32.mrb[0].mxu0
      %v2975 = vpop.f32.mrb[0].mxu0
      %v2976 = vadd.f32 %v2706, %v2975
      %v2977 = vpop.f32.mrb[0].mxu0
      %2978 = vmatprep.mubr.bf16.mxu0 %v2796
      %2979 = vmatmul.mubr.bf16.gmra.mrb[0].mxu0 %v2659
      %v2980 = vpop.f32.mrb[0].mxu0
      %v2981 = vadd.f32 %v2706, %v2980
      %v2982 = vpop.f32.mrb[0].mxu0
      %v2983 = vpop.f32.mrb[0].mxu0
      %v2984 = vadd.f32 %v2706, %v2983
      %v2985 = vpop.f32.mrb[0].mxu0
      %2986 = vmatprep.mubr.bf16.mxu0 %v2799
      %2987 = vmatmul.mubr.bf16.gmra.mrb[0].mxu0 %v2661
      %v2988 = vpop.f32.mrb[0].mxu0
      %v2989 = vadd.f32 %v2706, %v2988
      %v2990 = vpop.f32.mrb[0].mxu0
      %v2991 = vpop.f32.mrb[0].mxu0
      %v2992 = vadd.f32 %v2706, %v2991
      %v2993 = vpop.f32.mrb[0].mxu0
      %2994 = vmatprep.mubr.bf16.mxu0 %v2802
      %2995 = vmatmul.mubr.bf16.gmra.mrb[0].mxu0 %v2663
      %v2996 = vpop.f32.mrb[0].mxu0
      %v2997 = vadd.f32 %v2706, %v2996
      %v2998 = vpop.f32.mrb[0].mxu0
      %v2999 = vpop.f32.mrb[0].mxu0
      %v3000 = vadd.f32 %v2706, %v2999
      %v3001 = vpop.f32.mrb[0].mxu0
      %3002 = vmatprep.mubr.bf16.mxu0 %v2805
      %3003 = vmatmul.mubr.bf16.gmra.mrb[0].mxu0 %v2665
      %v3004 = vpop.f32.mrb[0].mxu0
      %v3005 = vadd.f32 %v2706, %v3004
      %v3006 = vpop.f32.mrb[0].mxu0
      %v3007 = vpop.f32.mrb[0].mxu0
      %v3008 = vadd.f32 %v2706, %v3007
      %v3009 = vpop.f32.mrb[0].mxu0
      %3010 = vmatprep.mubr.bf16.mxu0 %v2808
      %3011 = vmatmul.mubr.bf16.gmra.mrb[0].mxu0 %v2667
      %v3012 = vpop.f32.mrb[0].mxu0
      %v3013 = vadd.f32 %v2706, %v3012
      %v3014 = vpop.f32.mrb[0].mxu0
      %v3015 = vpop.f32.mrb[0].mxu0
      %v3016 = vadd.f32 %v2706, %v3015
      %v3017 = vpop.f32.mrb[0].mxu0
      %3018 = vmatprep.mubr.bf16.mxu0 %v2811
      %3019 = vmatmul.mubr.bf16.gmra.mrb[0].mxu0 %v2669
      %v3020 = vpop.f32.mrb[0].mxu0
      %v3021 = vadd.f32 %v2706, %v3020
      %v3022 = vpop.f32.mrb[0].mxu0
      %v3023 = vpop.f32.mrb[0].mxu0
      %v3024 = vadd.f32 %v2706, %v3023
      %v3025 = vpop.f32.mrb[0].mxu0
      %3026 = vmatprep.mubr.bf16.mxu0 %v2814
      %3027 = vmatmul.mubr.bf16.gmra.mrb[0].mxu0 %v2671
      %v3028 = vpop.f32.mrb[0].mxu0
      %v3029 = vadd.f32 %v2706, %v3028
      %v3030 = vpop.f32.mrb[0].mxu0
      %v3031 = vpop.f32.mrb[0].mxu0
      %v3032 = vadd.f32 %v2706, %v3031
      %v3033 = vpop.f32.mrb[0].mxu0
      %3034 = vmatprep.mubr.bf16.mxu0 %v2817
      %3035 = vmatmul.mubr.bf16.gmra.mrb[0].mxu0 %v2673
      %v3036 = vpop.f32.mrb[0].mxu0
      %v3037 = vadd.f32 %v2706, %v3036
      %v3038 = vpop.f32.mrb[0].mxu0
      %v3039 = vpop.f32.mrb[0].mxu0
      %v3040 = vadd.f32 %v2706, %v3039
      %v3041 = vpop.f32.mrb[0].mxu0
      %3042 = vmatprep.mubr.bf16.mxu0 %v2820
      %3043 = vmatmul.mubr.bf16.gmra.mrb[0].mxu0 %v2675
      %v3044 = vpop.f32.mrb[0].mxu0
      %v3045 = vadd.f32 %v2706, %v3044
      %v3046 = vpop.f32.mrb[0].mxu0
      %v3047 = vpop.f32.mrb[0].mxu0
      %v3048 = vadd.f32 %v2706, %v3047
      %v3049 = vpop.f32.mrb[0].mxu0
      %3050 = vmatprep.mubr.bf16.mxu0 %v2823
      %3051 = vmatmul.mubr.bf16.gmra.mrb[0].mxu0 %v2677
      %v3052 = vpop.f32.mrb[0].mxu0
      %v3053 = vadd.f32 %v2706, %v3052
      %v3054 = vpop.f32.mrb[0].mxu0
      %v3055 = vpop.f32.mrb[0].mxu0
      %v3056 = vadd.f32 %v2706, %v3055
      %v3057 = vpop.f32.mrb[0].mxu0
      %3058 = vmatprep.mubr.bf16.mxu0 %v2826
      %3059 = vmatmul.mubr.bf16.gmra.mrb[0].mxu0 %v2679
      %v3060 = vpop.f32.mrb[0].mxu0
      %v3061 = vadd.f32 %v2706, %v3060
      %v3062 = vpop.f32.mrb[0].mxu0
      %v3063 = vpop.f32.mrb[0].mxu0
      %v3064 = vadd.f32 %v2706, %v3063
      %v3065 = vpop.f32.mrb[0].mxu0
      %3066 = vmatprep.mubr.bf16.mxu0 %v2829
      %3067 = vmatmul.mubr.bf16.gmra.mrb[0].mxu0 %v2681
      %v3068 = vpop.f32.mrb[0].mxu0
      %v3069 = vadd.f32 %v2706, %v3068
      %v3070 = vpop.f32.mrb[0].mxu0
      %v3071 = vpop.f32.mrb[0].mxu0
      %v3072 = vadd.f32 %v2706, %v3071
      %v3073 = vpop.f32.mrb[0].mxu0
      %3074 = vmatprep.mubr.bf16.mxu0 %v2832
      %3075 = vmatmul.mubr.bf16.gmra.mrb[0].mxu0 %v2683
      %v3076 = vpop.f32.mrb[0].mxu0
      %v3077 = vadd.f32 %v2706, %v3076
      %v3078 = vpop.f32.mrb[0].mxu0
      %v3079 = vpop.f32.mrb[0].mxu0
      %v3080 = vadd.f32 %v2706, %v3079
      %v3081 = vpop.f32.mrb[0].mxu0
      %3082 = vmatprep.mubr.bf16.mxu0 %v2835
      %3083 = vmatmul.mubr.bf16.gmra.mrb[0].mxu0 %v2685
      %v3084 = vpop.f32.mrb[0].mxu0
      %v3085 = vadd.f32 %v2706, %v3084
      %v3086 = vpop.f32.mrb[0].mxu0
      %v3087 = vpop.f32.mrb[0].mxu0
      %v3088 = vadd.f32 %v2706, %v3087
      %v3089 = vpop.f32.mrb[0].mxu0
      %3090 = vmatprep.mubr.bf16.mxu0 %v2838
      %3091 = vmatmul.mubr.bf16.gmra.mrb[0].mxu0 %v2687
      %v3092 = vpop.f32.mrb[0].mxu0
      %v3093 = vadd.f32 %v2706, %v3092
      %v3094 = vpop.f32.mrb[0].mxu0
      %v3095 = vpop.f32.mrb[0].mxu0
      %v3096 = vadd.f32 %v2706, %v3095
      %v3097 = vpop.f32.mrb[0].mxu0
      %3098 = vmatprep.mubr.bf16.mxu0 %v2841
      %3099 = vmatmul.mubr.bf16.gmra.mrb[0].mxu0 %v2689
      %v3100 = vpop.f32.mrb[0].mxu0
      %v3101 = vadd.f32 %v2706, %v3100
      %v3102 = vpop.f32.mrb[0].mxu0
      %v3103 = vpop.f32.mrb[0].mxu0
      %v3104 = vadd.f32 %v2706, %v3103
      %v3105 = vpop.f32.mrb[0].mxu0
      %3106 = vmatprep.mubr.bf16.mxu0 %v2844
      %3107 = vmatmul.mubr.bf16.gmra.mrb[0].mxu0 %v2691
      %v3108 = vpop.f32.mrb[0].mxu0
      %v3109 = vadd.f32 %v2706, %v3108
      %v3110 = vpop.f32.mrb[0].mxu0
      %v3111 = vpop.f32.mrb[0].mxu0
      %v3112 = vadd.f32 %v2706, %v3111
      %v3113 = vpop.f32.mrb[0].mxu0
      %3114 = vmatprep.mubr.bf16.mxu0 %v2847
      %3115 = vmatmul.mubr.bf16.gmra.mrb[0].mxu0 %v2693
      %v3116 = vpop.f32.mrb[0].mxu0
      %v3117 = vadd.f32 %v2706, %v3116
      %v3118 = vpop.f32.mrb[0].mxu0
      %v3119 = vpop.f32.mrb[0].mxu0
      %v3120 = vadd.f32 %v2706, %v3119
      %v3121 = vpop.f32.mrb[0].mxu0
      %3122 = vmatprep.mubr.bf16.mxu0 %v2850
      %3123 = vmatmul.mubr.bf16.gmra.mrb[0].mxu0 %v2695
      %v3124 = vpop.f32.mrb[0].mxu0
      %v3125 = vadd.f32 %v2706, %v3124
      %v3126 = vpop.f32.mrb[0].mxu0
      %v3127 = vpop.f32.mrb[0].mxu0
      %v3128 = vadd.f32 %v2706, %v3127
      %v3129 = vpop.f32.mrb[0].mxu0
      %3130 = vmatprep.mubr.bf16.mxu0 %v2853
      %3131 = vmatmul.mubr.bf16.gmra.mrb[0].mxu0 %v2697
      %v3132 = vpop.f32.mrb[0].mxu0
      %v3133 = vadd.f32 %v2706, %v3132
      %v3134 = vpop.f32.mrb[0].mxu0
      %v3135 = vpop.f32.mrb[0].mxu0
      %v3136 = vadd.f32 %v2706, %v3135
      %v3137 = vpop.f32.mrb[0].mxu0
      %3138 = vmatprep.mubr.bf16.mxu0 %v2856
      %3139 = vmatmul.mubr.bf16.gmra.mrb[0].mxu0 %v2699
      %v3140 = vpop.f32.mrb[0].mxu0
      %v3141 = vadd.f32 %v2706, %v3140
      %v3142 = vpop.f32.mrb[0].mxu0
      %v3143 = vpop.f32.mrb[0].mxu0
      %v3144 = vadd.f32 %v2706, %v3143
      %v3145 = vpop.f32.mrb[0].mxu0
      %3146 = vdwg.mxu0
      %3147 = vxpose.xlu0.b32.start [1/16] %v2893, 128
      %3148 = vxpose.xlu0.b32.cont [2/16] %v2896, 128
      %3149 = vxpose.xlu0.b32.cont [3/16] %v2901, 128
      %3150 = vxpose.xlu0.b32.cont [4/16] %v2904, 128
      %3151 = vxpose.xlu0.b32.cont [5/16] %v2909, 128
      %3152 = vxpose.xlu0.b32.cont [6/16] %v2912, 128
      %3153 = vxpose.xlu0.b32.cont [7/16] %v2917, 128
      %3154 = vxpose.xlu0.b32.cont [8/16] %v2920, 128
      %3155 = vxpose.xlu0.b32.cont [9/16] %v2925, 128
      %3156 = vxpose.xlu0.b32.cont [10/16] %v2928, 128
      %3157 = vxpose.xlu0.b32.cont [11/16] %v2933, 128
      %3158 = vxpose.xlu0.b32.cont [12/16] %v2936, 128
      %3159 = vxpose.xlu0.b32.cont [13/16] %v2941, 128
      %3160 = vxpose.xlu0.b32.cont [14/16] %v2944, 128
      %3161 = vxpose.xlu0.b32.cont [15/16] %v2949, 128
      %3162 = vxpose.xlu0.b32.end [16/16] %v2952, 128
      %v3163 = vpop.trf.xlu0
      %v3164 = vpop.trf.xlu0
      %v3165 = vpop.trf.xlu0
      %v3166 = vpop.trf.xlu0
      %v3167 = vpop.trf.xlu0
      %v3168 = vpop.trf.xlu0
      %v3169 = vpop.trf.xlu0
      %v3170 = vpop.trf.xlu0
      %v3171 = vpop.trf.xlu0
      %v3172 = vpop.trf.xlu0
      %v3173 = vpop.trf.xlu0
      %v3174 = vpop.trf.xlu0
      %v3175 = vpop.trf.xlu0
      %v3176 = vpop.trf.xlu0
      %v3177 = vpop.trf.xlu0
      %v3178 = vpop.trf.xlu0
      %3179 = vxpose.xlu0.b32.start [1/16] %v2957, 128
      %3180 = vxpose.xlu0.b32.cont [2/16] %v2960, 128
      %3181 = vxpose.xlu0.b32.cont [3/16] %v2965, 128
      %3182 = vxpose.xlu0.b32.cont [4/16] %v2968, 128
      %3183 = vxpose.xlu0.b32.cont [5/16] %v2973, 128
      %3184 = vxpose.xlu0.b32.cont [6/16] %v2976, 128
      %3185 = vxpose.xlu0.b32.cont [7/16] %v2981, 128
      %3186 = vxpose.xlu0.b32.cont [8/16] %v2984, 128
      %3187 = vxpose.xlu0.b32.cont [9/16] %v2989, 128
      %3188 = vxpose.xlu0.b32.cont [10/16] %v2992, 128
      %3189 = vxpose.xlu0.b32.cont [11/16] %v2997, 128
      %3190 = vxpose.xlu0.b32.cont [12/16] %v3000, 128
      %3191 = vxpose.xlu0.b32.cont [13/16] %v3005, 128
      %3192 = vxpose.xlu0.b32.cont [14/16] %v3008, 128
      %3193 = vxpose.xlu0.b32.cont [15/16] %v3013, 128
      %3194 = vxpose.xlu0.b32.end [16/16] %v3016, 128
      %v3195 = vpop.trf.xlu0
      %v3196 = vpop.trf.xlu0
      %v3197 = vpop.trf.xlu0
      %v3198 = vpop.trf.xlu0
      %v3199 = vpop.trf.xlu0
      %v3200 = vpop.trf.xlu0
      %v3201 = vpop.trf.xlu0
      %v3202 = vpop.trf.xlu0
      %v3203 = vpop.trf.xlu0
      %v3204 = vpop.trf.xlu0
      %v3205 = vpop.trf.xlu0
      %v3206 = vpop.trf.xlu0
      %v3207 = vpop.trf.xlu0
      %v3208 = vpop.trf.xlu0
      %v3209 = vpop.trf.xlu0
      %v3210 = vpop.trf.xlu0
      %3211 = vxpose.xlu0.b32.start [1/16] %v3021, 128
      %3212 = vxpose.xlu0.b32.cont [2/16] %v3024, 128
      %3213 = vxpose.xlu0.b32.cont [3/16] %v3029, 128
      %3214 = vxpose.xlu0.b32.cont [4/16] %v3032, 128
      %3215 = vxpose.xlu0.b32.cont [5/16] %v3037, 128
      %3216 = vxpose.xlu0.b32.cont [6/16] %v3040, 128
      %3217 = vxpose.xlu0.b32.cont [7/16] %v3045, 128
      %3218 = vxpose.xlu0.b32.cont [8/16] %v3048, 128
      %3219 = vxpose.xlu0.b32.cont [9/16] %v3053, 128
      %3220 = vxpose.xlu0.b32.cont [10/16] %v3056, 128
      %3221 = vxpose.xlu0.b32.cont [11/16] %v3061, 128
      %3222 = vxpose.xlu0.b32.cont [12/16] %v3064, 128
      %3223 = vxpose.xlu0.b32.cont [13/16] %v3069, 128
      %3224 = vxpose.xlu0.b32.cont [14/16] %v3072, 128
      %3225 = vxpose.xlu0.b32.cont [15/16] %v3077, 128
      %3226 = vxpose.xlu0.b32.end [16/16] %v3080, 128
      %v3227 = vpop.trf.xlu0
      %v3228 = vpop.trf.xlu0
      %v3229 = vpop.trf.xlu0
      %v3230 = vpop.trf.xlu0
      %v3231 = vpop.trf.xlu0
      %v3232 = vpop.trf.xlu0
      %v3233 = vpop.trf.xlu0
      %v3234 = vpop.trf.xlu0
      %v3235 = vpop.trf.xlu0
      %v3236 = vpop.trf.xlu0
      %v3237 = vpop.trf.xlu0
      %v3238 = vpop.trf.xlu0
      %v3239 = vpop.trf.xlu0
      %v3240 = vpop.trf.xlu0
      %v3241 = vpop.trf.xlu0
      %v3242 = vpop.trf.xlu0
      %3243 = vxpose.xlu0.b32.start [1/16] %v3085, 128
      %3244 = vxpose.xlu0.b32.cont [2/16] %v3088, 128
      %3245 = vxpose.xlu0.b32.cont [3/16] %v3093, 128
      %3246 = vxpose.xlu0.b32.cont [4/16] %v3096, 128
      %3247 = vxpose.xlu0.b32.cont [5/16] %v3101, 128
      %3248 = vxpose.xlu0.b32.cont [6/16] %v3104, 128
      %3249 = vxpose.xlu0.b32.cont [7/16] %v3109, 128
      %3250 = vxpose.xlu0.b32.cont [8/16] %v3112, 128
      %3251 = vxpose.xlu0.b32.cont [9/16] %v3117, 128
      %3252 = vxpose.xlu0.b32.cont [10/16] %v3120, 128
      %3253 = vxpose.xlu0.b32.cont [11/16] %v3125, 128
      %3254 = vxpose.xlu0.b32.cont [12/16] %v3128, 128
      %3255 = vxpose.xlu0.b32.cont [13/16] %v3133, 128
      %3256 = vxpose.xlu0.b32.cont [14/16] %v3136, 128
      %3257 = vxpose.xlu0.b32.cont [15/16] %v3141, 128
      %3258 = vxpose.xlu0.b32.end [16/16] %v3144, 128
      %v3259 = vpop.trf.xlu0
      %v3260 = vpop.trf.xlu0
      %v3261 = vpop.trf.xlu0
      %v3262 = vpop.trf.xlu0
      %v3263 = vpop.trf.xlu0
      %v3264 = vpop.trf.xlu0
      %v3265 = vpop.trf.xlu0
      %v3266 = vpop.trf.xlu0
      %v3267 = vpop.trf.xlu0
      %v3268 = vpop.trf.xlu0
      %v3269 = vpop.trf.xlu0
      %v3270 = vpop.trf.xlu0
      %v3271 = vpop.trf.xlu0
      %v3272 = vpop.trf.xlu0
      %v3273 = vpop.trf.xlu0
      %v3274 = vpop.trf.xlu0
      %3275 = vst [vmem:[%s175] sm:$0xff] %v3163
      %3276 = vst [vmem:[%s175 + $0x8] sm:$0xff] %v3195
      %3277 = vst [vmem:[%s175 + $0x10] sm:$0xff] %v3227
      %3278 = vst [vmem:[%s175 + $0x18] sm:$0xff] %v3259
      %3279 = vst [vmem:[%s175 + $0x20] sm:$0xff] %v3164
      %3280 = vst [vmem:[%s175 + $0x28] sm:$0xff] %v3196
      %3281 = vst [vmem:[%s175 + $0x30] sm:$0xff] %v3228
      %3282 = vst [vmem:[%s175 + $0x38] sm:$0xff] %v3260
      %p3283 = scmp.lt.s32.totalorder %s14, 1
      %s3284 = scalar_select %p3283, %s14, 1
      %s3285 = smul.addr %s3284, 8
      %s3286 = smul.addr %s3285, 8
      %s3287 = scalar_lea.vmem %s3, %s3286
      // Predicated region
      $region33: #{_lambda_.3} parent=31 // pred_check
        %p3288 = pneg %p100
      $region34: #{_lambda_.3} parent=31 // pred_check_branch
        %3290 = sbr.rel (%p3288) target = $region36
      $region35: #{_lambda_.3} parent=31 // pred_region
        _
      $region36: #{_lambda_.3} parent=31 // pred_fallthru
        _
    $region32: #{_lambda_.3} parent=5 // pred_fallthru
      _
    %p3291 = scmp.le.s32.totalorder 2, %s9
    // Predicated region
    $region37: #{_lambda_.3} parent=5 // pred_check
      %p3292 = pneg %p3291
    $region38: #{_lambda_.3} parent=5 // pred_check_branch
      %3294 = sbr.rel (%p3292) target = $region40
    $region39: #{_lambda_.3} parent=5 // pred_region
      %s3295 = ssub.s32 %s9, 2
      // Predicated region
      $region41: #{_lambda_.3} parent=39 // pred_check
        %p3296 = pneg %p106
      $region42: #{_lambda_.3} parent=39 // pred_check_branch
        %3298 = sbr.rel (%p3296) target = $region44
      $region43: #{_lambda_.3} parent=39 // pred_region
        %p3299 = scmp.lt.s32.totalorder %s15, 1
        %s3300 = scalar_select %p3299, %s15, 1
        %s3301 = smul.addr %s3300, 8
        %s3302 = smul.addr %s3301, 8
        %s3303 = scalar_lea.vmem %s3, %s3302
      $region44: #{_lambda_.3} parent=39 // pred_fallthru
        _
    $region40: #{_lambda_.3} parent=5 // pred_fallthru
      _
  $region6: #{_lambda_.3} parent=0 // loop_footer
    %s13 = sadd.s32 1, %s9
  $region7: #{_lambda_.3} parent=0 // loop_footer_branch
    %8 = sbr.rel target = $region3
  $region8: #{_lambda_.3} parent=0 // loop_exit
    _

</llo_original>
